<compile_context>
chip_gen: v6e
topology: v6e:2x2x1
jax: 0.10.0
libtpu: 0.0.40
codegen_flags: <defaults>
</compile_context>

<pallas_src>
import math

import jax
import jax.numpy as jnp
from jax.experimental import pallas as pl
from jax.experimental.pallas import tpu as pltpu

# ------------------------- small "vit-tiny-like" config -------------------------
# (Scaled-down shapes consistent with the module: real vit_tiny_patch16_384 has
#  img=384, D=192, depth=12, heads=3; we keep the same structure at toy sizes.)
PATCH = 16
IMG = 32                 # 32x32 image -> 2x2 = 4 patches
IN_CHAN = 4
EMBED_DIM = 64           # transformer width D
NUM_HEADS = 2
HEAD_DIM = EMBED_DIM // NUM_HEADS
DEPTH = 2
MLP_HIDDEN = 4 * EMBED_DIM
EMBED_SIZE = 32          # self.model.head output (customised final layer)
DENSE_FEATURE_SIZE = 8
HIDDEN_SIZE = 32
OUTPUT_SIZE = 1
LN_EPS = 1e-6

# TODO(synk): at the real vit_tiny_patch16_384 shapes (N=577, D=192, depth=12,
# large batch) this "everything in one VMEM block" kernel must be re-tiled over
# the token/M dimension with a grid + vmem_limit_bytes; at these toy shapes the
# whole model fits in <1 MiB of VMEM so full fusion is strictly optimal.


# ------------------------------- fused kernel -------------------------------

def _fused_vit_kernel(
    patches_ref,            # (N, C*P*P) f32   row 0 is an all-zero cls slot
    dense_ref,              # (1, DENSE) f32
    patch_w_ref,            # (C*P*P, D) bf16
    patch_b_ref,            # (1, D) f32
    cls_pos_ref,            # (N, D) f32       row 0 already holds cls_token+pos0-patch_b
    qkv_w_ref,              # (DEPTH, D, 3D) bf16
    qkv_b_ref,              # (DEPTH, 1, 3D) f32
    proj_w_ref,             # (DEPTH, D, D) bf16
    proj_b_ref,             # (DEPTH, 1, D) f32
    ln1_g_ref, ln1_b_ref,   # (DEPTH, 1, D) f32
    ln2_g_ref, ln2_b_ref,   # (DEPTH, 1, D) f32
    fc1_w_ref,              # (DEPTH, D, H) bf16
    fc1_b_ref,              # (DEPTH, 1, H) f32
    fc2_w_ref,              # (DEPTH, H, D) bf16
    fc2_b_ref,              # (DEPTH, 1, D) f32
    norm_g_ref, norm_b_ref, # (1, D) f32
    head_w_ref,             # (D, E) bf16
    head_b_ref,             # (1, E) f32
    hfc1_w_ref,             # (E+DENSE, HID) bf16
    hfc1_b_ref,             # (1, HID) f32
    hfc2_w_ref,             # (HID, OUT) bf16
    hfc2_b_ref,             # (1, OUT) f32
    out_ref,                # (1, OUT) f32
):
    f32 = jnp.float32
    bf16 = jnp.bfloat16
    D = EMBED_DIM
    Dh = HEAD_DIM
    scale = Dh ** -0.5

    def ln(x, g, b):                       # f32 statistics
        mu = jnp.mean(x, axis=-1, keepdims=True)
        xc = x - mu
        var = jnp.mean(xc * xc, axis=-1, keepdims=True)
        return xc * jax.lax.rsqrt(var + LN_EPS) * g + b

    def mm(x, w, bias):                    # bf16 MXU inputs, f32 accumulate
        acc = jnp.dot(x.astype(bf16), w, preferred_element_type=f32)
        return acc + bias

    # --- patch embed; cls token + positional embedding fused into the epilogue ---
    # (row 0 of `patches` is zeros; cls_pos row 0 compensates for patch_b there)
    x = mm(patches_ref[...].astype(f32), patch_w_ref[...], patch_b_ref[...])
    x = x + cls_pos_ref[...]                               # (N, D) tokens, VMEM-resident

    # --- transformer blocks: LN1 -> qkv -> attention -> proj(+res) -> LN2 -> MLP(+res) ---
    for d in range(DEPTH):
        y = ln(x, ln1_g_ref[d], ln1_b_ref[d])
        qkv = mm(y, qkv_w_ref[d], qkv_b_ref[d])            # (N, 3D)
        q = qkv[:, 0:D]
        k = qkv[:, D:2 * D]
        v = qkv[:, 2 * D:3 * D]

        proj_w = proj_w_ref[d]                             # (D, D) bf16
        attn_out = proj_b_ref[d]                           # (1, D), broadcasts
        for h in range(NUM_HEADS):                         # unrolled, heads = lane slices
            lo = h * Dh
            qh = q[:, lo:lo + Dh].astype(bf16)
            kh = k[:, lo:lo + Dh].astype(bf16)
            vh = v[:, lo:lo + Dh].astype(bf16)
            s = jax.lax.dot_general(qh, kh, (((1,), (1,)), ((), ())),
                                    preferred_element_type=f32) * scale
            s = s - jnp.max(s, axis=-1, keepdims=True)     # f32 softmax
            p = jnp.exp(s)
            p = p * pl.reciprocal(jnp.sum(p, axis=-1, keepdims=True), approx=True)
            oh = jnp.dot(p.astype(bf16), vh, preferred_element_type=f32)
            # head-concat folded into the output projection: proj(concat_h o_h)
            #   == sum_h o_h @ proj_w[h*Dh:(h+1)*Dh, :]
            attn_out = attn_out + jnp.dot(oh.astype(bf16), proj_w[lo:lo + Dh, :],
                                          preferred_element_type=f32)
        x = x + attn_out                                   # residual fused in-kernel

        y = ln(x, ln2_g_ref[d], ln2_b_ref[d])
        hdn = mm(y, fc1_w_ref[d], fc1_b_ref[d])
        # exact (erf-based) GELU, matching torch.nn.GELU default
        hdn = 0.5 * hdn * (1.0 + jax.lax.erf(hdn * (1.0 / math.sqrt(2.0))))
        x = x + mm(hdn, fc2_w_ref[d], fc2_b_ref[d])        # residual fused in-kernel

    # --- final norm, class-token pooling, customised ViT head ---
    xn = ln(x, norm_g_ref[...], norm_b_ref[...])
    cls = xn[0:1, :]                                       # (1, D)
    emb = mm(cls, head_w_ref[...], head_b_ref[...])        # (1, E)

    # --- dropout = identity (eval); torch.cat([emb, dense]) @ W realised as a
    #     split matmul (avoids any in-kernel concat / extra HBM pass) ---
    dense = dense_ref[...]                                 # (1, DENSE) f32
    E = EMBED_SIZE
    w1 = hfc1_w_ref[...]                                   # (E+DENSE, HID) bf16
    h1 = (jnp.dot(emb.astype(bf16), w1[0:E, :], preferred_element_type=f32)
          + jnp.dot(dense.astype(bf16), w1[E:, :], preferred_element_type=f32)
          + hfc1_b_ref[...])
    h1 = jnp.maximum(h1, 0.0)                              # ReLU
    out = mm(h1, hfc2_w_ref[...], hfc2_b_ref[...])         # (1, OUT)
    out_ref[...] = out.astype(out_ref.dtype)


# ------------------------------- model forward -------------------------------

def model_forward(params, image, dense):
    B, C, H, W = image.shape
    gh, gw = H // PATCH, W // PATCH
    Np = gh * gw
    N = Np + 1
    CP2 = C * PATCH * PATCH
    v = params["vit"]

    # Conv2d(k=16, s=16) patch extraction == reshape/transpose (cheap XLA glue)
    # followed by an in-kernel matmul over the flattened patch pixels.
    patches = image.reshape(B, C, gh, PATCH, gw, PATCH)
    patches = patches.transpose(0, 2, 4, 1, 3, 5).reshape(B, Np, CP2)
    # Prepend an all-zero "cls" pixel row so cls/pos handling fuses into the
    # patch-embed epilogue inside the kernel (no in-kernel concat needed).
    patches = jnp.pad(patches, ((0, 0), (1, 0), (0, 0)))   # (B, N, CP2)

    # Additive slab: row 0 = cls_token + pos[0] - patch_b (compensates the bias
    # that the zero cls row picks up in the patch matmul); rows 1.. = pos[1..].
    cls_pos = jnp.concatenate(
        [v["cls_token"] + v["pos_embed"][0:1, :] - v["patch_b"],
         v["pos_embed"][1:, :]], axis=0)                   # (N, D) f32

    dense3 = dense.reshape(B, 1, DENSE_FEATURE_SIZE)

    weights = (
        v["patch_w"], v["patch_b"], cls_pos,
        v["qkv_w"], v["qkv_b"], v["proj_w"], v["proj_b"],
        v["ln1_g"], v["ln1_b"], v["ln2_g"], v["ln2_b"],
        v["fc1_w"], v["fc1_b"], v["fc2_w"], v["fc2_b"],
        v["norm_g"], v["norm_b"], v["head_w"], v["head_b"],
        params["hfc1_w"], params["hfc1_b"], params["hfc2_w"], params["hfc2_b"],
    )

    def _full_spec(a):
        zeros = (0,) * a.ndim
        return pl.BlockSpec(a.shape, lambda b: zeros)

    in_specs = [
        pl.BlockSpec((None, N, CP2), lambda b: (b, 0, 0)),                 # patches
        pl.BlockSpec((None, 1, DENSE_FEATURE_SIZE), lambda b: (b, 0, 0)),  # dense
    ] + [_full_spec(a) for a in weights]

    out = pl.pallas_call(
        _fused_vit_kernel,
        grid=(B,),                                          # batch -> parallel axis
        out_shape=jax.ShapeDtypeStruct((B, 1, OUTPUT_SIZE), jnp.float32),
        in_specs=in_specs,
        out_specs=pl.BlockSpec((None, 1, OUTPUT_SIZE), lambda b: (b, 0, 0)),
        compiler_params=pltpu.CompilerParams(
            dimension_semantics=("parallel",)),             # 2 TCs on v7x
    )(patches, dense3, *weights)
    return out.reshape(B, OUTPUT_SIZE)


# ---------------------------- deterministic params ----------------------------

def init_params(key):
    keys = iter(jax.random.split(key, 64))

    def nrm(shape, dtype=jnp.bfloat16, std=0.02):
        return (jax.random.normal(next(keys), shape, jnp.float32) * std).astype(dtype)

    def zeros(shape):
        return jnp.zeros(shape, jnp.float32)

    def ones(shape):
        return jnp.ones(shape, jnp.float32)

    Np = (IMG // PATCH) * (IMG // PATCH)
    N = Np + 1
    D = EMBED_DIM
    vit = dict(
        # matmul weights in bf16 (MXU-native, halved HBM traffic); additive
        # params (biases, LN gamma/beta, cls/pos) kept in f32.
        patch_w=nrm((IN_CHAN * PATCH * PATCH, D)),
        patch_b=zeros((1, D)),
        cls_token=nrm((1, D), dtype=jnp.float32),
        pos_embed=nrm((N, D), dtype=jnp.float32),
        qkv_w=nrm((DEPTH, D, 3 * D)),
        qkv_b=zeros((DEPTH, 1, 3 * D)),
        proj_w=nrm((DEPTH, D, D)),
        proj_b=zeros((DEPTH, 1, D)),
        ln1_g=ones((DEPTH, 1, D)), ln1_b=zeros((DEPTH, 1, D)),
        ln2_g=ones((DEPTH, 1, D)), ln2_b=zeros((DEPTH, 1, D)),
        fc1_w=nrm((DEPTH, D, MLP_HIDDEN)),
        fc1_b=zeros((DEPTH, 1, MLP_HIDDEN)),
        fc2_w=nrm((DEPTH, MLP_HIDDEN, D)),
        fc2_b=zeros((DEPTH, 1, D)),
        norm_g=ones((1, D)), norm_b=zeros((1, D)),
        head_w=nrm((D, EMBED_SIZE)), head_b=zeros((1, EMBED_SIZE)),
    )
    return dict(
        vit=vit,
        hfc1_w=nrm((EMBED_SIZE + DENSE_FEATURE_SIZE, HIDDEN_SIZE)),
        hfc1_b=zeros((1, HIDDEN_SIZE)),
        hfc2_w=nrm((HIDDEN_SIZE, OUTPUT_SIZE)),
        hfc2_b=zeros((1, OUTPUT_SIZE)),
    )


# ------------------------------------ main ------------------------------------

if __name__ == "__main__":
    root = jax.random.PRNGKey(0)
    k_img, k_dense, k_params = jax.random.split(root, 3)

    B = 2
    image = jax.random.normal(k_img, (B, IN_CHAN, IMG, IMG), jnp.float32)   # NCHW
    dense = jax.random.normal(k_dense, (B, DENSE_FEATURE_SIZE), jnp.float32)
    params = init_params(k_params)

    out = jax.jit(model_forward)(params, image, dense)
    out = jax.block_until_ready(out)
    assert out.shape == (B, OUTPUT_SIZE), out.shape
    assert jnp.all(jnp.isfinite(out))
    print("KERNEL_OK")
</pallas_src>

<mosaic_0001>
module attributes {stable_mosaic.version = 11 : i64} {
  func.func @_fused_vit_kernel(%arg0: i32, %arg1: memref<1x5x1024xf32, #tpu.memory_space<vmem>>, %arg2: memref<1x1x8xf32, #tpu.memory_space<vmem>>, %arg3: memref<1024x64xbf16, #tpu.memory_space<vmem>>, %arg4: memref<1x64xf32, #tpu.memory_space<vmem>>, %arg5: memref<5x64xf32, #tpu.memory_space<vmem>>, %arg6: memref<2x64x192xbf16, #tpu.memory_space<vmem>>, %arg7: memref<2x1x192xf32, #tpu.memory_space<vmem>>, %arg8: memref<2x64x64xbf16, #tpu.memory_space<vmem>>, %arg9: memref<2x1x64xf32, #tpu.memory_space<vmem>>, %arg10: memref<2x1x64xf32, #tpu.memory_space<vmem>>, %arg11: memref<2x1x64xf32, #tpu.memory_space<vmem>>, %arg12: memref<2x1x64xf32, #tpu.memory_space<vmem>>, %arg13: memref<2x1x64xf32, #tpu.memory_space<vmem>>, %arg14: memref<2x64x256xbf16, #tpu.memory_space<vmem>>, %arg15: memref<2x1x256xf32, #tpu.memory_space<vmem>>, %arg16: memref<2x256x64xbf16, #tpu.memory_space<vmem>>, %arg17: memref<2x1x64xf32, #tpu.memory_space<vmem>>, %arg18: memref<1x64xf32, #tpu.memory_space<vmem>>, %arg19: memref<1x64xf32, #tpu.memory_space<vmem>>, %arg20: memref<64x32xbf16, #tpu.memory_space<vmem>>, %arg21: memref<1x32xf32, #tpu.memory_space<vmem>>, %arg22: memref<40x32xbf16, #tpu.memory_space<vmem>>, %arg23: memref<1x32xf32, #tpu.memory_space<vmem>>, %arg24: memref<32x1xbf16, #tpu.memory_space<vmem>>, %arg25: memref<1x1xf32, #tpu.memory_space<vmem>>, %arg26: memref<1x1x1xf32, #tpu.memory_space<vmem>>) attributes {dimension_semantics = [#tpu.dimension_semantics<parallel>], iteration_bounds = array<i64: 2>, scalar_prefetch = 0 : i64, scratch_operands = 0 : i64, tpu.core_type = #tpu.core_type<tc>, window_params = [{transform_indices = @transform_0, window_bounds = array<i64: 1, 5, 1024>}, {transform_indices = @transform_1, window_bounds = array<i64: 1, 1, 8>}, {pipeline_mode = #tpu.pipeline_mode<synchronous>, transform_indices = @transform_2, window_bounds = array<i64: 1024, 64>}, {pipeline_mode = #tpu.pipeline_mode<synchronous>, transform_indices = @transform_3, window_bounds = array<i64: 1, 64>}, {pipeline_mode = #tpu.pipeline_mode<synchronous>, transform_indices = @transform_4, window_bounds = array<i64: 5, 64>}, {pipeline_mode = #tpu.pipeline_mode<synchronous>, transform_indices = @transform_5, window_bounds = array<i64: 2, 64, 192>}, {pipeline_mode = #tpu.pipeline_mode<synchronous>, transform_indices = @transform_6, window_bounds = array<i64: 2, 1, 192>}, {pipeline_mode = #tpu.pipeline_mode<synchronous>, transform_indices = @transform_7, window_bounds = array<i64: 2, 64, 64>}, {pipeline_mode = #tpu.pipeline_mode<synchronous>, transform_indices = @transform_8, window_bounds = array<i64: 2, 1, 64>}, {pipeline_mode = #tpu.pipeline_mode<synchronous>, transform_indices = @transform_9, window_bounds = array<i64: 2, 1, 64>}, {pipeline_mode = #tpu.pipeline_mode<synchronous>, transform_indices = @transform_10, window_bounds = array<i64: 2, 1, 64>}, {pipeline_mode = #tpu.pipeline_mode<synchronous>, transform_indices = @transform_11, window_bounds = array<i64: 2, 1, 64>}, {pipeline_mode = #tpu.pipeline_mode<synchronous>, transform_indices = @transform_12, window_bounds = array<i64: 2, 1, 64>}, {pipeline_mode = #tpu.pipeline_mode<synchronous>, transform_indices = @transform_13, window_bounds = array<i64: 2, 64, 256>}, {pipeline_mode = #tpu.pipeline_mode<synchronous>, transform_indices = @transform_14, window_bounds = array<i64: 2, 1, 256>}, {pipeline_mode = #tpu.pipeline_mode<synchronous>, transform_indices = @transform_15, window_bounds = array<i64: 2, 256, 64>}, {pipeline_mode = #tpu.pipeline_mode<synchronous>, transform_indices = @transform_16, window_bounds = array<i64: 2, 1, 64>}, {pipeline_mode = #tpu.pipeline_mode<synchronous>, transform_indices = @transform_17, window_bounds = array<i64: 1, 64>}, {pipeline_mode = #tpu.pipeline_mode<synchronous>, transform_indices = @transform_18, window_bounds = array<i64: 1, 64>}, {pipeline_mode = #tpu.pipeline_mode<synchronous>, transform_indices = @transform_19, window_bounds = array<i64: 64, 32>}, {pipeline_mode = #tpu.pipeline_mode<synchronous>, transform_indices = @transform_20, window_bounds = array<i64: 1, 32>}, {pipeline_mode = #tpu.pipeline_mode<synchronous>, transform_indices = @transform_21, window_bounds = array<i64: 40, 32>}, {pipeline_mode = #tpu.pipeline_mode<synchronous>, transform_indices = @transform_22, window_bounds = array<i64: 1, 32>}, {pipeline_mode = #tpu.pipeline_mode<synchronous>, transform_indices = @transform_23, window_bounds = array<i64: 32, 1>}, {pipeline_mode = #tpu.pipeline_mode<synchronous>, transform_indices = @transform_24, window_bounds = array<i64: 1, 1>}, {transform_indices = @transform_25, window_bounds = array<i64: 1, 1, 1>}]} {
    %c0 = arith.constant 0 : index
    %c0_0 = arith.constant 0 : index
    %c0_1 = arith.constant 0 : index
    %0 = vector.load %arg1[%c0, %c0_0, %c0_1] : memref<1x5x1024xf32, #tpu.memory_space<vmem>>, vector<1x5x1024xf32>
    %1 = vector.shape_cast %0 : vector<1x5x1024xf32> to vector<5x1024xf32>
    %c0_2 = arith.constant 0 : index
    %c0_3 = arith.constant 0 : index
    %2 = vector.load %arg3[%c0_2, %c0_3] : memref<1024x64xbf16, #tpu.memory_space<vmem>>, vector<1024x64xbf16>
    %c0_4 = arith.constant 0 : index
    %c0_5 = arith.constant 0 : index
    %3 = vector.load %arg4[%c0_4, %c0_5] : memref<1x64xf32, #tpu.memory_space<vmem>>, vector<1x64xf32>
    %4 = arith.truncf %1 : vector<5x1024xf32> to vector<5x1024xbf16>
    %cst = arith.constant dense<0.000000e+00> : vector<5x64xf32>
    %5 = tpu.matmul %4, %2, %cst {dimension_numbers = #tpu.dot_dimension_numbers<[1], [0], [0], [1], [0, 0, 1, 1], [], []>} : vector<5x1024xbf16>, vector<1024x64xbf16>, vector<5x64xf32> -> vector<5x64xf32>
    %6 = vector.broadcast %3 : vector<1x64xf32> to vector<5x64xf32>
    %7 = arith.addf %5, %6 : vector<5x64xf32>
    %c0_6 = arith.constant 0 : index
    %c0_7 = arith.constant 0 : index
    %8 = vector.load %arg5[%c0_6, %c0_7] : memref<5x64xf32, #tpu.memory_space<vmem>>, vector<5x64xf32>
    %9 = arith.addf %7, %8 : vector<5x64xf32>
    %c0_8 = arith.constant 0 : index
    %c0_9 = arith.constant 0 : index
    %c0_10 = arith.constant 0 : index
    %10 = vector.load %arg10[%c0_8, %c0_9, %c0_10] : memref<2x1x64xf32, #tpu.memory_space<vmem>>, vector<1x1x64xf32>
    %11 = vector.shape_cast %10 : vector<1x1x64xf32> to vector<1x64xf32>
    %c0_11 = arith.constant 0 : index
    %c0_12 = arith.constant 0 : index
    %c0_13 = arith.constant 0 : index
    %12 = vector.load %arg11[%c0_11, %c0_12, %c0_13] : memref<2x1x64xf32, #tpu.memory_space<vmem>>, vector<1x1x64xf32>
    %13 = vector.shape_cast %12 : vector<1x1x64xf32> to vector<1x64xf32>
    %cst_14 = arith.constant dense<0.000000e+00> : vector<5xf32>
    %14 = vector.multi_reduction <add>, %9, %cst_14 [1] : vector<5x64xf32> to vector<5xf32>
    %15 = vector.shape_cast %14 : vector<5xf32> to vector<5x1xf32>
    %cst_15 = arith.constant 6.400000e+01 : f32
    %16 = vector.broadcast %cst_15 : f32 to vector<5x1xf32>
    %17 = arith.divf %15, %16 : vector<5x1xf32>
    %18 = vector.broadcast %17 : vector<5x1xf32> to vector<5x64xf32>
    %19 = arith.subf %9, %18 : vector<5x64xf32>
    %20 = arith.mulf %19, %19 : vector<5x64xf32>
    %cst_16 = arith.constant dense<0.000000e+00> : vector<5xf32>
    %21 = vector.multi_reduction <add>, %20, %cst_16 [1] : vector<5x64xf32> to vector<5xf32>
    %22 = vector.shape_cast %21 : vector<5xf32> to vector<5x1xf32>
    %cst_17 = arith.constant 6.400000e+01 : f32
    %23 = vector.broadcast %cst_17 : f32 to vector<5x1xf32>
    %24 = arith.divf %22, %23 : vector<5x1xf32>
    %cst_18 = arith.constant 9.99999997E-7 : f32
    %25 = vector.broadcast %cst_18 : f32 to vector<5x1xf32>
    %26 = arith.addf %24, %25 : vector<5x1xf32>
    %27 = math.rsqrt %26 : vector<5x1xf32>
    %28 = vector.broadcast %27 : vector<5x1xf32> to vector<5x64xf32>
    %29 = arith.mulf %19, %28 : vector<5x64xf32>
    %30 = vector.broadcast %11 : vector<1x64xf32> to vector<5x64xf32>
    %31 = arith.mulf %29, %30 : vector<5x64xf32>
    %32 = vector.broadcast %13 : vector<1x64xf32> to vector<5x64xf32>
    %33 = arith.addf %31, %32 : vector<5x64xf32>
    %c0_19 = arith.constant 0 : index
    %c0_20 = arith.constant 0 : index
    %c0_21 = arith.constant 0 : index
    %34 = vector.load %arg6[%c0_19, %c0_20, %c0_21] : memref<2x64x192xbf16, #tpu.memory_space<vmem>>, vector<1x64x192xbf16>
    %35 = vector.shape_cast %34 : vector<1x64x192xbf16> to vector<64x192xbf16>
    %c0_22 = arith.constant 0 : index
    %c0_23 = arith.constant 0 : index
    %c0_24 = arith.constant 0 : index
    %36 = vector.load %arg7[%c0_22, %c0_23, %c0_24] : memref<2x1x192xf32, #tpu.memory_space<vmem>>, vector<1x1x192xf32>
    %37 = vector.shape_cast %36 : vector<1x1x192xf32> to vector<1x192xf32>
    %38 = arith.truncf %33 : vector<5x64xf32> to vector<5x64xbf16>
    %cst_25 = arith.constant dense<0.000000e+00> : vector<5x192xf32>
    %39 = tpu.matmul %38, %35, %cst_25 {dimension_numbers = #tpu.dot_dimension_numbers<[1], [0], [0], [1], [0, 0, 1, 1], [], []>} : vector<5x64xbf16>, vector<64x192xbf16>, vector<5x192xf32> -> vector<5x192xf32>
    %40 = vector.broadcast %37 : vector<1x192xf32> to vector<5x192xf32>
    %41 = arith.addf %39, %40 : vector<5x192xf32>
    %42 = vector.extract_strided_slice %41 {offsets = [0, 0], sizes = [5, 64], strides = [1, 1]} : vector<5x192xf32> to vector<5x64xf32>
    %43 = vector.extract_strided_slice %41 {offsets = [0, 64], sizes = [5, 64], strides = [1, 1]} : vector<5x192xf32> to vector<5x64xf32>
    %44 = vector.extract_strided_slice %41 {offsets = [0, 128], sizes = [5, 64], strides = [1, 1]} : vector<5x192xf32> to vector<5x64xf32>
    %c0_26 = arith.constant 0 : index
    %c0_27 = arith.constant 0 : index
    %c0_28 = arith.constant 0 : index
    %45 = vector.load %arg8[%c0_26, %c0_27, %c0_28] : memref<2x64x64xbf16, #tpu.memory_space<vmem>>, vector<1x64x64xbf16>
    %46 = vector.shape_cast %45 : vector<1x64x64xbf16> to vector<64x64xbf16>
    %c0_29 = arith.constant 0 : index
    %c0_30 = arith.constant 0 : index
    %c0_31 = arith.constant 0 : index
    %47 = vector.load %arg9[%c0_29, %c0_30, %c0_31] : memref<2x1x64xf32, #tpu.memory_space<vmem>>, vector<1x1x64xf32>
    %48 = vector.shape_cast %47 : vector<1x1x64xf32> to vector<1x64xf32>
    %49 = vector.extract_strided_slice %42 {offsets = [0, 0], sizes = [5, 32], strides = [1, 1]} : vector<5x64xf32> to vector<5x32xf32>
    %50 = arith.truncf %49 : vector<5x32xf32> to vector<5x32xbf16>
    %51 = vector.extract_strided_slice %43 {offsets = [0, 0], sizes = [5, 32], strides = [1, 1]} : vector<5x64xf32> to vector<5x32xf32>
    %52 = arith.truncf %51 : vector<5x32xf32> to vector<5x32xbf16>
    %53 = vector.extract_strided_slice %44 {offsets = [0, 0], sizes = [5, 32], strides = [1, 1]} : vector<5x64xf32> to vector<5x32xf32>
    %54 = arith.truncf %53 : vector<5x32xf32> to vector<5x32xbf16>
    %cst_32 = arith.constant dense<0.000000e+00> : vector<5x5xf32>
    %55 = tpu.matmul %50, %52, %cst_32 {dimension_numbers = #tpu.dot_dimension_numbers<[1], [1], [0], [0], [0, 0, 1, 0], [], []>} : vector<5x32xbf16>, vector<5x32xbf16>, vector<5x5xf32> -> vector<5x5xf32>
    %cst_33 = arith.constant 0.176776692 : f32
    %56 = vector.broadcast %cst_33 : f32 to vector<5x5xf32>
    %57 = arith.mulf %55, %56 : vector<5x5xf32>
    %cst_34 = arith.constant dense<0xFF800000> : vector<5xf32>
    %58 = vector.multi_reduction <maximumf>, %57, %cst_34 [1] : vector<5x5xf32> to vector<5xf32>
    %59 = vector.shape_cast %58 : vector<5xf32> to vector<5x1xf32>
    %60 = vector.broadcast %59 : vector<5x1xf32> to vector<5x5xf32>
    %61 = arith.subf %57, %60 : vector<5x5xf32>
    %62 = math.exp %61 : vector<5x5xf32>
    %cst_35 = arith.constant dense<0.000000e+00> : vector<5xf32>
    %63 = vector.multi_reduction <add>, %62, %cst_35 [1] : vector<5x5xf32> to vector<5xf32>
    %64 = vector.shape_cast %63 : vector<5xf32> to vector<5x1xf32>
    %65 = tpu.reciprocal %64 {approx = true} : vector<5x1xf32> -> vector<5x1xf32>
    %66 = vector.broadcast %65 : vector<5x1xf32> to vector<5x5xf32>
    %67 = arith.mulf %62, %66 : vector<5x5xf32>
    %68 = arith.truncf %67 : vector<5x5xf32> to vector<5x5xbf16>
    %cst_36 = arith.constant dense<0.000000e+00> : vector<5x32xf32>
    %69 = tpu.matmul %68, %54, %cst_36 {dimension_numbers = #tpu.dot_dimension_numbers<[1], [0], [0], [1], [0, 0, 1, 1], [], []>} : vector<5x5xbf16>, vector<5x32xbf16>, vector<5x32xf32> -> vector<5x32xf32>
    %70 = arith.truncf %69 : vector<5x32xf32> to vector<5x32xbf16>
    %71 = vector.extract_strided_slice %46 {offsets = [0, 0], sizes = [32, 64], strides = [1, 1]} : vector<64x64xbf16> to vector<32x64xbf16>
    %cst_37 = arith.constant dense<0.000000e+00> : vector<5x64xf32>
    %72 = tpu.matmul %70, %71, %cst_37 {dimension_numbers = #tpu.dot_dimension_numbers<[1], [0], [0], [1], [0, 0, 1, 1], [], []>} : vector<5x32xbf16>, vector<32x64xbf16>, vector<5x64xf32> -> vector<5x64xf32>
    %73 = vector.broadcast %48 : vector<1x64xf32> to vector<5x64xf32>
    %74 = arith.addf %73, %72 : vector<5x64xf32>
    %75 = vector.extract_strided_slice %42 {offsets = [0, 32], sizes = [5, 32], strides = [1, 1]} : vector<5x64xf32> to vector<5x32xf32>
    %76 = arith.truncf %75 : vector<5x32xf32> to vector<5x32xbf16>
    %77 = vector.extract_strided_slice %43 {offsets = [0, 32], sizes = [5, 32], strides = [1, 1]} : vector<5x64xf32> to vector<5x32xf32>
    %78 = arith.truncf %77 : vector<5x32xf32> to vector<5x32xbf16>
    %79 = vector.extract_strided_slice %44 {offsets = [0, 32], sizes = [5, 32], strides = [1, 1]} : vector<5x64xf32> to vector<5x32xf32>
    %80 = arith.truncf %79 : vector<5x32xf32> to vector<5x32xbf16>
    %cst_38 = arith.constant dense<0.000000e+00> : vector<5x5xf32>
    %81 = tpu.matmul %76, %78, %cst_38 {dimension_numbers = #tpu.dot_dimension_numbers<[1], [1], [0], [0], [0, 0, 1, 0], [], []>} : vector<5x32xbf16>, vector<5x32xbf16>, vector<5x5xf32> -> vector<5x5xf32>
    %cst_39 = arith.constant 0.176776692 : f32
    %82 = vector.broadcast %cst_39 : f32 to vector<5x5xf32>
    %83 = arith.mulf %81, %82 : vector<5x5xf32>
    %cst_40 = arith.constant dense<0xFF800000> : vector<5xf32>
    %84 = vector.multi_reduction <maximumf>, %83, %cst_40 [1] : vector<5x5xf32> to vector<5xf32>
    %85 = vector.shape_cast %84 : vector<5xf32> to vector<5x1xf32>
    %86 = vector.broadcast %85 : vector<5x1xf32> to vector<5x5xf32>
    %87 = arith.subf %83, %86 : vector<5x5xf32>
    %88 = math.exp %87 : vector<5x5xf32>
    %cst_41 = arith.constant dense<0.000000e+00> : vector<5xf32>
    %89 = vector.multi_reduction <add>, %88, %cst_41 [1] : vector<5x5xf32> to vector<5xf32>
    %90 = vector.shape_cast %89 : vector<5xf32> to vector<5x1xf32>
    %91 = tpu.reciprocal %90 {approx = true} : vector<5x1xf32> -> vector<5x1xf32>
    %92 = vector.broadcast %91 : vector<5x1xf32> to vector<5x5xf32>
    %93 = arith.mulf %88, %92 : vector<5x5xf32>
    %94 = arith.truncf %93 : vector<5x5xf32> to vector<5x5xbf16>
    %cst_42 = arith.constant dense<0.000000e+00> : vector<5x32xf32>
    %95 = tpu.matmul %94, %80, %cst_42 {dimension_numbers = #tpu.dot_dimension_numbers<[1], [0], [0], [1], [0, 0, 1, 1], [], []>} : vector<5x5xbf16>, vector<5x32xbf16>, vector<5x32xf32> -> vector<5x32xf32>
    %96 = arith.truncf %95 : vector<5x32xf32> to vector<5x32xbf16>
    %97 = vector.extract_strided_slice %46 {offsets = [32, 0], sizes = [32, 64], strides = [1, 1]} : vector<64x64xbf16> to vector<32x64xbf16>
    %cst_43 = arith.constant dense<0.000000e+00> : vector<5x64xf32>
    %98 = tpu.matmul %96, %97, %cst_43 {dimension_numbers = #tpu.dot_dimension_numbers<[1], [0], [0], [1], [0, 0, 1, 1], [], []>} : vector<5x32xbf16>, vector<32x64xbf16>, vector<5x64xf32> -> vector<5x64xf32>
    %99 = arith.addf %74, %98 : vector<5x64xf32>
    %100 = arith.addf %9, %99 : vector<5x64xf32>
    %c0_44 = arith.constant 0 : index
    %c0_45 = arith.constant 0 : index
    %c0_46 = arith.constant 0 : index
    %101 = vector.load %arg12[%c0_44, %c0_45, %c0_46] : memref<2x1x64xf32, #tpu.memory_space<vmem>>, vector<1x1x64xf32>
    %102 = vector.shape_cast %101 : vector<1x1x64xf32> to vector<1x64xf32>
    %c0_47 = arith.constant 0 : index
    %c0_48 = arith.constant 0 : index
    %c0_49 = arith.constant 0 : index
    %103 = vector.load %arg13[%c0_47, %c0_48, %c0_49] : memref<2x1x64xf32, #tpu.memory_space<vmem>>, vector<1x1x64xf32>
    %104 = vector.shape_cast %103 : vector<1x1x64xf32> to vector<1x64xf32>
    %cst_50 = arith.constant dense<0.000000e+00> : vector<5xf32>
    %105 = vector.multi_reduction <add>, %100, %cst_50 [1] : vector<5x64xf32> to vector<5xf32>
    %106 = vector.shape_cast %105 : vector<5xf32> to vector<5x1xf32>
    %cst_51 = arith.constant 6.400000e+01 : f32
    %107 = vector.broadcast %cst_51 : f32 to vector<5x1xf32>
    %108 = arith.divf %106, %107 : vector<5x1xf32>
    %109 = vector.broadcast %108 : vector<5x1xf32> to vector<5x64xf32>
    %110 = arith.subf %100, %109 : vector<5x64xf32>
    %111 = arith.mulf %110, %110 : vector<5x64xf32>
    %cst_52 = arith.constant dense<0.000000e+00> : vector<5xf32>
    %112 = vector.multi_reduction <add>, %111, %cst_52 [1] : vector<5x64xf32> to vector<5xf32>
    %113 = vector.shape_cast %112 : vector<5xf32> to vector<5x1xf32>
    %cst_53 = arith.constant 6.400000e+01 : f32
    %114 = vector.broadcast %cst_53 : f32 to vector<5x1xf32>
    %115 = arith.divf %113, %114 : vector<5x1xf32>
    %cst_54 = arith.constant 9.99999997E-7 : f32
    %116 = vector.broadcast %cst_54 : f32 to vector<5x1xf32>
    %117 = arith.addf %115, %116 : vector<5x1xf32>
    %118 = math.rsqrt %117 : vector<5x1xf32>
    %119 = vector.broadcast %118 : vector<5x1xf32> to vector<5x64xf32>
    %120 = arith.mulf %110, %119 : vector<5x64xf32>
    %121 = vector.broadcast %102 : vector<1x64xf32> to vector<5x64xf32>
    %122 = arith.mulf %120, %121 : vector<5x64xf32>
    %123 = vector.broadcast %104 : vector<1x64xf32> to vector<5x64xf32>
    %124 = arith.addf %122, %123 : vector<5x64xf32>
    %c0_55 = arith.constant 0 : index
    %c0_56 = arith.constant 0 : index
    %c0_57 = arith.constant 0 : index
    %125 = vector.load %arg14[%c0_55, %c0_56, %c0_57] : memref<2x64x256xbf16, #tpu.memory_space<vmem>>, vector<1x64x256xbf16>
    %126 = vector.shape_cast %125 : vector<1x64x256xbf16> to vector<64x256xbf16>
    %c0_58 = arith.constant 0 : index
    %c0_59 = arith.constant 0 : index
    %c0_60 = arith.constant 0 : index
    %127 = vector.load %arg15[%c0_58, %c0_59, %c0_60] : memref<2x1x256xf32, #tpu.memory_space<vmem>>, vector<1x1x256xf32>
    %128 = vector.shape_cast %127 : vector<1x1x256xf32> to vector<1x256xf32>
    %129 = arith.truncf %124 : vector<5x64xf32> to vector<5x64xbf16>
    %cst_61 = arith.constant dense<0.000000e+00> : vector<5x256xf32>
    %130 = tpu.matmul %129, %126, %cst_61 {dimension_numbers = #tpu.dot_dimension_numbers<[1], [0], [0], [1], [0, 0, 1, 1], [], []>} : vector<5x64xbf16>, vector<64x256xbf16>, vector<5x256xf32> -> vector<5x256xf32>
    %131 = vector.broadcast %128 : vector<1x256xf32> to vector<5x256xf32>
    %132 = arith.addf %130, %131 : vector<5x256xf32>
    %cst_62 = arith.constant 5.000000e-01 : f32
    %133 = vector.broadcast %cst_62 : f32 to vector<5x256xf32>
    %134 = arith.mulf %133, %132 : vector<5x256xf32>
    %cst_63 = arith.constant 0.707106769 : f32
    %135 = vector.broadcast %cst_63 : f32 to vector<5x256xf32>
    %136 = arith.mulf %132, %135 : vector<5x256xf32>
    %137 = math.erf %136 : vector<5x256xf32>
    %cst_64 = arith.constant 1.000000e+00 : f32
    %138 = vector.broadcast %cst_64 : f32 to vector<5x256xf32>
    %139 = arith.addf %138, %137 : vector<5x256xf32>
    %140 = arith.mulf %134, %139 : vector<5x256xf32>
    %c0_65 = arith.constant 0 : index
    %c0_66 = arith.constant 0 : index
    %c0_67 = arith.constant 0 : index
    %141 = vector.load %arg16[%c0_65, %c0_66, %c0_67] : memref<2x256x64xbf16, #tpu.memory_space<vmem>>, vector<1x256x64xbf16>
    %142 = vector.shape_cast %141 : vector<1x256x64xbf16> to vector<256x64xbf16>
    %c0_68 = arith.constant 0 : index
    %c0_69 = arith.constant 0 : index
    %c0_70 = arith.constant 0 : index
    %143 = vector.load %arg17[%c0_68, %c0_69, %c0_70] : memref<2x1x64xf32, #tpu.memory_space<vmem>>, vector<1x1x64xf32>
    %144 = vector.shape_cast %143 : vector<1x1x64xf32> to vector<1x64xf32>
    %145 = arith.truncf %140 : vector<5x256xf32> to vector<5x256xbf16>
    %cst_71 = arith.constant dense<0.000000e+00> : vector<5x64xf32>
    %146 = tpu.matmul %145, %142, %cst_71 {dimension_numbers = #tpu.dot_dimension_numbers<[1], [0], [0], [1], [0, 0, 1, 1], [], []>} : vector<5x256xbf16>, vector<256x64xbf16>, vector<5x64xf32> -> vector<5x64xf32>
    %147 = vector.broadcast %144 : vector<1x64xf32> to vector<5x64xf32>
    %148 = arith.addf %146, %147 : vector<5x64xf32>
    %149 = arith.addf %100, %148 : vector<5x64xf32>
    %c1 = arith.constant 1 : index
    %c0_72 = arith.constant 0 : index
    %c0_73 = arith.constant 0 : index
    %150 = vector.load %arg10[%c1, %c0_72, %c0_73] : memref<2x1x64xf32, #tpu.memory_space<vmem>>, vector<1x1x64xf32>
    %151 = vector.shape_cast %150 : vector<1x1x64xf32> to vector<1x64xf32>
    %c1_74 = arith.constant 1 : index
    %c0_75 = arith.constant 0 : index
    %c0_76 = arith.constant 0 : index
    %152 = vector.load %arg11[%c1_74, %c0_75, %c0_76] : memref<2x1x64xf32, #tpu.memory_space<vmem>>, vector<1x1x64xf32>
    %153 = vector.shape_cast %152 : vector<1x1x64xf32> to vector<1x64xf32>
    %cst_77 = arith.constant dense<0.000000e+00> : vector<5xf32>
    %154 = vector.multi_reduction <add>, %149, %cst_77 [1] : vector<5x64xf32> to vector<5xf32>
    %155 = vector.shape_cast %154 : vector<5xf32> to vector<5x1xf32>
    %cst_78 = arith.constant 6.400000e+01 : f32
    %156 = vector.broadcast %cst_78 : f32 to vector<5x1xf32>
    %157 = arith.divf %155, %156 : vector<5x1xf32>
    %158 = vector.broadcast %157 : vector<5x1xf32> to vector<5x64xf32>
    %159 = arith.subf %149, %158 : vector<5x64xf32>
    %160 = arith.mulf %159, %159 : vector<5x64xf32>
    %cst_79 = arith.constant dense<0.000000e+00> : vector<5xf32>
    %161 = vector.multi_reduction <add>, %160, %cst_79 [1] : vector<5x64xf32> to vector<5xf32>
    %162 = vector.shape_cast %161 : vector<5xf32> to vector<5x1xf32>
    %cst_80 = arith.constant 6.400000e+01 : f32
    %163 = vector.broadcast %cst_80 : f32 to vector<5x1xf32>
    %164 = arith.divf %162, %163 : vector<5x1xf32>
    %cst_81 = arith.constant 9.99999997E-7 : f32
    %165 = vector.broadcast %cst_81 : f32 to vector<5x1xf32>
    %166 = arith.addf %164, %165 : vector<5x1xf32>
    %167 = math.rsqrt %166 : vector<5x1xf32>
    %168 = vector.broadcast %167 : vector<5x1xf32> to vector<5x64xf32>
    %169 = arith.mulf %159, %168 : vector<5x64xf32>
    %170 = vector.broadcast %151 : vector<1x64xf32> to vector<5x64xf32>
    %171 = arith.mulf %169, %170 : vector<5x64xf32>
    %172 = vector.broadcast %153 : vector<1x64xf32> to vector<5x64xf32>
    %173 = arith.addf %171, %172 : vector<5x64xf32>
    %c1_82 = arith.constant 1 : index
    %c0_83 = arith.constant 0 : index
    %c0_84 = arith.constant 0 : index
    %174 = vector.load %arg6[%c1_82, %c0_83, %c0_84] : memref<2x64x192xbf16, #tpu.memory_space<vmem>>, vector<1x64x192xbf16>
    %175 = vector.shape_cast %174 : vector<1x64x192xbf16> to vector<64x192xbf16>
    %c1_85 = arith.constant 1 : index
    %c0_86 = arith.constant 0 : index
    %c0_87 = arith.constant 0 : index
    %176 = vector.load %arg7[%c1_85, %c0_86, %c0_87] : memref<2x1x192xf32, #tpu.memory_space<vmem>>, vector<1x1x192xf32>
    %177 = vector.shape_cast %176 : vector<1x1x192xf32> to vector<1x192xf32>
    %178 = arith.truncf %173 : vector<5x64xf32> to vector<5x64xbf16>
    %cst_88 = arith.constant dense<0.000000e+00> : vector<5x192xf32>
    %179 = tpu.matmul %178, %175, %cst_88 {dimension_numbers = #tpu.dot_dimension_numbers<[1], [0], [0], [1], [0, 0, 1, 1], [], []>} : vector<5x64xbf16>, vector<64x192xbf16>, vector<5x192xf32> -> vector<5x192xf32>
    %180 = vector.broadcast %177 : vector<1x192xf32> to vector<5x192xf32>
    %181 = arith.addf %179, %180 : vector<5x192xf32>
    %182 = vector.extract_strided_slice %181 {offsets = [0, 0], sizes = [5, 64], strides = [1, 1]} : vector<5x192xf32> to vector<5x64xf32>
    %183 = vector.extract_strided_slice %181 {offsets = [0, 64], sizes = [5, 64], strides = [1, 1]} : vector<5x192xf32> to vector<5x64xf32>
    %184 = vector.extract_strided_slice %181 {offsets = [0, 128], sizes = [5, 64], strides = [1, 1]} : vector<5x192xf32> to vector<5x64xf32>
    %c1_89 = arith.constant 1 : index
    %c0_90 = arith.constant 0 : index
    %c0_91 = arith.constant 0 : index
    %185 = vector.load %arg8[%c1_89, %c0_90, %c0_91] : memref<2x64x64xbf16, #tpu.memory_space<vmem>>, vector<1x64x64xbf16>
    %186 = vector.shape_cast %185 : vector<1x64x64xbf16> to vector<64x64xbf16>
    %c1_92 = arith.constant 1 : index
    %c0_93 = arith.constant 0 : index
    %c0_94 = arith.constant 0 : index
    %187 = vector.load %arg9[%c1_92, %c0_93, %c0_94] : memref<2x1x64xf32, #tpu.memory_space<vmem>>, vector<1x1x64xf32>
    %188 = vector.shape_cast %187 : vector<1x1x64xf32> to vector<1x64xf32>
    %189 = vector.extract_strided_slice %182 {offsets = [0, 0], sizes = [5, 32], strides = [1, 1]} : vector<5x64xf32> to vector<5x32xf32>
    %190 = arith.truncf %189 : vector<5x32xf32> to vector<5x32xbf16>
    %191 = vector.extract_strided_slice %183 {offsets = [0, 0], sizes = [5, 32], strides = [1, 1]} : vector<5x64xf32> to vector<5x32xf32>
    %192 = arith.truncf %191 : vector<5x32xf32> to vector<5x32xbf16>
    %193 = vector.extract_strided_slice %184 {offsets = [0, 0], sizes = [5, 32], strides = [1, 1]} : vector<5x64xf32> to vector<5x32xf32>
    %194 = arith.truncf %193 : vector<5x32xf32> to vector<5x32xbf16>
    %cst_95 = arith.constant dense<0.000000e+00> : vector<5x5xf32>
    %195 = tpu.matmul %190, %192, %cst_95 {dimension_numbers = #tpu.dot_dimension_numbers<[1], [1], [0], [0], [0, 0, 1, 0], [], []>} : vector<5x32xbf16>, vector<5x32xbf16>, vector<5x5xf32> -> vector<5x5xf32>
    %cst_96 = arith.constant 0.176776692 : f32
    %196 = vector.broadcast %cst_96 : f32 to vector<5x5xf32>
    %197 = arith.mulf %195, %196 : vector<5x5xf32>
    %cst_97 = arith.constant dense<0xFF800000> : vector<5xf32>
    %198 = vector.multi_reduction <maximumf>, %197, %cst_97 [1] : vector<5x5xf32> to vector<5xf32>
    %199 = vector.shape_cast %198 : vector<5xf32> to vector<5x1xf32>
    %200 = vector.broadcast %199 : vector<5x1xf32> to vector<5x5xf32>
    %201 = arith.subf %197, %200 : vector<5x5xf32>
    %202 = math.exp %201 : vector<5x5xf32>
    %cst_98 = arith.constant dense<0.000000e+00> : vector<5xf32>
    %203 = vector.multi_reduction <add>, %202, %cst_98 [1] : vector<5x5xf32> to vector<5xf32>
    %204 = vector.shape_cast %203 : vector<5xf32> to vector<5x1xf32>
    %205 = tpu.reciprocal %204 {approx = true} : vector<5x1xf32> -> vector<5x1xf32>
    %206 = vector.broadcast %205 : vector<5x1xf32> to vector<5x5xf32>
    %207 = arith.mulf %202, %206 : vector<5x5xf32>
    %208 = arith.truncf %207 : vector<5x5xf32> to vector<5x5xbf16>
    %cst_99 = arith.constant dense<0.000000e+00> : vector<5x32xf32>
    %209 = tpu.matmul %208, %194, %cst_99 {dimension_numbers = #tpu.dot_dimension_numbers<[1], [0], [0], [1], [0, 0, 1, 1], [], []>} : vector<5x5xbf16>, vector<5x32xbf16>, vector<5x32xf32> -> vector<5x32xf32>
    %210 = arith.truncf %209 : vector<5x32xf32> to vector<5x32xbf16>
    %211 = vector.extract_strided_slice %186 {offsets = [0, 0], sizes = [32, 64], strides = [1, 1]} : vector<64x64xbf16> to vector<32x64xbf16>
    %cst_100 = arith.constant dense<0.000000e+00> : vector<5x64xf32>
    %212 = tpu.matmul %210, %211, %cst_100 {dimension_numbers = #tpu.dot_dimension_numbers<[1], [0], [0], [1], [0, 0, 1, 1], [], []>} : vector<5x32xbf16>, vector<32x64xbf16>, vector<5x64xf32> -> vector<5x64xf32>
    %213 = vector.broadcast %188 : vector<1x64xf32> to vector<5x64xf32>
    %214 = arith.addf %213, %212 : vector<5x64xf32>
    %215 = vector.extract_strided_slice %182 {offsets = [0, 32], sizes = [5, 32], strides = [1, 1]} : vector<5x64xf32> to vector<5x32xf32>
    %216 = arith.truncf %215 : vector<5x32xf32> to vector<5x32xbf16>
    %217 = vector.extract_strided_slice %183 {offsets = [0, 32], sizes = [5, 32], strides = [1, 1]} : vector<5x64xf32> to vector<5x32xf32>
    %218 = arith.truncf %217 : vector<5x32xf32> to vector<5x32xbf16>
    %219 = vector.extract_strided_slice %184 {offsets = [0, 32], sizes = [5, 32], strides = [1, 1]} : vector<5x64xf32> to vector<5x32xf32>
    %220 = arith.truncf %219 : vector<5x32xf32> to vector<5x32xbf16>
    %cst_101 = arith.constant dense<0.000000e+00> : vector<5x5xf32>
    %221 = tpu.matmul %216, %218, %cst_101 {dimension_numbers = #tpu.dot_dimension_numbers<[1], [1], [0], [0], [0, 0, 1, 0], [], []>} : vector<5x32xbf16>, vector<5x32xbf16>, vector<5x5xf32> -> vector<5x5xf32>
    %cst_102 = arith.constant 0.176776692 : f32
    %222 = vector.broadcast %cst_102 : f32 to vector<5x5xf32>
    %223 = arith.mulf %221, %222 : vector<5x5xf32>
    %cst_103 = arith.constant dense<0xFF800000> : vector<5xf32>
    %224 = vector.multi_reduction <maximumf>, %223, %cst_103 [1] : vector<5x5xf32> to vector<5xf32>
    %225 = vector.shape_cast %224 : vector<5xf32> to vector<5x1xf32>
    %226 = vector.broadcast %225 : vector<5x1xf32> to vector<5x5xf32>
    %227 = arith.subf %223, %226 : vector<5x5xf32>
    %228 = math.exp %227 : vector<5x5xf32>
    %cst_104 = arith.constant dense<0.000000e+00> : vector<5xf32>
    %229 = vector.multi_reduction <add>, %228, %cst_104 [1] : vector<5x5xf32> to vector<5xf32>
    %230 = vector.shape_cast %229 : vector<5xf32> to vector<5x1xf32>
    %231 = tpu.reciprocal %230 {approx = true} : vector<5x1xf32> -> vector<5x1xf32>
    %232 = vector.broadcast %231 : vector<5x1xf32> to vector<5x5xf32>
    %233 = arith.mulf %228, %232 : vector<5x5xf32>
    %234 = arith.truncf %233 : vector<5x5xf32> to vector<5x5xbf16>
    %cst_105 = arith.constant dense<0.000000e+00> : vector<5x32xf32>
    %235 = tpu.matmul %234, %220, %cst_105 {dimension_numbers = #tpu.dot_dimension_numbers<[1], [0], [0], [1], [0, 0, 1, 1], [], []>} : vector<5x5xbf16>, vector<5x32xbf16>, vector<5x32xf32> -> vector<5x32xf32>
    %236 = arith.truncf %235 : vector<5x32xf32> to vector<5x32xbf16>
    %237 = vector.extract_strided_slice %186 {offsets = [32, 0], sizes = [32, 64], strides = [1, 1]} : vector<64x64xbf16> to vector<32x64xbf16>
    %cst_106 = arith.constant dense<0.000000e+00> : vector<5x64xf32>
    %238 = tpu.matmul %236, %237, %cst_106 {dimension_numbers = #tpu.dot_dimension_numbers<[1], [0], [0], [1], [0, 0, 1, 1], [], []>} : vector<5x32xbf16>, vector<32x64xbf16>, vector<5x64xf32> -> vector<5x64xf32>
    %239 = arith.addf %214, %238 : vector<5x64xf32>
    %240 = arith.addf %149, %239 : vector<5x64xf32>
    %c1_107 = arith.constant 1 : index
    %c0_108 = arith.constant 0 : index
    %c0_109 = arith.constant 0 : index
    %241 = vector.load %arg12[%c1_107, %c0_108, %c0_109] : memref<2x1x64xf32, #tpu.memory_space<vmem>>, vector<1x1x64xf32>
    %242 = vector.shape_cast %241 : vector<1x1x64xf32> to vector<1x64xf32>
    %c1_110 = arith.constant 1 : index
    %c0_111 = arith.constant 0 : index
    %c0_112 = arith.constant 0 : index
    %243 = vector.load %arg13[%c1_110, %c0_111, %c0_112] : memref<2x1x64xf32, #tpu.memory_space<vmem>>, vector<1x1x64xf32>
    %244 = vector.shape_cast %243 : vector<1x1x64xf32> to vector<1x64xf32>
    %cst_113 = arith.constant dense<0.000000e+00> : vector<5xf32>
    %245 = vector.multi_reduction <add>, %240, %cst_113 [1] : vector<5x64xf32> to vector<5xf32>
    %246 = vector.shape_cast %245 : vector<5xf32> to vector<5x1xf32>
    %cst_114 = arith.constant 6.400000e+01 : f32
    %247 = vector.broadcast %cst_114 : f32 to vector<5x1xf32>
    %248 = arith.divf %246, %247 : vector<5x1xf32>
    %249 = vector.broadcast %248 : vector<5x1xf32> to vector<5x64xf32>
    %250 = arith.subf %240, %249 : vector<5x64xf32>
    %251 = arith.mulf %250, %250 : vector<5x64xf32>
    %cst_115 = arith.constant dense<0.000000e+00> : vector<5xf32>
    %252 = vector.multi_reduction <add>, %251, %cst_115 [1] : vector<5x64xf32> to vector<5xf32>
    %253 = vector.shape_cast %252 : vector<5xf32> to vector<5x1xf32>
    %cst_116 = arith.constant 6.400000e+01 : f32
    %254 = vector.broadcast %cst_116 : f32 to vector<5x1xf32>
    %255 = arith.divf %253, %254 : vector<5x1xf32>
    %cst_117 = arith.constant 9.99999997E-7 : f32
    %256 = vector.broadcast %cst_117 : f32 to vector<5x1xf32>
    %257 = arith.addf %255, %256 : vector<5x1xf32>
    %258 = math.rsqrt %257 : vector<5x1xf32>
    %259 = vector.broadcast %258 : vector<5x1xf32> to vector<5x64xf32>
    %260 = arith.mulf %250, %259 : vector<5x64xf32>
    %261 = vector.broadcast %242 : vector<1x64xf32> to vector<5x64xf32>
    %262 = arith.mulf %260, %261 : vector<5x64xf32>
    %263 = vector.broadcast %244 : vector<1x64xf32> to vector<5x64xf32>
    %264 = arith.addf %262, %263 : vector<5x64xf32>
    %c1_118 = arith.constant 1 : index
    %c0_119 = arith.constant 0 : index
    %c0_120 = arith.constant 0 : index
    %265 = vector.load %arg14[%c1_118, %c0_119, %c0_120] : memref<2x64x256xbf16, #tpu.memory_space<vmem>>, vector<1x64x256xbf16>
    %266 = vector.shape_cast %265 : vector<1x64x256xbf16> to vector<64x256xbf16>
    %c1_121 = arith.constant 1 : index
    %c0_122 = arith.constant 0 : index
    %c0_123 = arith.constant 0 : index
    %267 = vector.load %arg15[%c1_121, %c0_122, %c0_123] : memref<2x1x256xf32, #tpu.memory_space<vmem>>, vector<1x1x256xf32>
    %268 = vector.shape_cast %267 : vector<1x1x256xf32> to vector<1x256xf32>
    %269 = arith.truncf %264 : vector<5x64xf32> to vector<5x64xbf16>
    %cst_124 = arith.constant dense<0.000000e+00> : vector<5x256xf32>
    %270 = tpu.matmul %269, %266, %cst_124 {dimension_numbers = #tpu.dot_dimension_numbers<[1], [0], [0], [1], [0, 0, 1, 1], [], []>} : vector<5x64xbf16>, vector<64x256xbf16>, vector<5x256xf32> -> vector<5x256xf32>
    %271 = vector.broadcast %268 : vector<1x256xf32> to vector<5x256xf32>
    %272 = arith.addf %270, %271 : vector<5x256xf32>
    %cst_125 = arith.constant 5.000000e-01 : f32
    %273 = vector.broadcast %cst_125 : f32 to vector<5x256xf32>
    %274 = arith.mulf %273, %272 : vector<5x256xf32>
    %cst_126 = arith.constant 0.707106769 : f32
    %275 = vector.broadcast %cst_126 : f32 to vector<5x256xf32>
    %276 = arith.mulf %272, %275 : vector<5x256xf32>
    %277 = math.erf %276 : vector<5x256xf32>
    %cst_127 = arith.constant 1.000000e+00 : f32
    %278 = vector.broadcast %cst_127 : f32 to vector<5x256xf32>
    %279 = arith.addf %278, %277 : vector<5x256xf32>
    %280 = arith.mulf %274, %279 : vector<5x256xf32>
    %c1_128 = arith.constant 1 : index
    %c0_129 = arith.constant 0 : index
    %c0_130 = arith.constant 0 : index
    %281 = vector.load %arg16[%c1_128, %c0_129, %c0_130] : memref<2x256x64xbf16, #tpu.memory_space<vmem>>, vector<1x256x64xbf16>
    %282 = vector.shape_cast %281 : vector<1x256x64xbf16> to vector<256x64xbf16>
    %c1_131 = arith.constant 1 : index
    %c0_132 = arith.constant 0 : index
    %c0_133 = arith.constant 0 : index
    %283 = vector.load %arg17[%c1_131, %c0_132, %c0_133] : memref<2x1x64xf32, #tpu.memory_space<vmem>>, vector<1x1x64xf32>
    %284 = vector.shape_cast %283 : vector<1x1x64xf32> to vector<1x64xf32>
    %285 = arith.truncf %280 : vector<5x256xf32> to vector<5x256xbf16>
    %cst_134 = arith.constant dense<0.000000e+00> : vector<5x64xf32>
    %286 = tpu.matmul %285, %282, %cst_134 {dimension_numbers = #tpu.dot_dimension_numbers<[1], [0], [0], [1], [0, 0, 1, 1], [], []>} : vector<5x256xbf16>, vector<256x64xbf16>, vector<5x64xf32> -> vector<5x64xf32>
    %287 = vector.broadcast %284 : vector<1x64xf32> to vector<5x64xf32>
    %288 = arith.addf %286, %287 : vector<5x64xf32>
    %289 = arith.addf %240, %288 : vector<5x64xf32>
    %c0_135 = arith.constant 0 : index
    %c0_136 = arith.constant 0 : index
    %290 = vector.load %arg18[%c0_135, %c0_136] : memref<1x64xf32, #tpu.memory_space<vmem>>, vector<1x64xf32>
    %c0_137 = arith.constant 0 : index
    %c0_138 = arith.constant 0 : index
    %291 = vector.load %arg19[%c0_137, %c0_138] : memref<1x64xf32, #tpu.memory_space<vmem>>, vector<1x64xf32>
    %cst_139 = arith.constant dense<0.000000e+00> : vector<5xf32>
    %292 = vector.multi_reduction <add>, %289, %cst_139 [1] : vector<5x64xf32> to vector<5xf32>
    %293 = vector.shape_cast %292 : vector<5xf32> to vector<5x1xf32>
    %cst_140 = arith.constant 6.400000e+01 : f32
    %294 = vector.broadcast %cst_140 : f32 to vector<5x1xf32>
    %295 = arith.divf %293, %294 : vector<5x1xf32>
    %296 = vector.broadcast %295 : vector<5x1xf32> to vector<5x64xf32>
    %297 = arith.subf %289, %296 : vector<5x64xf32>
    %298 = arith.mulf %297, %297 : vector<5x64xf32>
    %cst_141 = arith.constant dense<0.000000e+00> : vector<5xf32>
    %299 = vector.multi_reduction <add>, %298, %cst_141 [1] : vector<5x64xf32> to vector<5xf32>
    %300 = vector.shape_cast %299 : vector<5xf32> to vector<5x1xf32>
    %cst_142 = arith.constant 6.400000e+01 : f32
    %301 = vector.broadcast %cst_142 : f32 to vector<5x1xf32>
    %302 = arith.divf %300, %301 : vector<5x1xf32>
    %cst_143 = arith.constant 9.99999997E-7 : f32
    %303 = vector.broadcast %cst_143 : f32 to vector<5x1xf32>
    %304 = arith.addf %302, %303 : vector<5x1xf32>
    %305 = math.rsqrt %304 : vector<5x1xf32>
    %306 = vector.broadcast %305 : vector<5x1xf32> to vector<5x64xf32>
    %307 = arith.mulf %297, %306 : vector<5x64xf32>
    %308 = vector.broadcast %290 : vector<1x64xf32> to vector<5x64xf32>
    %309 = arith.mulf %307, %308 : vector<5x64xf32>
    %310 = vector.broadcast %291 : vector<1x64xf32> to vector<5x64xf32>
    %311 = arith.addf %309, %310 : vector<5x64xf32>
    %312 = vector.extract_strided_slice %311 {offsets = [0, 0], sizes = [1, 64], strides = [1, 1]} : vector<5x64xf32> to vector<1x64xf32>
    %c0_144 = arith.constant 0 : index
    %c0_145 = arith.constant 0 : index
    %313 = vector.load %arg20[%c0_144, %c0_145] : memref<64x32xbf16, #tpu.memory_space<vmem>>, vector<64x32xbf16>
    %c0_146 = arith.constant 0 : index
    %c0_147 = arith.constant 0 : index
    %314 = vector.load %arg21[%c0_146, %c0_147] : memref<1x32xf32, #tpu.memory_space<vmem>>, vector<1x32xf32>
    %315 = arith.truncf %312 : vector<1x64xf32> to vector<1x64xbf16>
    %cst_148 = arith.constant dense<0.000000e+00> : vector<1x32xf32>
    %316 = tpu.matmul %315, %313, %cst_148 {dimension_numbers = #tpu.dot_dimension_numbers<[1], [0], [0], [1], [0, 0, 1, 1], [], []>} : vector<1x64xbf16>, vector<64x32xbf16>, vector<1x32xf32> -> vector<1x32xf32>
    %317 = arith.addf %316, %314 : vector<1x32xf32>
    %c0_149 = arith.constant 0 : index
    %c0_150 = arith.constant 0 : index
    %c0_151 = arith.constant 0 : index
    %318 = vector.load %arg2[%c0_149, %c0_150, %c0_151] : memref<1x1x8xf32, #tpu.memory_space<vmem>>, vector<1x1x8xf32>
    %319 = vector.shape_cast %318 : vector<1x1x8xf32> to vector<1x8xf32>
    %c0_152 = arith.constant 0 : index
    %c0_153 = arith.constant 0 : index
    %320 = vector.load %arg22[%c0_152, %c0_153] : memref<40x32xbf16, #tpu.memory_space<vmem>>, vector<40x32xbf16>
    %321 = arith.truncf %317 : vector<1x32xf32> to vector<1x32xbf16>
    %322 = vector.extract_strided_slice %320 {offsets = [0, 0], sizes = [32, 32], strides = [1, 1]} : vector<40x32xbf16> to vector<32x32xbf16>
    %cst_154 = arith.constant dense<0.000000e+00> : vector<1x32xf32>
    %323 = tpu.matmul %321, %322, %cst_154 {dimension_numbers = #tpu.dot_dimension_numbers<[1], [0], [0], [1], [0, 0, 1, 1], [], []>} : vector<1x32xbf16>, vector<32x32xbf16>, vector<1x32xf32> -> vector<1x32xf32>
    %324 = arith.truncf %319 : vector<1x8xf32> to vector<1x8xbf16>
    %325 = vector.extract_strided_slice %320 {offsets = [32, 0], sizes = [8, 32], strides = [1, 1]} : vector<40x32xbf16> to vector<8x32xbf16>
    %cst_155 = arith.constant dense<0.000000e+00> : vector<1x32xf32>
    %326 = tpu.matmul %324, %325, %cst_155 {dimension_numbers = #tpu.dot_dimension_numbers<[1], [0], [0], [1], [0, 0, 1, 1], [], []>} : vector<1x8xbf16>, vector<8x32xbf16>, vector<1x32xf32> -> vector<1x32xf32>
    %327 = arith.addf %323, %326 : vector<1x32xf32>
    %c0_156 = arith.constant 0 : index
    %c0_157 = arith.constant 0 : index
    %328 = vector.load %arg23[%c0_156, %c0_157] : memref<1x32xf32, #tpu.memory_space<vmem>>, vector<1x32xf32>
    %329 = arith.addf %327, %328 : vector<1x32xf32>
    %cst_158 = arith.constant 0.000000e+00 : f32
    %330 = vector.broadcast %cst_158 : f32 to vector<1x32xf32>
    %331 = arith.maximumf %329, %330 : vector<1x32xf32>
    %c0_159 = arith.constant 0 : index
    %c0_160 = arith.constant 0 : index
    %332 = vector.load %arg24[%c0_159, %c0_160] : memref<32x1xbf16, #tpu.memory_space<vmem>>, vector<32x1xbf16>
    %c0_161 = arith.constant 0 : index
    %c0_162 = arith.constant 0 : index
    %333 = vector.load %arg25[%c0_161, %c0_162] : memref<1x1xf32, #tpu.memory_space<vmem>>, vector<1x1xf32>
    %334 = arith.truncf %331 : vector<1x32xf32> to vector<1x32xbf16>
    %cst_163 = arith.constant dense<0.000000e+00> : vector<1x1xf32>
    %335 = tpu.matmul %334, %332, %cst_163 {dimension_numbers = #tpu.dot_dimension_numbers<[1], [0], [0], [1], [0, 0, 1, 1], [], []>} : vector<1x32xbf16>, vector<32x1xbf16>, vector<1x1xf32> -> vector<1x1xf32>
    %336 = arith.addf %335, %333 : vector<1x1xf32>
    %c0_164 = arith.constant 0 : index
    %c0_165 = arith.constant 0 : index
    %c0_166 = arith.constant 0 : index
    %337 = vector.load %arg26[%c0_164, %c0_165, %c0_166] : memref<1x1x1xf32, #tpu.memory_space<vmem>>, vector<1x1x1xf32>
    %338 = vector.shape_cast %337 : vector<1x1x1xf32> to vector<1x1xf32>
    %339 = vector.shape_cast %336 : vector<1x1xf32> to vector<1x1x1xf32>
    tpu.vector_store %arg26[%c0_164, %c0_165, %c0_166], %339 {strides = array<i32>} : memref<1x1x1xf32, #tpu.memory_space<vmem>>, vector<1x1x1xf32>,
    return
  }
  func.func @transform_0(%arg0: i32) -> (i32, i32, i32) {
    %c0_i32 = arith.constant 0 : i32
    %c0_i32_0 = arith.constant 0 : i32
    %c0_i32_1 = arith.constant 0 : i32
    return %arg0, %c0_i32, %c0_i32_0 : i32, i32, i32
  }
  func.func @transform_1(%arg0: i32) -> (i32, i32, i32) {
    %c0_i32 = arith.constant 0 : i32
    %c0_i32_0 = arith.constant 0 : i32
    %c0_i32_1 = arith.constant 0 : i32
    return %arg0, %c0_i32, %c0_i32_0 : i32, i32, i32
  }
  func.func @transform_2(%arg0: i32) -> (i32, i32) {
    %c0_i32 = arith.constant 0 : i32
    %c0_i32_0 = arith.constant 0 : i32
    %c0_i32_1 = arith.constant 0 : i32
    return %c0_i32, %c0_i32_0 : i32, i32
  }
  func.func @transform_3(%arg0: i32) -> (i32, i32) {
    %c0_i32 = arith.constant 0 : i32
    %c0_i32_0 = arith.constant 0 : i32
    %c0_i32_1 = arith.constant 0 : i32
    return %c0_i32, %c0_i32_0 : i32, i32
  }
  func.func @transform_4(%arg0: i32) -> (i32, i32) {
    %c0_i32 = arith.constant 0 : i32
    %c0_i32_0 = arith.constant 0 : i32
    %c0_i32_1 = arith.constant 0 : i32
    return %c0_i32, %c0_i32_0 : i32, i32
  }
  func.func @transform_5(%arg0: i32) -> (i32, i32, i32) {
    %c0_i32 = arith.constant 0 : i32
    %c0_i32_0 = arith.constant 0 : i32
    %c0_i32_1 = arith.constant 0 : i32
    %c0_i32_2 = arith.constant 0 : i32
    return %c0_i32, %c0_i32_0, %c0_i32_1 : i32, i32, i32
  }
  func.func @transform_6(%arg0: i32) -> (i32, i32, i32) {
    %c0_i32 = arith.constant 0 : i32
    %c0_i32_0 = arith.constant 0 : i32
    %c0_i32_1 = arith.constant 0 : i32
    %c0_i32_2 = arith.constant 0 : i32
    return %c0_i32, %c0_i32_0, %c0_i32_1 : i32, i32, i32
  }
  func.func @transform_7(%arg0: i32) -> (i32, i32, i32) {
    %c0_i32 = arith.constant 0 : i32
    %c0_i32_0 = arith.constant 0 : i32
    %c0_i32_1 = arith.constant 0 : i32
    %c0_i32_2 = arith.constant 0 : i32
    return %c0_i32, %c0_i32_0, %c0_i32_1 : i32, i32, i32
  }
  func.func @transform_8(%arg0: i32) -> (i32, i32, i32) {
    %c0_i32 = arith.constant 0 : i32
    %c0_i32_0 = arith.constant 0 : i32
    %c0_i32_1 = arith.constant 0 : i32
    %c0_i32_2 = arith.constant 0 : i32
    return %c0_i32, %c0_i32_0, %c0_i32_1 : i32, i32, i32
  }
  func.func @transform_9(%arg0: i32) -> (i32, i32, i32) {
    %c0_i32 = arith.constant 0 : i32
    %c0_i32_0 = arith.constant 0 : i32
    %c0_i32_1 = arith.constant 0 : i32
    %c0_i32_2 = arith.constant 0 : i32
    return %c0_i32, %c0_i32_0, %c0_i32_1 : i32, i32, i32
  }
  func.func @transform_10(%arg0: i32) -> (i32, i32, i32) {
    %c0_i32 = arith.constant 0 : i32
    %c0_i32_0 = arith.constant 0 : i32
    %c0_i32_1 = arith.constant 0 : i32
    %c0_i32_2 = arith.constant 0 : i32
    return %c0_i32, %c0_i32_0, %c0_i32_1 : i32, i32, i32
  }
  func.func @transform_11(%arg0: i32) -> (i32, i32, i32) {
    %c0_i32 = arith.constant 0 : i32
    %c0_i32_0 = arith.constant 0 : i32
    %c0_i32_1 = arith.constant 0 : i32
    %c0_i32_2 = arith.constant 0 : i32
    return %c0_i32, %c0_i32_0, %c0_i32_1 : i32, i32, i32
  }
  func.func @transform_12(%arg0: i32) -> (i32, i32, i32) {
    %c0_i32 = arith.constant 0 : i32
    %c0_i32_0 = arith.constant 0 : i32
    %c0_i32_1 = arith.constant 0 : i32
    %c0_i32_2 = arith.constant 0 : i32
    return %c0_i32, %c0_i32_0, %c0_i32_1 : i32, i32, i32
  }
  func.func @transform_13(%arg0: i32) -> (i32, i32, i32) {
    %c0_i32 = arith.constant 0 : i32
    %c0_i32_0 = arith.constant 0 : i32
    %c0_i32_1 = arith.constant 0 : i32
    %c0_i32_2 = arith.constant 0 : i32
    return %c0_i32, %c0_i32_0, %c0_i32_1 : i32, i32, i32
  }
  func.func @transform_14(%arg0: i32) -> (i32, i32, i32) {
    %c0_i32 = arith.constant 0 : i32
    %c0_i32_0 = arith.constant 0 : i32
    %c0_i32_1 = arith.constant 0 : i32
    %c0_i32_2 = arith.constant 0 : i32
    return %c0_i32, %c0_i32_0, %c0_i32_1 : i32, i32, i32
  }
  func.func @transform_15(%arg0: i32) -> (i32, i32, i32) {
    %c0_i32 = arith.constant 0 : i32
    %c0_i32_0 = arith.constant 0 : i32
    %c0_i32_1 = arith.constant 0 : i32
    %c0_i32_2 = arith.constant 0 : i32
    return %c0_i32, %c0_i32_0, %c0_i32_1 : i32, i32, i32
  }
  func.func @transform_16(%arg0: i32) -> (i32, i32, i32) {
    %c0_i32 = arith.constant 0 : i32
    %c0_i32_0 = arith.constant 0 : i32
    %c0_i32_1 = arith.constant 0 : i32
    %c0_i32_2 = arith.constant 0 : i32
    return %c0_i32, %c0_i32_0, %c0_i32_1 : i32, i32, i32
  }
  func.func @transform_17(%arg0: i32) -> (i32, i32) {
    %c0_i32 = arith.constant 0 : i32
    %c0_i32_0 = arith.constant 0 : i32
    %c0_i32_1 = arith.constant 0 : i32
    return %c0_i32, %c0_i32_0 : i32, i32
  }
  func.func @transform_18(%arg0: i32) -> (i32, i32) {
    %c0_i32 = arith.constant 0 : i32
    %c0_i32_0 = arith.constant 0 : i32
    %c0_i32_1 = arith.constant 0 : i32
    return %c0_i32, %c0_i32_0 : i32, i32
  }
  func.func @transform_19(%arg0: i32) -> (i32, i32) {
    %c0_i32 = arith.constant 0 : i32
    %c0_i32_0 = arith.constant 0 : i32
    %c0_i32_1 = arith.constant 0 : i32
    return %c0_i32, %c0_i32_0 : i32, i32
  }
  func.func @transform_20(%arg0: i32) -> (i32, i32) {
    %c0_i32 = arith.constant 0 : i32
    %c0_i32_0 = arith.constant 0 : i32
    %c0_i32_1 = arith.constant 0 : i32
    return %c0_i32, %c0_i32_0 : i32, i32
  }
  func.func @transform_21(%arg0: i32) -> (i32, i32) {
    %c0_i32 = arith.constant 0 : i32
    %c0_i32_0 = arith.constant 0 : i32
    %c0_i32_1 = arith.constant 0 : i32
    return %c0_i32, %c0_i32_0 : i32, i32
  }
  func.func @transform_22(%arg0: i32) -> (i32, i32) {
    %c0_i32 = arith.constant 0 : i32
    %c0_i32_0 = arith.constant 0 : i32
    %c0_i32_1 = arith.constant 0 : i32
    return %c0_i32, %c0_i32_0 : i32, i32
  }
  func.func @transform_23(%arg0: i32) -> (i32, i32) {
    %c0_i32 = arith.constant 0 : i32
    %c0_i32_0 = arith.constant 0 : i32
    %c0_i32_1 = arith.constant 0 : i32
    return %c0_i32, %c0_i32_0 : i32, i32
  }
  func.func @transform_24(%arg0: i32) -> (i32, i32) {
    %c0_i32 = arith.constant 0 : i32
    %c0_i32_0 = arith.constant 0 : i32
    %c0_i32_1 = arith.constant 0 : i32
    return %c0_i32, %c0_i32_0 : i32, i32
  }
  func.func @transform_25(%arg0: i32) -> (i32, i32, i32) {
    %c0_i32 = arith.constant 0 : i32
    %c0_i32_0 = arith.constant 0 : i32
    %c0_i32_1 = arith.constant 0 : i32
    return %arg0, %c0_i32, %c0_i32_0 : i32, i32, i32
  }
}

</mosaic_0001>

<llo_original>
// kernel: model_forward.1
$region0: #{model_forward.1}
  #allocation0 [shape = 'u32[]', space=smem, size = 0x4, offset = 0x4, fixed_abs, tag = 'smem constant byte address 0x4 - core index']
  #allocation1 [shape = 'u32[144,128]{1,0:T(1,128)}', space=vmem, size = 0x12000, scoped, tag = 'internal scratch']
  #allocation2 [shape = 'f32[1,1]{1,0:T(1,128)S(1)}', space=vmem, size = 0x200, scoped, tag = 'scoped memory for model_forward.1']
  %s0 = inlined_call_operand.vmem [shape: f32[2,5,1024], index: 0, kind: input, shape index: {}]
  %s1 = inlined_call_operand.vmem [shape: f32[2,1,8], index: 1, kind: input, shape index: {}]
  %s2 = inlined_call_operand.vmem [shape: bf16[1024,64], index: 2, kind: input, shape index: {}]
  %s3 = inlined_call_operand.vmem [shape: f32[1,64], index: 3, kind: input, shape index: {}]
  %s4 = inlined_call_operand.vmem [shape: f32[5,64], index: 4, kind: input, shape index: {}]
  %s5 = inlined_call_operand.vmem [shape: bf16[2,64,192], index: 5, kind: input, shape index: {}]
  %s6 = inlined_call_operand.vmem [shape: f32[2,1,192], index: 6, kind: input, shape index: {}]
  %s7 = inlined_call_operand.vmem [shape: bf16[2,64,64], index: 7, kind: input, shape index: {}]
  %s8 = inlined_call_operand.vmem [shape: f32[2,1,64], index: 8, kind: input, shape index: {}]
  %s9 = inlined_call_operand.vmem [shape: f32[2,1,64], index: 9, kind: input, shape index: {}]
  %s10 = inlined_call_operand.vmem [shape: f32[2,1,64], index: 10, kind: input, shape index: {}]
  %s11 = inlined_call_operand.vmem [shape: f32[2,1,64], index: 11, kind: input, shape index: {}]
  %s12 = inlined_call_operand.vmem [shape: f32[2,1,64], index: 12, kind: input, shape index: {}]
  %s13 = inlined_call_operand.vmem [shape: bf16[2,64,256], index: 13, kind: input, shape index: {}]
  %s14 = inlined_call_operand.vmem [shape: f32[2,1,256], index: 14, kind: input, shape index: {}]
  %s15 = inlined_call_operand.vmem [shape: bf16[2,256,64], index: 15, kind: input, shape index: {}]
  %s16 = inlined_call_operand.vmem [shape: f32[2,1,64], index: 16, kind: input, shape index: {}]
  %s17 = inlined_call_operand.vmem [shape: f32[1,64], index: 17, kind: input, shape index: {}]
  %s18 = inlined_call_operand.vmem [shape: f32[1,64], index: 18, kind: input, shape index: {}]
  %s19 = inlined_call_operand.vmem [shape: bf16[64,32], index: 19, kind: input, shape index: {}]
  %s20 = inlined_call_operand.vmem [shape: f32[1,32], index: 20, kind: input, shape index: {}]
  %s21 = inlined_call_operand.vmem [shape: bf16[40,32], index: 21, kind: input, shape index: {}]
  %s22 = inlined_call_operand.vmem [shape: f32[1,32], index: 22, kind: input, shape index: {}]
  %s23 = inlined_call_operand.vmem [shape: bf16[32,1], index: 23, kind: input, shape index: {}]
  %s24 = inlined_call_operand.<no memory space> [shape: f32[1,1], index: 24, kind: input, shape index: {}]
  %s25 = inlined_call_operand.vmem [shape: f32[2,1,1], index: 25, kind: output, shape index: {}]
  %s26 = sld [smem:[#allocation0]]
  $region133: #{model_forward.1} parent=0
    _
  %s28 = ssub.s32 1, %s26
  %s29 = scalar_select 0, %s28, %s26
  %v30 = vstv %s24
  %31 = vst [vmem:[#allocation2] sm:$0x1] %v30
  loop: start=0, step=1, limit=4
  $region2: #{model_forward.1} parent=0 // loop_pre_header
    _
  $region3: #{model_forward.1} parent=0 // loop_header
    %s33 = sphi 0, %s37
    %p34 = scmp.ge.s32.totalorder %s33, 4
    %s43 = sphi 0, %s45
    %s46 = sphi 0, %s43
    %s47 = sphi 0, %s46
    %s63 = sphi 0, %s47
    %s69 = sphi 0, %s71
    %s72 = sphi 0, %s69
    %s73 = sphi 0, %s72
    %s89 = sphi 0, %s73
    %s93 = sphi 0, %s93
    %s95 = sphi 0, %s93
    %s96 = sphi 0, %s95
    %s110 = sphi 0, %s96
    %s114 = sphi 0, %s114
    %s116 = sphi 0, %s114
    %s117 = sphi 0, %s116
    %s131 = sphi 0, %s117
    %s135 = sphi 0, %s135
    %s137 = sphi 0, %s135
    %s138 = sphi 0, %s137
    %s152 = sphi 0, %s138
    %s156 = sphi 0, %s156
    %s158 = sphi 0, %s156
    %s159 = sphi 0, %s158
    %s173 = sphi 0, %s159
    %s177 = sphi 0, %s177
    %s179 = sphi 0, %s177
    %s180 = sphi 0, %s179
    %s194 = sphi 0, %s180
    %s198 = sphi 0, %s198
    %s200 = sphi 0, %s198
    %s201 = sphi 0, %s200
    %s215 = sphi 0, %s201
    %s219 = sphi 0, %s219
    %s221 = sphi 0, %s219
    %s222 = sphi 0, %s221
    %s236 = sphi 0, %s222
    %s240 = sphi 0, %s240
    %s242 = sphi 0, %s240
    %s243 = sphi 0, %s242
    %s257 = sphi 0, %s243
    %s261 = sphi 0, %s261
    %s263 = sphi 0, %s261
    %s264 = sphi 0, %s263
    %s278 = sphi 0, %s264
    %s282 = sphi 0, %s282
    %s284 = sphi 0, %s282
    %s285 = sphi 0, %s284
    %s299 = sphi 0, %s285
    %s303 = sphi 0, %s303
    %s305 = sphi 0, %s303
    %s306 = sphi 0, %s305
    %s320 = sphi 0, %s306
    %s324 = sphi 0, %s324
    %s326 = sphi 0, %s324
    %s327 = sphi 0, %s326
    %s341 = sphi 0, %s327
    %s345 = sphi 0, %s345
    %s347 = sphi 0, %s345
    %s348 = sphi 0, %s347
    %s362 = sphi 0, %s348
    %s366 = sphi 0, %s366
    %s368 = sphi 0, %s366
    %s369 = sphi 0, %s368
    %s383 = sphi 0, %s369
    %s387 = sphi 0, %s387
    %s389 = sphi 0, %s387
    %s390 = sphi 0, %s389
    %s404 = sphi 0, %s390
    %s408 = sphi 0, %s408
    %s410 = sphi 0, %s408
    %s411 = sphi 0, %s410
    %s425 = sphi 0, %s411
    %s429 = sphi 0, %s429
    %s431 = sphi 0, %s429
    %s432 = sphi 0, %s431
    %s446 = sphi 0, %s432
    %s450 = sphi 0, %s450
    %s452 = sphi 0, %s450
    %s453 = sphi 0, %s452
    %s467 = sphi 0, %s453
    %s471 = sphi 0, %s471
    %s473 = sphi 0, %s471
    %s474 = sphi 0, %s473
    %s488 = sphi 0, %s474
    %s492 = sphi 0, %s492
    %s494 = sphi 0, %s492
    %s495 = sphi 0, %s494
    %s509 = sphi 0, %s495
    %s513 = sphi 0, %s513
    %s515 = sphi 0, %s513
    %s516 = sphi 0, %s515
    %s530 = sphi 0, %s516
    %s534 = sphi 0, %s534
    %s536 = sphi 0, %s534
    %s537 = sphi 0, %s536
    %s551 = sphi 0, %s537
    %s555 = sphi 0, %s555
    %s557 = sphi 0, %s555
    %s558 = sphi 0, %s557
    %s572 = sphi 0, %s558
    %s578 = sphi 0, %s580
    %s581 = sphi 0, %s578
    %s582 = sphi 0, %s581
    %s598 = sphi 0, %s582
  $region4: #{model_forward.1} parent=0 // loop_header_branch
    %36 = sbr.rel (%p34) target = $region8
  $region5: #{model_forward.1} parent=0 // loop_body
    %s38 = ssub.s32 %s33, 1
    %s39 = ssub.s32 %s33, 2
    %s40 = sadd.s32 %s33, 1
    %s41 = ssub.s32 %s33, %s40
    %p42 = scmp.eq.s32.totalorder %s41, 0
    %s44 = sadd.s32 %s43, 1
    %s45 = scalar_select %p42, %s43, %s44
    %p48 = pneg %p42
    %p49 = scmp.eq.s32.totalorder %s33, 1
    %p50 = por %p48, %p49
    %p51 = scmp.ne.s32.totalorder %s43, %s46
    %p52 = scmp.eq.s32.totalorder %s33, 0
    %p53 = por %p51, %p52
    %p54 = scmp.ne.s32.totalorder %s43, %s46
    %p55 = scmp.eq.s32.totalorder %s38, 1
    %p56 = por %p54, %p55
    %p57 = scmp.ne.s32.totalorder %s46, %s47
    %p58 = scmp.eq.s32.totalorder %s38, 0
    %p59 = por %p57, %p58
    %p60 = scmp.ne.s32.totalorder %s46, %s47
    %p61 = scmp.eq.s32.totalorder %s39, 1
    %p62 = por %p60, %p61
    %p64 = scmp.ne.s32.totalorder %s47, %s63
    %p65 = scmp.eq.s32.totalorder %s39, 0
    %p66 = por %p64, %p65
    %s67 = ssub.s32 %s33, %s40
    %p68 = scmp.eq.s32.totalorder %s67, 0
    %s70 = sadd.s32 %s69, 1
    %s71 = scalar_select %p68, %s69, %s70
    %p74 = pneg %p68
    %p75 = scmp.eq.s32.totalorder %s33, 1
    %p76 = por %p74, %p75
    %p77 = scmp.ne.s32.totalorder %s69, %s72
    %p78 = scmp.eq.s32.totalorder %s33, 0
    %p79 = por %p77, %p78
    %p80 = scmp.ne.s32.totalorder %s69, %s72
    %p81 = scmp.eq.s32.totalorder %s38, 1
    %p82 = por %p80, %p81
    %p83 = scmp.ne.s32.totalorder %s72, %s73
    %p84 = scmp.eq.s32.totalorder %s38, 0
    %p85 = por %p83, %p84
    %p86 = scmp.ne.s32.totalorder %s72, %s73
    %p87 = scmp.eq.s32.totalorder %s39, 1
    %p88 = por %p86, %p87
    %p90 = scmp.ne.s32.totalorder %s73, %s89
    %p91 = scmp.eq.s32.totalorder %s39, 0
    %p92 = por %p90, %p91
    %s94 = sadd.s32 %s93, 1
    %p97 = scmp.eq.s32.totalorder %s33, 1
    %p98 = scmp.ne.s32.totalorder %s93, %s95
    %p99 = scmp.eq.s32.totalorder %s33, 0
    %p100 = por %p98, %p99
    %p101 = scmp.ne.s32.totalorder %s93, %s95
    %p102 = scmp.eq.s32.totalorder %s38, 1
    %p103 = por %p101, %p102
    %p104 = scmp.ne.s32.totalorder %s95, %s96
    %p105 = scmp.eq.s32.totalorder %s38, 0
    %p106 = por %p104, %p105
    %p107 = scmp.ne.s32.totalorder %s95, %s96
    %p108 = scmp.eq.s32.totalorder %s39, 1
    %p109 = por %p107, %p108
    %p111 = scmp.ne.s32.totalorder %s96, %s110
    %p112 = scmp.eq.s32.totalorder %s39, 0
    %p113 = por %p111, %p112
    %s115 = sadd.s32 %s114, 1
    %p118 = scmp.eq.s32.totalorder %s33, 1
    %p119 = scmp.ne.s32.totalorder %s114, %s116
    %p120 = scmp.eq.s32.totalorder %s33, 0
    %p121 = por %p119, %p120
    %p122 = scmp.ne.s32.totalorder %s114, %s116
    %p123 = scmp.eq.s32.totalorder %s38, 1
    %p124 = por %p122, %p123
    %p125 = scmp.ne.s32.totalorder %s116, %s117
    %p126 = scmp.eq.s32.totalorder %s38, 0
    %p127 = por %p125, %p126
    %p128 = scmp.ne.s32.totalorder %s116, %s117
    %p129 = scmp.eq.s32.totalorder %s39, 1
    %p130 = por %p128, %p129
    %p132 = scmp.ne.s32.totalorder %s117, %s131
    %p133 = scmp.eq.s32.totalorder %s39, 0
    %p134 = por %p132, %p133
    %s136 = sadd.s32 %s135, 1
    %p139 = scmp.eq.s32.totalorder %s33, 1
    %p140 = scmp.ne.s32.totalorder %s135, %s137
    %p141 = scmp.eq.s32.totalorder %s33, 0
    %p142 = por %p140, %p141
    %p143 = scmp.ne.s32.totalorder %s135, %s137
    %p144 = scmp.eq.s32.totalorder %s38, 1
    %p145 = por %p143, %p144
    %p146 = scmp.ne.s32.totalorder %s137, %s138
    %p147 = scmp.eq.s32.totalorder %s38, 0
    %p148 = por %p146, %p147
    %p149 = scmp.ne.s32.totalorder %s137, %s138
    %p150 = scmp.eq.s32.totalorder %s39, 1
    %p151 = por %p149, %p150
    %p153 = scmp.ne.s32.totalorder %s138, %s152
    %p154 = scmp.eq.s32.totalorder %s39, 0
    %p155 = por %p153, %p154
    %s157 = sadd.s32 %s156, 1
    %p160 = scmp.eq.s32.totalorder %s33, 1
    %p161 = scmp.ne.s32.totalorder %s156, %s158
    %p162 = scmp.eq.s32.totalorder %s33, 0
    %p163 = por %p161, %p162
    %p164 = scmp.ne.s32.totalorder %s156, %s158
    %p165 = scmp.eq.s32.totalorder %s38, 1
    %p166 = por %p164, %p165
    %p167 = scmp.ne.s32.totalorder %s158, %s159
    %p168 = scmp.eq.s32.totalorder %s38, 0
    %p169 = por %p167, %p168
    %p170 = scmp.ne.s32.totalorder %s158, %s159
    %p171 = scmp.eq.s32.totalorder %s39, 1
    %p172 = por %p170, %p171
    %p174 = scmp.ne.s32.totalorder %s159, %s173
    %p175 = scmp.eq.s32.totalorder %s39, 0
    %p176 = por %p174, %p175
    %s178 = sadd.s32 %s177, 1
    %p181 = scmp.eq.s32.totalorder %s33, 1
    %p182 = scmp.ne.s32.totalorder %s177, %s179
    %p183 = scmp.eq.s32.totalorder %s33, 0
    %p184 = por %p182, %p183
    %p185 = scmp.ne.s32.totalorder %s177, %s179
    %p186 = scmp.eq.s32.totalorder %s38, 1
    %p187 = por %p185, %p186
    %p188 = scmp.ne.s32.totalorder %s179, %s180
    %p189 = scmp.eq.s32.totalorder %s38, 0
    %p190 = por %p188, %p189
    %p191 = scmp.ne.s32.totalorder %s179, %s180
    %p192 = scmp.eq.s32.totalorder %s39, 1
    %p193 = por %p191, %p192
    %p195 = scmp.ne.s32.totalorder %s180, %s194
    %p196 = scmp.eq.s32.totalorder %s39, 0
    %p197 = por %p195, %p196
    %s199 = sadd.s32 %s198, 1
    %p202 = scmp.eq.s32.totalorder %s33, 1
    %p203 = scmp.ne.s32.totalorder %s198, %s200
    %p204 = scmp.eq.s32.totalorder %s33, 0
    %p205 = por %p203, %p204
    %p206 = scmp.ne.s32.totalorder %s198, %s200
    %p207 = scmp.eq.s32.totalorder %s38, 1
    %p208 = por %p206, %p207
    %p209 = scmp.ne.s32.totalorder %s200, %s201
    %p210 = scmp.eq.s32.totalorder %s38, 0
    %p211 = por %p209, %p210
    %p212 = scmp.ne.s32.totalorder %s200, %s201
    %p213 = scmp.eq.s32.totalorder %s39, 1
    %p214 = por %p212, %p213
    %p216 = scmp.ne.s32.totalorder %s201, %s215
    %p217 = scmp.eq.s32.totalorder %s39, 0
    %p218 = por %p216, %p217
    %s220 = sadd.s32 %s219, 1
    %p223 = scmp.eq.s32.totalorder %s33, 1
    %p224 = scmp.ne.s32.totalorder %s219, %s221
    %p225 = scmp.eq.s32.totalorder %s33, 0
    %p226 = por %p224, %p225
    %p227 = scmp.ne.s32.totalorder %s219, %s221
    %p228 = scmp.eq.s32.totalorder %s38, 1
    %p229 = por %p227, %p228
    %p230 = scmp.ne.s32.totalorder %s221, %s222
    %p231 = scmp.eq.s32.totalorder %s38, 0
    %p232 = por %p230, %p231
    %p233 = scmp.ne.s32.totalorder %s221, %s222
    %p234 = scmp.eq.s32.totalorder %s39, 1
    %p235 = por %p233, %p234
    %p237 = scmp.ne.s32.totalorder %s222, %s236
    %p238 = scmp.eq.s32.totalorder %s39, 0
    %p239 = por %p237, %p238
    %s241 = sadd.s32 %s240, 1
    %p244 = scmp.eq.s32.totalorder %s33, 1
    %p245 = scmp.ne.s32.totalorder %s240, %s242
    %p246 = scmp.eq.s32.totalorder %s33, 0
    %p247 = por %p245, %p246
    %p248 = scmp.ne.s32.totalorder %s240, %s242
    %p249 = scmp.eq.s32.totalorder %s38, 1
    %p250 = por %p248, %p249
    %p251 = scmp.ne.s32.totalorder %s242, %s243
    %p252 = scmp.eq.s32.totalorder %s38, 0
    %p253 = por %p251, %p252
    %p254 = scmp.ne.s32.totalorder %s242, %s243
    %p255 = scmp.eq.s32.totalorder %s39, 1
    %p256 = por %p254, %p255
    %p258 = scmp.ne.s32.totalorder %s243, %s257
    %p259 = scmp.eq.s32.totalorder %s39, 0
    %p260 = por %p258, %p259
    %s262 = sadd.s32 %s261, 1
    %p265 = scmp.eq.s32.totalorder %s33, 1
    %p266 = scmp.ne.s32.totalorder %s261, %s263
    %p267 = scmp.eq.s32.totalorder %s33, 0
    %p268 = por %p266, %p267
    %p269 = scmp.ne.s32.totalorder %s261, %s263
    %p270 = scmp.eq.s32.totalorder %s38, 1
    %p271 = por %p269, %p270
    %p272 = scmp.ne.s32.totalorder %s263, %s264
    %p273 = scmp.eq.s32.totalorder %s38, 0
    %p274 = por %p272, %p273
    %p275 = scmp.ne.s32.totalorder %s263, %s264
    %p276 = scmp.eq.s32.totalorder %s39, 1
    %p277 = por %p275, %p276
    %p279 = scmp.ne.s32.totalorder %s264, %s278
    %p280 = scmp.eq.s32.totalorder %s39, 0
    %p281 = por %p279, %p280
    %s283 = sadd.s32 %s282, 1
    %p286 = scmp.eq.s32.totalorder %s33, 1
    %p287 = scmp.ne.s32.totalorder %s282, %s284
    %p288 = scmp.eq.s32.totalorder %s33, 0
    %p289 = por %p287, %p288
    %p290 = scmp.ne.s32.totalorder %s282, %s284
    %p291 = scmp.eq.s32.totalorder %s38, 1
    %p292 = por %p290, %p291
    %p293 = scmp.ne.s32.totalorder %s284, %s285
    %p294 = scmp.eq.s32.totalorder %s38, 0
    %p295 = por %p293, %p294
    %p296 = scmp.ne.s32.totalorder %s284, %s285
    %p297 = scmp.eq.s32.totalorder %s39, 1
    %p298 = por %p296, %p297
    %p300 = scmp.ne.s32.totalorder %s285, %s299
    %p301 = scmp.eq.s32.totalorder %s39, 0
    %p302 = por %p300, %p301
    %s304 = sadd.s32 %s303, 1
    %p307 = scmp.eq.s32.totalorder %s33, 1
    %p308 = scmp.ne.s32.totalorder %s303, %s305
    %p309 = scmp.eq.s32.totalorder %s33, 0
    %p310 = por %p308, %p309
    %p311 = scmp.ne.s32.totalorder %s303, %s305
    %p312 = scmp.eq.s32.totalorder %s38, 1
    %p313 = por %p311, %p312
    %p314 = scmp.ne.s32.totalorder %s305, %s306
    %p315 = scmp.eq.s32.totalorder %s38, 0
    %p316 = por %p314, %p315
    %p317 = scmp.ne.s32.totalorder %s305, %s306
    %p318 = scmp.eq.s32.totalorder %s39, 1
    %p319 = por %p317, %p318
    %p321 = scmp.ne.s32.totalorder %s306, %s320
    %p322 = scmp.eq.s32.totalorder %s39, 0
    %p323 = por %p321, %p322
    %s325 = sadd.s32 %s324, 1
    %p328 = scmp.eq.s32.totalorder %s33, 1
    %p329 = scmp.ne.s32.totalorder %s324, %s326
    %p330 = scmp.eq.s32.totalorder %s33, 0
    %p331 = por %p329, %p330
    %p332 = scmp.ne.s32.totalorder %s324, %s326
    %p333 = scmp.eq.s32.totalorder %s38, 1
    %p334 = por %p332, %p333
    %p335 = scmp.ne.s32.totalorder %s326, %s327
    %p336 = scmp.eq.s32.totalorder %s38, 0
    %p337 = por %p335, %p336
    %p338 = scmp.ne.s32.totalorder %s326, %s327
    %p339 = scmp.eq.s32.totalorder %s39, 1
    %p340 = por %p338, %p339
    %p342 = scmp.ne.s32.totalorder %s327, %s341
    %p343 = scmp.eq.s32.totalorder %s39, 0
    %p344 = por %p342, %p343
    %s346 = sadd.s32 %s345, 1
    %p349 = scmp.eq.s32.totalorder %s33, 1
    %p350 = scmp.ne.s32.totalorder %s345, %s347
    %p351 = scmp.eq.s32.totalorder %s33, 0
    %p352 = por %p350, %p351
    %p353 = scmp.ne.s32.totalorder %s345, %s347
    %p354 = scmp.eq.s32.totalorder %s38, 1
    %p355 = por %p353, %p354
    %p356 = scmp.ne.s32.totalorder %s347, %s348
    %p357 = scmp.eq.s32.totalorder %s38, 0
    %p358 = por %p356, %p357
    %p359 = scmp.ne.s32.totalorder %s347, %s348
    %p360 = scmp.eq.s32.totalorder %s39, 1
    %p361 = por %p359, %p360
    %p363 = scmp.ne.s32.totalorder %s348, %s362
    %p364 = scmp.eq.s32.totalorder %s39, 0
    %p365 = por %p363, %p364
    %s367 = sadd.s32 %s366, 1
    %p370 = scmp.eq.s32.totalorder %s33, 1
    %p371 = scmp.ne.s32.totalorder %s366, %s368
    %p372 = scmp.eq.s32.totalorder %s33, 0
    %p373 = por %p371, %p372
    %p374 = scmp.ne.s32.totalorder %s366, %s368
    %p375 = scmp.eq.s32.totalorder %s38, 1
    %p376 = por %p374, %p375
    %p377 = scmp.ne.s32.totalorder %s368, %s369
    %p378 = scmp.eq.s32.totalorder %s38, 0
    %p379 = por %p377, %p378
    %p380 = scmp.ne.s32.totalorder %s368, %s369
    %p381 = scmp.eq.s32.totalorder %s39, 1
    %p382 = por %p380, %p381
    %p384 = scmp.ne.s32.totalorder %s369, %s383
    %p385 = scmp.eq.s32.totalorder %s39, 0
    %p386 = por %p384, %p385
    %s388 = sadd.s32 %s387, 1
    %p391 = scmp.eq.s32.totalorder %s33, 1
    %p392 = scmp.ne.s32.totalorder %s387, %s389
    %p393 = scmp.eq.s32.totalorder %s33, 0
    %p394 = por %p392, %p393
    %p395 = scmp.ne.s32.totalorder %s387, %s389
    %p396 = scmp.eq.s32.totalorder %s38, 1
    %p397 = por %p395, %p396
    %p398 = scmp.ne.s32.totalorder %s389, %s390
    %p399 = scmp.eq.s32.totalorder %s38, 0
    %p400 = por %p398, %p399
    %p401 = scmp.ne.s32.totalorder %s389, %s390
    %p402 = scmp.eq.s32.totalorder %s39, 1
    %p403 = por %p401, %p402
    %p405 = scmp.ne.s32.totalorder %s390, %s404
    %p406 = scmp.eq.s32.totalorder %s39, 0
    %p407 = por %p405, %p406
    %s409 = sadd.s32 %s408, 1
    %p412 = scmp.eq.s32.totalorder %s33, 1
    %p413 = scmp.ne.s32.totalorder %s408, %s410
    %p414 = scmp.eq.s32.totalorder %s33, 0
    %p415 = por %p413, %p414
    %p416 = scmp.ne.s32.totalorder %s408, %s410
    %p417 = scmp.eq.s32.totalorder %s38, 1
    %p418 = por %p416, %p417
    %p419 = scmp.ne.s32.totalorder %s410, %s411
    %p420 = scmp.eq.s32.totalorder %s38, 0
    %p421 = por %p419, %p420
    %p422 = scmp.ne.s32.totalorder %s410, %s411
    %p423 = scmp.eq.s32.totalorder %s39, 1
    %p424 = por %p422, %p423
    %p426 = scmp.ne.s32.totalorder %s411, %s425
    %p427 = scmp.eq.s32.totalorder %s39, 0
    %p428 = por %p426, %p427
    %s430 = sadd.s32 %s429, 1
    %p433 = scmp.eq.s32.totalorder %s33, 1
    %p434 = scmp.ne.s32.totalorder %s429, %s431
    %p435 = scmp.eq.s32.totalorder %s33, 0
    %p436 = por %p434, %p435
    %p437 = scmp.ne.s32.totalorder %s429, %s431
    %p438 = scmp.eq.s32.totalorder %s38, 1
    %p439 = por %p437, %p438
    %p440 = scmp.ne.s32.totalorder %s431, %s432
    %p441 = scmp.eq.s32.totalorder %s38, 0
    %p442 = por %p440, %p441
    %p443 = scmp.ne.s32.totalorder %s431, %s432
    %p444 = scmp.eq.s32.totalorder %s39, 1
    %p445 = por %p443, %p444
    %p447 = scmp.ne.s32.totalorder %s432, %s446
    %p448 = scmp.eq.s32.totalorder %s39, 0
    %p449 = por %p447, %p448
    %s451 = sadd.s32 %s450, 1
    %p454 = scmp.eq.s32.totalorder %s33, 1
    %p455 = scmp.ne.s32.totalorder %s450, %s452
    %p456 = scmp.eq.s32.totalorder %s33, 0
    %p457 = por %p455, %p456
    %p458 = scmp.ne.s32.totalorder %s450, %s452
    %p459 = scmp.eq.s32.totalorder %s38, 1
    %p460 = por %p458, %p459
    %p461 = scmp.ne.s32.totalorder %s452, %s453
    %p462 = scmp.eq.s32.totalorder %s38, 0
    %p463 = por %p461, %p462
    %p464 = scmp.ne.s32.totalorder %s452, %s453
    %p465 = scmp.eq.s32.totalorder %s39, 1
    %p466 = por %p464, %p465
    %p468 = scmp.ne.s32.totalorder %s453, %s467
    %p469 = scmp.eq.s32.totalorder %s39, 0
    %p470 = por %p468, %p469
    %s472 = sadd.s32 %s471, 1
    %p475 = scmp.eq.s32.totalorder %s33, 1
    %p476 = scmp.ne.s32.totalorder %s471, %s473
    %p477 = scmp.eq.s32.totalorder %s33, 0
    %p478 = por %p476, %p477
    %p479 = scmp.ne.s32.totalorder %s471, %s473
    %p480 = scmp.eq.s32.totalorder %s38, 1
    %p481 = por %p479, %p480
    %p482 = scmp.ne.s32.totalorder %s473, %s474
    %p483 = scmp.eq.s32.totalorder %s38, 0
    %p484 = por %p482, %p483
    %p485 = scmp.ne.s32.totalorder %s473, %s474
    %p486 = scmp.eq.s32.totalorder %s39, 1
    %p487 = por %p485, %p486
    %p489 = scmp.ne.s32.totalorder %s474, %s488
    %p490 = scmp.eq.s32.totalorder %s39, 0
    %p491 = por %p489, %p490
    %s493 = sadd.s32 %s492, 1
    %p496 = scmp.eq.s32.totalorder %s33, 1
    %p497 = scmp.ne.s32.totalorder %s492, %s494
    %p498 = scmp.eq.s32.totalorder %s33, 0
    %p499 = por %p497, %p498
    %p500 = scmp.ne.s32.totalorder %s492, %s494
    %p501 = scmp.eq.s32.totalorder %s38, 1
    %p502 = por %p500, %p501
    %p503 = scmp.ne.s32.totalorder %s494, %s495
    %p504 = scmp.eq.s32.totalorder %s38, 0
    %p505 = por %p503, %p504
    %p506 = scmp.ne.s32.totalorder %s494, %s495
    %p507 = scmp.eq.s32.totalorder %s39, 1
    %p508 = por %p506, %p507
    %p510 = scmp.ne.s32.totalorder %s495, %s509
    %p511 = scmp.eq.s32.totalorder %s39, 0
    %p512 = por %p510, %p511
    %s514 = sadd.s32 %s513, 1
    %p517 = scmp.eq.s32.totalorder %s33, 1
    %p518 = scmp.ne.s32.totalorder %s513, %s515
    %p519 = scmp.eq.s32.totalorder %s33, 0
    %p520 = por %p518, %p519
    %p521 = scmp.ne.s32.totalorder %s513, %s515
    %p522 = scmp.eq.s32.totalorder %s38, 1
    %p523 = por %p521, %p522
    %p524 = scmp.ne.s32.totalorder %s515, %s516
    %p525 = scmp.eq.s32.totalorder %s38, 0
    %p526 = por %p524, %p525
    %p527 = scmp.ne.s32.totalorder %s515, %s516
    %p528 = scmp.eq.s32.totalorder %s39, 1
    %p529 = por %p527, %p528
    %p531 = scmp.ne.s32.totalorder %s516, %s530
    %p532 = scmp.eq.s32.totalorder %s39, 0
    %p533 = por %p531, %p532
    %s535 = sadd.s32 %s534, 1
    %p538 = scmp.eq.s32.totalorder %s33, 1
    %p539 = scmp.ne.s32.totalorder %s534, %s536
    %p540 = scmp.eq.s32.totalorder %s33, 0
    %p541 = por %p539, %p540
    %p542 = scmp.ne.s32.totalorder %s534, %s536
    %p543 = scmp.eq.s32.totalorder %s38, 1
    %p544 = por %p542, %p543
    %p545 = scmp.ne.s32.totalorder %s536, %s537
    %p546 = scmp.eq.s32.totalorder %s38, 0
    %p547 = por %p545, %p546
    %p548 = scmp.ne.s32.totalorder %s536, %s537
    %p549 = scmp.eq.s32.totalorder %s39, 1
    %p550 = por %p548, %p549
    %p552 = scmp.ne.s32.totalorder %s537, %s551
    %p553 = scmp.eq.s32.totalorder %s39, 0
    %p554 = por %p552, %p553
    %s556 = sadd.s32 %s555, 1
    %p559 = scmp.eq.s32.totalorder %s33, 1
    %p560 = scmp.ne.s32.totalorder %s555, %s557
    %p561 = scmp.eq.s32.totalorder %s33, 0
    %p562 = por %p560, %p561
    %p563 = scmp.ne.s32.totalorder %s555, %s557
    %p564 = scmp.eq.s32.totalorder %s38, 1
    %p565 = por %p563, %p564
    %p566 = scmp.ne.s32.totalorder %s557, %s558
    %p567 = scmp.eq.s32.totalorder %s38, 0
    %p568 = por %p566, %p567
    %p569 = scmp.ne.s32.totalorder %s557, %s558
    %p570 = scmp.eq.s32.totalorder %s39, 1
    %p571 = por %p569, %p570
    %p573 = scmp.ne.s32.totalorder %s558, %s572
    %p574 = scmp.eq.s32.totalorder %s39, 0
    %p575 = por %p573, %p574
    %s576 = ssub.s32 %s33, %s40
    %p577 = scmp.eq.s32.totalorder %s576, 0
    %s579 = sadd.s32 %s578, 1
    %s580 = scalar_select %p577, %s578, %s579
    %p583 = pneg %p577
    %p584 = scmp.eq.s32.totalorder %s33, 1
    %p585 = por %p583, %p584
    %p586 = scmp.ne.s32.totalorder %s578, %s581
    %p587 = scmp.eq.s32.totalorder %s33, 0
    %p588 = por %p586, %p587
    %p589 = scmp.ne.s32.totalorder %s578, %s581
    %p590 = scmp.eq.s32.totalorder %s38, 1
    %p591 = por %p589, %p590
    %p592 = scmp.ne.s32.totalorder %s581, %s582
    %p593 = scmp.eq.s32.totalorder %s38, 0
    %p594 = por %p592, %p593
    %p595 = scmp.ne.s32.totalorder %s581, %s582
    %p596 = scmp.eq.s32.totalorder %s39, 1
    %p597 = por %p595, %p596
    %p599 = scmp.ne.s32.totalorder %s582, %s598
    %p600 = scmp.eq.s32.totalorder %s39, 0
    %p601 = por %p599, %p600
    %p602 = scmp.le.s32.totalorder 1, %s33
    %p603 = scmp.lt.s32.totalorder %s33, 3
    %p604 = pnand %p602, %p603
    %p605 = pneg %p604
    // Predicated region
    $region9: #{model_forward.1} parent=5 // pred_check
      _
    $region10: #{model_forward.1} parent=5 // pred_check_branch
      %607 = sbr.rel (%p604) target = $region12
    $region11: #{model_forward.1} parent=5 // pred_region
      %s608 = ssub.s32 %s33, 1
      // Predicated region
      $region13: #{model_forward.1} parent=11 // pred_check
        %p609 = pneg %p106
      $region14: #{model_forward.1} parent=11 // pred_check_branch
        %611 = sbr.rel (%p609) target = $region16
      $region15: #{model_forward.1} parent=11 // pred_region
        _
      $region16: #{model_forward.1} parent=11 // pred_fallthru
        _
      // Predicated region
      $region17: #{model_forward.1} parent=11 // pred_check
        %p612 = pneg %p127
      $region18: #{model_forward.1} parent=11 // pred_check_branch
        %614 = sbr.rel (%p612) target = $region20
      $region19: #{model_forward.1} parent=11 // pred_region
        _
      $region20: #{model_forward.1} parent=11 // pred_fallthru
        _
      // Predicated region
      $region21: #{model_forward.1} parent=11 // pred_check
        %p615 = pneg %p148
      $region22: #{model_forward.1} parent=11 // pred_check_branch
        %617 = sbr.rel (%p615) target = $region24
      $region23: #{model_forward.1} parent=11 // pred_region
        _
      $region24: #{model_forward.1} parent=11 // pred_fallthru
        _
      // Predicated region
      $region25: #{model_forward.1} parent=11 // pred_check
        %p618 = pneg %p169
      $region26: #{model_forward.1} parent=11 // pred_check_branch
        %620 = sbr.rel (%p618) target = $region28
      $region27: #{model_forward.1} parent=11 // pred_region
        _
      $region28: #{model_forward.1} parent=11 // pred_fallthru
        _
      // Predicated region
      $region29: #{model_forward.1} parent=11 // pred_check
        %p621 = pneg %p190
      $region30: #{model_forward.1} parent=11 // pred_check_branch
        %623 = sbr.rel (%p621) target = $region32
      $region31: #{model_forward.1} parent=11 // pred_region
        _
      $region32: #{model_forward.1} parent=11 // pred_fallthru
        _
      // Predicated region
      $region33: #{model_forward.1} parent=11 // pred_check
        %p624 = pneg %p211
      $region34: #{model_forward.1} parent=11 // pred_check_branch
        %626 = sbr.rel (%p624) target = $region36
      $region35: #{model_forward.1} parent=11 // pred_region
        _
      $region36: #{model_forward.1} parent=11 // pred_fallthru
        _
      // Predicated region
      $region37: #{model_forward.1} parent=11 // pred_check
        %p627 = pneg %p232
      $region38: #{model_forward.1} parent=11 // pred_check_branch
        %629 = sbr.rel (%p627) target = $region40
      $region39: #{model_forward.1} parent=11 // pred_region
        _
      $region40: #{model_forward.1} parent=11 // pred_fallthru
        _
      // Predicated region
      $region41: #{model_forward.1} parent=11 // pred_check
        %p630 = pneg %p253
      $region42: #{model_forward.1} parent=11 // pred_check_branch
        %632 = sbr.rel (%p630) target = $region44
      $region43: #{model_forward.1} parent=11 // pred_region
        _
      $region44: #{model_forward.1} parent=11 // pred_fallthru
        _
      // Predicated region
      $region45: #{model_forward.1} parent=11 // pred_check
        %p633 = pneg %p274
      $region46: #{model_forward.1} parent=11 // pred_check_branch
        %635 = sbr.rel (%p633) target = $region48
      $region47: #{model_forward.1} parent=11 // pred_region
        _
      $region48: #{model_forward.1} parent=11 // pred_fallthru
        _
      // Predicated region
      $region49: #{model_forward.1} parent=11 // pred_check
        %p636 = pneg %p295
      $region50: #{model_forward.1} parent=11 // pred_check_branch
        %638 = sbr.rel (%p636) target = $region52
      $region51: #{model_forward.1} parent=11 // pred_region
        _
      $region52: #{model_forward.1} parent=11 // pred_fallthru
        _
      // Predicated region
      $region53: #{model_forward.1} parent=11 // pred_check
        %p639 = pneg %p316
      $region54: #{model_forward.1} parent=11 // pred_check_branch
        %641 = sbr.rel (%p639) target = $region56
      $region55: #{model_forward.1} parent=11 // pred_region
        _
      $region56: #{model_forward.1} parent=11 // pred_fallthru
        _
      // Predicated region
      $region57: #{model_forward.1} parent=11 // pred_check
        %p642 = pneg %p337
      $region58: #{model_forward.1} parent=11 // pred_check_branch
        %644 = sbr.rel (%p642) target = $region60
      $region59: #{model_forward.1} parent=11 // pred_region
        _
      $region60: #{model_forward.1} parent=11 // pred_fallthru
        _
      // Predicated region
      $region61: #{model_forward.1} parent=11 // pred_check
        %p645 = pneg %p358
      $region62: #{model_forward.1} parent=11 // pred_check_branch
        %647 = sbr.rel (%p645) target = $region64
      $region63: #{model_forward.1} parent=11 // pred_region
        _
      $region64: #{model_forward.1} parent=11 // pred_fallthru
        _
      // Predicated region
      $region65: #{model_forward.1} parent=11 // pred_check
        %p648 = pneg %p379
      $region66: #{model_forward.1} parent=11 // pred_check_branch
        %650 = sbr.rel (%p648) target = $region68
      $region67: #{model_forward.1} parent=11 // pred_region
        _
      $region68: #{model_forward.1} parent=11 // pred_fallthru
        _
      // Predicated region
      $region69: #{model_forward.1} parent=11 // pred_check
        %p651 = pneg %p400
      $region70: #{model_forward.1} parent=11 // pred_check_branch
        %653 = sbr.rel (%p651) target = $region72
      $region71: #{model_forward.1} parent=11 // pred_region
        _
      $region72: #{model_forward.1} parent=11 // pred_fallthru
        _
      // Predicated region
      $region73: #{model_forward.1} parent=11 // pred_check
        %p654 = pneg %p421
      $region74: #{model_forward.1} parent=11 // pred_check_branch
        %656 = sbr.rel (%p654) target = $region76
      $region75: #{model_forward.1} parent=11 // pred_region
        _
      $region76: #{model_forward.1} parent=11 // pred_fallthru
        _
      // Predicated region
      $region77: #{model_forward.1} parent=11 // pred_check
        %p657 = pneg %p442
      $region78: #{model_forward.1} parent=11 // pred_check_branch
        %659 = sbr.rel (%p657) target = $region80
      $region79: #{model_forward.1} parent=11 // pred_region
        _
      $region80: #{model_forward.1} parent=11 // pred_fallthru
        _
      // Predicated region
      $region81: #{model_forward.1} parent=11 // pred_check
        %p660 = pneg %p463
      $region82: #{model_forward.1} parent=11 // pred_check_branch
        %662 = sbr.rel (%p660) target = $region84
      $region83: #{model_forward.1} parent=11 // pred_region
        _
      $region84: #{model_forward.1} parent=11 // pred_fallthru
        _
      // Predicated region
      $region85: #{model_forward.1} parent=11 // pred_check
        %p663 = pneg %p484
      $region86: #{model_forward.1} parent=11 // pred_check_branch
        %665 = sbr.rel (%p663) target = $region88
      $region87: #{model_forward.1} parent=11 // pred_region
        _
      $region88: #{model_forward.1} parent=11 // pred_fallthru
        _
      // Predicated region
      $region89: #{model_forward.1} parent=11 // pred_check
        %p666 = pneg %p505
      $region90: #{model_forward.1} parent=11 // pred_check_branch
        %668 = sbr.rel (%p666) target = $region92
      $region91: #{model_forward.1} parent=11 // pred_region
        _
      $region92: #{model_forward.1} parent=11 // pred_fallthru
        _
      // Predicated region
      $region93: #{model_forward.1} parent=11 // pred_check
        %p669 = pneg %p526
      $region94: #{model_forward.1} parent=11 // pred_check_branch
        %671 = sbr.rel (%p669) target = $region96
      $region95: #{model_forward.1} parent=11 // pred_region
        _
      $region96: #{model_forward.1} parent=11 // pred_fallthru
        _
      // Predicated region
      $region97: #{model_forward.1} parent=11 // pred_check
        %p672 = pneg %p547
      $region98: #{model_forward.1} parent=11 // pred_check_branch
        %674 = sbr.rel (%p672) target = $region100
      $region99: #{model_forward.1} parent=11 // pred_region
        _
      $region100: #{model_forward.1} parent=11 // pred_fallthru
        _
      // Predicated region
      $region101: #{model_forward.1} parent=11 // pred_check
        %p675 = pneg %p568
      $region102: #{model_forward.1} parent=11 // pred_check_branch
        %677 = sbr.rel (%p675) target = $region104
      $region103: #{model_forward.1} parent=11 // pred_region
        _
      $region104: #{model_forward.1} parent=11 // pred_fallthru
        _
    $region12: #{model_forward.1} parent=5 // pred_fallthru
      _
    %p678 = scmp.lt.s32.totalorder %s33, 2
    // Predicated region
    $region105: #{model_forward.1} parent=5 // pred_check
      %p679 = pneg %p678
    $region106: #{model_forward.1} parent=5 // pred_check_branch
      %681 = sbr.rel (%p679) target = $region108
    $region107: #{model_forward.1} parent=5 // pred_region
      // Predicated region
      $region109: #{model_forward.1} parent=107 // pred_check
        %p682 = pneg %p53
      $region110: #{model_forward.1} parent=107 // pred_check_branch
        %684 = sbr.rel (%p682) target = $region112
      $region111: #{model_forward.1} parent=107 // pred_region
        %p685 = scmp.lt.s32.totalorder %s33, 1
        %s686 = scalar_select %p685, %s33, 1
        %s687 = smul.addr %s686, 8
        %s688 = smul.addr %s687, 8
        %s689 = scalar_lea.vmem %s0, %s688
      $region112: #{model_forward.1} parent=107 // pred_fallthru
        _
      // Predicated region
      $region113: #{model_forward.1} parent=107 // pred_check
        %p690 = pneg %p79
      $region114: #{model_forward.1} parent=107 // pred_check_branch
        %692 = sbr.rel (%p690) target = $region116
      $region115: #{model_forward.1} parent=107 // pred_region
        %p693 = scmp.lt.s32.totalorder %s33, 1
        %s694 = scalar_select %p693, %s33, 1
        %s695 = scalar_lea.vmem %s1, %s694
      $region116: #{model_forward.1} parent=107 // pred_fallthru
        _
    $region108: #{model_forward.1} parent=5 // pred_fallthru
      _
    %p696 = scmp.le.s32.totalorder 1, %s33
    %p697 = scmp.lt.s32.totalorder %s33, 3
    %p698 = pnand %p696, %p697
    %p699 = pneg %p698
    // Predicated region
    $region117: #{model_forward.1} parent=5 // pred_check
      _
    $region118: #{model_forward.1} parent=5 // pred_check_branch
      %701 = sbr.rel (%p698) target = $region120
    $region119: #{model_forward.1} parent=5 // pred_region
      %s702 = ssub.s32 %s33, 1
      %p703 = scmp.lt.s32.totalorder %s38, 1
      %s704 = scalar_select %p703, %s38, 1
      %s705 = smul.addr %s704, 8
      %s706 = smul.addr %s705, 8
      %s707 = scalar_lea.vmem %s0, %s706
      %p708 = pneg %p59
      %p709 = pneg %p56
      %p710 = scmp.lt.s32.totalorder %s38, 1
      %s711 = scalar_select %p710, %s38, 1
      %s712 = scalar_lea.vmem %s1, %s711
      %p713 = pneg %p85
      %p714 = pneg %p82
      %p715 = pneg %p106
      %p716 = pneg %p103
      %p717 = pneg %p127
      %p718 = pneg %p124
      %p719 = pneg %p148
      %p720 = pneg %p145
      %p721 = pneg %p169
      %p722 = pneg %p166
      %p723 = pneg %p190
      %p724 = pneg %p187
      %p725 = pneg %p211
      %p726 = pneg %p208
      %p727 = pneg %p232
      %p728 = pneg %p229
      %p729 = pneg %p253
      %p730 = pneg %p250
      %p731 = pneg %p274
      %p732 = pneg %p271
      %p733 = pneg %p295
      %p734 = pneg %p292
      %p735 = pneg %p316
      %p736 = pneg %p313
      %p737 = pneg %p337
      %p738 = pneg %p334
      %p739 = pneg %p358
      %p740 = pneg %p355
      %p741 = pneg %p379
      %p742 = pneg %p376
      %p743 = pneg %p400
      %p744 = pneg %p397
      %p745 = pneg %p421
      %p746 = pneg %p418
      %p747 = pneg %p442
      %p748 = pneg %p439
      %p749 = pneg %p463
      %p750 = pneg %p460
      %p751 = pneg %p484
      %p752 = pneg %p481
      %p753 = pneg %p505
      %p754 = pneg %p502
      %p755 = pneg %p526
      %p756 = pneg %p523
      %p757 = pneg %p547
      %p758 = pneg %p544
      %p759 = pneg %p568
      %p760 = pneg %p565
      %p761 = pneg %p594
      %p762 = pneg %p591
      %p763 = scmp.lt.s32.totalorder %s38, 1
      %s764 = scalar_select %p763, %s38, 1
      %s765 = scalar_lea.vmem %s25, %s764
      %p766 = scmp.lt.s32.totalorder %s38, 1
      %s767 = scalar_select %p766, %s38, 1
      %s768 = smul.addr %s767, 8
      %s769 = smul.addr %s768, 8
      %s770 = scalar_lea.vmem %s0, %s769
      %p771 = scmp.lt.s32.totalorder %s38, 1
      %s772 = scalar_select %p771, %s38, 1
      %s773 = scalar_lea.vmem %s1, %s772
      %p774 = scmp.lt.s32.totalorder %s38, 1
      %s775 = scalar_select %p774, %s38, 1
      %s776 = scalar_lea.vmem %s25, %s775
      %v778 = vld [vmem:[%s770] sm:$0x1f]
      %v779 = vld [vmem:[%s770 + $0x8] sm:$0x1f]
      %v780 = vld [vmem:[%s770 + $0x10] sm:$0x1f]
      %v781 = vld [vmem:[%s770 + $0x18] sm:$0x1f]
      %v782 = vld [vmem:[%s770 + $0x20] sm:$0x1f]
      %v783 = vld [vmem:[%s770 + $0x28] sm:$0x1f]
      %v784 = vld [vmem:[%s770 + $0x30] sm:$0x1f]
      %v785 = vld [vmem:[%s770 + $0x38] sm:$0x1f]
      %v786 = vld [vmem:[%s2] sm:$0xf]
      %v787 = vld [vmem:[%s2 + $0x4] sm:$0xf]
      %v788 = vld [vmem:[%s2 + $0x8] sm:$0xf]
      %v789 = vld [vmem:[%s2 + $0xc] sm:$0xf]
      %v790 = vld [vmem:[%s2 + $0x10] sm:$0xf]
      %v791 = vld [vmem:[%s2 + $0x14] sm:$0xf]
      %v792 = vld [vmem:[%s2 + $0x18] sm:$0xf]
      %v793 = vld [vmem:[%s2 + $0x1c] sm:$0xf]
      %v794 = vld [vmem:[%s2 + $0x20] sm:$0xf]
      %v795 = vld [vmem:[%s2 + $0x24] sm:$0xf]
      %v796 = vld [vmem:[%s2 + $0x28] sm:$0xf]
      %v797 = vld [vmem:[%s2 + $0x2c] sm:$0xf]
      %v798 = vld [vmem:[%s2 + $0x30] sm:$0xf]
      %v799 = vld [vmem:[%s2 + $0x34] sm:$0xf]
      %v800 = vld [vmem:[%s2 + $0x38] sm:$0xf]
      %v801 = vld [vmem:[%s2 + $0x3c] sm:$0xf]
      %v802 = vld [vmem:[%s2 + $0x40] sm:$0xf]
      %v803 = vld [vmem:[%s2 + $0x44] sm:$0xf]
      %v804 = vld [vmem:[%s2 + $0x48] sm:$0xf]
      %v805 = vld [vmem:[%s2 + $0x4c] sm:$0xf]
      %v806 = vld [vmem:[%s2 + $0x50] sm:$0xf]
      %v807 = vld [vmem:[%s2 + $0x54] sm:$0xf]
      %v808 = vld [vmem:[%s2 + $0x58] sm:$0xf]
      %v809 = vld [vmem:[%s2 + $0x5c] sm:$0xf]
      %v810 = vld [vmem:[%s2 + $0x60] sm:$0xf]
      %v811 = vld [vmem:[%s2 + $0x64] sm:$0xf]
      %v812 = vld [vmem:[%s2 + $0x68] sm:$0xf]
      %v813 = vld [vmem:[%s2 + $0x6c] sm:$0xf]
      %v814 = vld [vmem:[%s2 + $0x70] sm:$0xf]
      %v815 = vld [vmem:[%s2 + $0x74] sm:$0xf]
      %v816 = vld [vmem:[%s2 + $0x78] sm:$0xf]
      %v817 = vld [vmem:[%s2 + $0x7c] sm:$0xf]
      %v818 = vld [vmem:[%s2 + $0x80] sm:$0xf]
      %v819 = vld [vmem:[%s2 + $0x84] sm:$0xf]
      %v820 = vld [vmem:[%s2 + $0x88] sm:$0xf]
      %v821 = vld [vmem:[%s2 + $0x8c] sm:$0xf]
      %v822 = vld [vmem:[%s2 + $0x90] sm:$0xf]
      %v823 = vld [vmem:[%s2 + $0x94] sm:$0xf]
      %v824 = vld [vmem:[%s2 + $0x98] sm:$0xf]
      %v825 = vld [vmem:[%s2 + $0x9c] sm:$0xf]
      %v826 = vld [vmem:[%s2 + $0xa0] sm:$0xf]
      %v827 = vld [vmem:[%s2 + $0xa4] sm:$0xf]
      %v828 = vld [vmem:[%s2 + $0xa8] sm:$0xf]
      %v829 = vld [vmem:[%s2 + $0xac] sm:$0xf]
      %v830 = vld [vmem:[%s2 + $0xb0] sm:$0xf]
      %v831 = vld [vmem:[%s2 + $0xb4] sm:$0xf]
      %v832 = vld [vmem:[%s2 + $0xb8] sm:$0xf]
      %v833 = vld [vmem:[%s2 + $0xbc] sm:$0xf]
      %v834 = vld [vmem:[%s2 + $0xc0] sm:$0xf]
      %v835 = vld [vmem:[%s2 + $0xc4] sm:$0xf]
      %v836 = vld [vmem:[%s2 + $0xc8] sm:$0xf]
      %v837 = vld [vmem:[%s2 + $0xcc] sm:$0xf]
      %v838 = vld [vmem:[%s2 + $0xd0] sm:$0xf]
      %v839 = vld [vmem:[%s2 + $0xd4] sm:$0xf]
      %v840 = vld [vmem:[%s2 + $0xd8] sm:$0xf]
      %v841 = vld [vmem:[%s2 + $0xdc] sm:$0xf]
      %v842 = vld [vmem:[%s2 + $0xe0] sm:$0xf]
      %v843 = vld [vmem:[%s2 + $0xe4] sm:$0xf]
      %v844 = vld [vmem:[%s2 + $0xe8] sm:$0xf]
      %v845 = vld [vmem:[%s2 + $0xec] sm:$0xf]
      %v846 = vld [vmem:[%s2 + $0xf0] sm:$0xf]
      %v847 = vld [vmem:[%s2 + $0xf4] sm:$0xf]
      %v848 = vld [vmem:[%s2 + $0xf8] sm:$0xf]
      %v849 = vld [vmem:[%s2 + $0xfc] sm:$0xf]
      %v850 = vld [vmem:[%s2 + $0x100] sm:$0xf]
      %v851 = vld [vmem:[%s2 + $0x104] sm:$0xf]
      %v852 = vld [vmem:[%s2 + $0x108] sm:$0xf]
      %v853 = vld [vmem:[%s2 + $0x10c] sm:$0xf]
      %v854 = vld [vmem:[%s2 + $0x110] sm:$0xf]
      %v855 = vld [vmem:[%s2 + $0x114] sm:$0xf]
      %v856 = vld [vmem:[%s2 + $0x118] sm:$0xf]
      %v857 = vld [vmem:[%s2 + $0x11c] sm:$0xf]
      %v858 = vld [vmem:[%s2 + $0x120] sm:$0xf]
      %v859 = vld [vmem:[%s2 + $0x124] sm:$0xf]
      %v860 = vld [vmem:[%s2 + $0x128] sm:$0xf]
      %v861 = vld [vmem:[%s2 + $0x12c] sm:$0xf]
      %v862 = vld [vmem:[%s2 + $0x130] sm:$0xf]
      %v863 = vld [vmem:[%s2 + $0x134] sm:$0xf]
      %v864 = vld [vmem:[%s2 + $0x138] sm:$0xf]
      %v865 = vld [vmem:[%s2 + $0x13c] sm:$0xf]
      %v866 = vld [vmem:[%s2 + $0x140] sm:$0xf]
      %v867 = vld [vmem:[%s2 + $0x144] sm:$0xf]
      %v868 = vld [vmem:[%s2 + $0x148] sm:$0xf]
      %v869 = vld [vmem:[%s2 + $0x14c] sm:$0xf]
      %v870 = vld [vmem:[%s2 + $0x150] sm:$0xf]
      %v871 = vld [vmem:[%s2 + $0x154] sm:$0xf]
      %v872 = vld [vmem:[%s2 + $0x158] sm:$0xf]
      %v873 = vld [vmem:[%s2 + $0x15c] sm:$0xf]
      %v874 = vld [vmem:[%s2 + $0x160] sm:$0xf]
      %v875 = vld [vmem:[%s2 + $0x164] sm:$0xf]
      %v876 = vld [vmem:[%s2 + $0x168] sm:$0xf]
      %v877 = vld [vmem:[%s2 + $0x16c] sm:$0xf]
      %v878 = vld [vmem:[%s2 + $0x170] sm:$0xf]
      %v879 = vld [vmem:[%s2 + $0x174] sm:$0xf]
      %v880 = vld [vmem:[%s2 + $0x178] sm:$0xf]
      %v881 = vld [vmem:[%s2 + $0x17c] sm:$0xf]
      %v882 = vld [vmem:[%s2 + $0x180] sm:$0xf]
      %v883 = vld [vmem:[%s2 + $0x184] sm:$0xf]
      %v884 = vld [vmem:[%s2 + $0x188] sm:$0xf]
      %v885 = vld [vmem:[%s2 + $0x18c] sm:$0xf]
      %v886 = vld [vmem:[%s2 + $0x190] sm:$0xf]
      %v887 = vld [vmem:[%s2 + $0x194] sm:$0xf]
      %v888 = vld [vmem:[%s2 + $0x198] sm:$0xf]
      %v889 = vld [vmem:[%s2 + $0x19c] sm:$0xf]
      %v890 = vld [vmem:[%s2 + $0x1a0] sm:$0xf]
      %v891 = vld [vmem:[%s2 + $0x1a4] sm:$0xf]
      %v892 = vld [vmem:[%s2 + $0x1a8] sm:$0xf]
      %v893 = vld [vmem:[%s2 + $0x1ac] sm:$0xf]
      %v894 = vld [vmem:[%s2 + $0x1b0] sm:$0xf]
      %v895 = vld [vmem:[%s2 + $0x1b4] sm:$0xf]
      %v896 = vld [vmem:[%s2 + $0x1b8] sm:$0xf]
      %v897 = vld [vmem:[%s2 + $0x1bc] sm:$0xf]
      %v898 = vld [vmem:[%s2 + $0x1c0] sm:$0xf]
      %v899 = vld [vmem:[%s2 + $0x1c4] sm:$0xf]
      %v900 = vld [vmem:[%s2 + $0x1c8] sm:$0xf]
      %v901 = vld [vmem:[%s2 + $0x1cc] sm:$0xf]
      %v902 = vld [vmem:[%s2 + $0x1d0] sm:$0xf]
      %v903 = vld [vmem:[%s2 + $0x1d4] sm:$0xf]
      %v904 = vld [vmem:[%s2 + $0x1d8] sm:$0xf]
      %v905 = vld [vmem:[%s2 + $0x1dc] sm:$0xf]
      %v906 = vld [vmem:[%s2 + $0x1e0] sm:$0xf]
      %v907 = vld [vmem:[%s2 + $0x1e4] sm:$0xf]
      %v908 = vld [vmem:[%s2 + $0x1e8] sm:$0xf]
      %v909 = vld [vmem:[%s2 + $0x1ec] sm:$0xf]
      %v910 = vld [vmem:[%s2 + $0x1f0] sm:$0xf]
      %v911 = vld [vmem:[%s2 + $0x1f4] sm:$0xf]
      %v912 = vld [vmem:[%s2 + $0x1f8] sm:$0xf]
      %v913 = vld [vmem:[%s2 + $0x1fc] sm:$0xf]
      %v914 = vld [vmem:[%s3] sm:$0x1]
      %v915 = vpack.c.bf16 %v778, %v778
      %v916 = vpack.c.bf16 %v779, %v779
      %v917 = vpack.c.bf16 %v780, %v780
      %v918 = vpack.c.bf16 %v781, %v781
      %v919 = vpack.c.bf16 %v782, %v782
      %v920 = vpack.c.bf16 %v783, %v783
      %v921 = vpack.c.bf16 %v784, %v784
      %v922 = vpack.c.bf16 %v785, %v785
      %v924 = vlaneseq
      %v925 = vshrl.u32 %v924, 7
      %v926 = vsub.s32 0, %v925
      %v927 = vrot.slane %v914, %v926
      %v1057 = vunpack.c.l.b16 %v786
      %v1058 = vunpack.c.l.b16 %v787
      %v1059 = vunpack.c.l.b16 %v788
      %v1060 = vunpack.c.l.b16 %v789
      %v1061 = vunpack.c.l.b16 %v790
      %v1062 = vunpack.c.l.b16 %v791
      %v1063 = vunpack.c.l.b16 %v792
      %v1064 = vunpack.c.l.b16 %v793
      %v1065 = vunpack.c.l.b16 %v794
      %v1066 = vunpack.c.l.b16 %v795
      %v1067 = vunpack.c.l.b16 %v796
      %v1068 = vunpack.c.l.b16 %v797
      %v1069 = vunpack.c.l.b16 %v798
      %v1070 = vunpack.c.l.b16 %v799
      %v1071 = vunpack.c.l.b16 %v800
      %v1072 = vunpack.c.l.b16 %v801
      %v1073 = vunpack.c.l.b16 %v802
      %v1074 = vunpack.c.l.b16 %v803
      %v1075 = vunpack.c.l.b16 %v804
      %v1076 = vunpack.c.l.b16 %v805
      %v1077 = vunpack.c.l.b16 %v806
      %v1078 = vunpack.c.l.b16 %v807
      %v1079 = vunpack.c.l.b16 %v808
      %v1080 = vunpack.c.l.b16 %v809
      %v1081 = vunpack.c.l.b16 %v810
      %v1082 = vunpack.c.l.b16 %v811
      %v1083 = vunpack.c.l.b16 %v812
      %v1084 = vunpack.c.l.b16 %v813
      %v1085 = vunpack.c.l.b16 %v814
      %v1086 = vunpack.c.l.b16 %v815
      %v1087 = vunpack.c.l.b16 %v816
      %v1088 = vunpack.c.l.b16 %v817
      %v1089 = vunpack.c.l.b16 %v818
      %v1090 = vunpack.c.l.b16 %v819
      %v1091 = vunpack.c.l.b16 %v820
      %v1092 = vunpack.c.l.b16 %v821
      %v1093 = vunpack.c.l.b16 %v822
      %v1094 = vunpack.c.l.b16 %v823
      %v1095 = vunpack.c.l.b16 %v824
      %v1096 = vunpack.c.l.b16 %v825
      %v1097 = vunpack.c.l.b16 %v826
      %v1098 = vunpack.c.l.b16 %v827
      %v1099 = vunpack.c.l.b16 %v828
      %v1100 = vunpack.c.l.b16 %v829
      %v1101 = vunpack.c.l.b16 %v830
      %v1102 = vunpack.c.l.b16 %v831
      %v1103 = vunpack.c.l.b16 %v832
      %v1104 = vunpack.c.l.b16 %v833
      %v1105 = vunpack.c.l.b16 %v834
      %v1106 = vunpack.c.l.b16 %v835
      %v1107 = vunpack.c.l.b16 %v836
      %v1108 = vunpack.c.l.b16 %v837
      %v1109 = vunpack.c.l.b16 %v838
      %v1110 = vunpack.c.l.b16 %v839
      %v1111 = vunpack.c.l.b16 %v840
      %v1112 = vunpack.c.l.b16 %v841
      %v1113 = vunpack.c.l.b16 %v842
      %v1114 = vunpack.c.l.b16 %v843
      %v1115 = vunpack.c.l.b16 %v844
      %v1116 = vunpack.c.l.b16 %v845
      %v1117 = vunpack.c.l.b16 %v846
      %v1118 = vunpack.c.l.b16 %v847
      %v1119 = vunpack.c.l.b16 %v848
      %v1120 = vunpack.c.l.b16 %v849
      %v1121 = vunpack.c.l.b16 %v850
      %v1122 = vunpack.c.l.b16 %v851
      %v1123 = vunpack.c.l.b16 %v852
      %v1124 = vunpack.c.l.b16 %v853
      %v1125 = vunpack.c.l.b16 %v854
      %v1126 = vunpack.c.l.b16 %v855
      %v1127 = vunpack.c.l.b16 %v856
      %v1128 = vunpack.c.l.b16 %v857
      %v1129 = vunpack.c.l.b16 %v858
      %v1130 = vunpack.c.l.b16 %v859
      %v1131 = vunpack.c.l.b16 %v860
      %v1132 = vunpack.c.l.b16 %v861
      %v1133 = vunpack.c.l.b16 %v862
      %v1134 = vunpack.c.l.b16 %v863
      %v1135 = vunpack.c.l.b16 %v864
      %v1136 = vunpack.c.l.b16 %v865
      %v1137 = vunpack.c.l.b16 %v866
      %v1138 = vunpack.c.l.b16 %v867
      %v1139 = vunpack.c.l.b16 %v868
      %v1140 = vunpack.c.l.b16 %v869
      %v1141 = vunpack.c.l.b16 %v870
      %v1142 = vunpack.c.l.b16 %v871
      %v1143 = vunpack.c.l.b16 %v872
      %v1144 = vunpack.c.l.b16 %v873
      %v1145 = vunpack.c.l.b16 %v874
      %v1146 = vunpack.c.l.b16 %v875
      %v1147 = vunpack.c.l.b16 %v876
      %v1148 = vunpack.c.l.b16 %v877
      %v1149 = vunpack.c.l.b16 %v878
      %v1150 = vunpack.c.l.b16 %v879
      %v1151 = vunpack.c.l.b16 %v880
      %v1152 = vunpack.c.l.b16 %v881
      %v1153 = vunpack.c.l.b16 %v882
      %v1154 = vunpack.c.l.b16 %v883
      %v1155 = vunpack.c.l.b16 %v884
      %v1156 = vunpack.c.l.b16 %v885
      %v1157 = vunpack.c.l.b16 %v886
      %v1158 = vunpack.c.l.b16 %v887
      %v1159 = vunpack.c.l.b16 %v888
      %v1160 = vunpack.c.l.b16 %v889
      %v1161 = vunpack.c.l.b16 %v890
      %v1162 = vunpack.c.l.b16 %v891
      %v1163 = vunpack.c.l.b16 %v892
      %v1164 = vunpack.c.l.b16 %v893
      %v1165 = vunpack.c.l.b16 %v894
      %v1166 = vunpack.c.l.b16 %v895
      %v1167 = vunpack.c.l.b16 %v896
      %v1168 = vunpack.c.l.b16 %v897
      %v1169 = vunpack.c.l.b16 %v898
      %v1170 = vunpack.c.l.b16 %v899
      %v1171 = vunpack.c.l.b16 %v900
      %v1172 = vunpack.c.l.b16 %v901
      %v1173 = vunpack.c.l.b16 %v902
      %v1174 = vunpack.c.l.b16 %v903
      %v1175 = vunpack.c.l.b16 %v904
      %v1176 = vunpack.c.l.b16 %v905
      %v1177 = vunpack.c.l.b16 %v906
      %v1178 = vunpack.c.l.b16 %v907
      %v1179 = vunpack.c.l.b16 %v908
      %v1180 = vunpack.c.l.b16 %v909
      %v1181 = vunpack.c.l.b16 %v910
      %v1182 = vunpack.c.l.b16 %v911
      %v1183 = vunpack.c.l.b16 %v912
      %v1184 = vunpack.c.l.b16 %v913
      %v1185 = vpack.c.b16 %v1058, %v1057
      %v1186 = vpack.c.b16 %v1060, %v1059
      %v1187 = vpack.c.b16 %v1062, %v1061
      %v1188 = vpack.c.b16 %v1064, %v1063
      %v1189 = vpack.c.b16 %v1066, %v1065
      %v1190 = vpack.c.b16 %v1068, %v1067
      %v1191 = vpack.c.b16 %v1070, %v1069
      %v1192 = vpack.c.b16 %v1072, %v1071
      %v1193 = vpack.c.b16 %v1074, %v1073
      %v1194 = vpack.c.b16 %v1076, %v1075
      %v1195 = vpack.c.b16 %v1078, %v1077
      %v1196 = vpack.c.b16 %v1080, %v1079
      %v1197 = vpack.c.b16 %v1082, %v1081
      %v1198 = vpack.c.b16 %v1084, %v1083
      %v1199 = vpack.c.b16 %v1086, %v1085
      %v1200 = vpack.c.b16 %v1088, %v1087
      %v1201 = vpack.c.b16 %v1090, %v1089
      %v1202 = vpack.c.b16 %v1092, %v1091
      %v1203 = vpack.c.b16 %v1094, %v1093
      %v1204 = vpack.c.b16 %v1096, %v1095
      %v1205 = vpack.c.b16 %v1098, %v1097
      %v1206 = vpack.c.b16 %v1100, %v1099
      %v1207 = vpack.c.b16 %v1102, %v1101
      %v1208 = vpack.c.b16 %v1104, %v1103
      %v1209 = vpack.c.b16 %v1106, %v1105
      %v1210 = vpack.c.b16 %v1108, %v1107
      %v1211 = vpack.c.b16 %v1110, %v1109
      %v1212 = vpack.c.b16 %v1112, %v1111
      %v1213 = vpack.c.b16 %v1114, %v1113
      %v1214 = vpack.c.b16 %v1116, %v1115
      %v1215 = vpack.c.b16 %v1118, %v1117
      %v1216 = vpack.c.b16 %v1120, %v1119
      %v1217 = vpack.c.b16 %v1122, %v1121
      %v1218 = vpack.c.b16 %v1124, %v1123
      %v1219 = vpack.c.b16 %v1126, %v1125
      %v1220 = vpack.c.b16 %v1128, %v1127
      %v1221 = vpack.c.b16 %v1130, %v1129
      %v1222 = vpack.c.b16 %v1132, %v1131
      %v1223 = vpack.c.b16 %v1134, %v1133
      %v1224 = vpack.c.b16 %v1136, %v1135
      %v1225 = vpack.c.b16 %v1138, %v1137
      %v1226 = vpack.c.b16 %v1140, %v1139
      %v1227 = vpack.c.b16 %v1142, %v1141
      %v1228 = vpack.c.b16 %v1144, %v1143
      %v1229 = vpack.c.b16 %v1146, %v1145
      %v1230 = vpack.c.b16 %v1148, %v1147
      %v1231 = vpack.c.b16 %v1150, %v1149
      %v1232 = vpack.c.b16 %v1152, %v1151
      %v1233 = vpack.c.b16 %v1154, %v1153
      %v1234 = vpack.c.b16 %v1156, %v1155
      %v1235 = vpack.c.b16 %v1158, %v1157
      %v1236 = vpack.c.b16 %v1160, %v1159
      %v1237 = vpack.c.b16 %v1162, %v1161
      %v1238 = vpack.c.b16 %v1164, %v1163
      %v1239 = vpack.c.b16 %v1166, %v1165
      %v1240 = vpack.c.b16 %v1168, %v1167
      %v1241 = vpack.c.b16 %v1170, %v1169
      %v1242 = vpack.c.b16 %v1172, %v1171
      %v1243 = vpack.c.b16 %v1174, %v1173
      %v1244 = vpack.c.b16 %v1176, %v1175
      %v1245 = vpack.c.b16 %v1178, %v1177
      %v1246 = vpack.c.b16 %v1180, %v1179
      %v1247 = vpack.c.b16 %v1182, %v1181
      %v1248 = vpack.c.b16 %v1184, %v1183
      %1313 = vmatprep.subr.bf16.mxu0 0
      %1314 = vmatpush1.bf16.msra.mxu0 %v1192
      %1315 = vmatprep.subr.bf16.mxu0 0
      %1316 = vmatpush1.bf16.msra.mxu0 %v1191
      %1317 = vmatprep.subr.bf16.mxu0 0
      %1318 = vmatpush1.bf16.msra.mxu0 %v1190
      %1319 = vmatprep.subr.bf16.mxu0 0
      %1320 = vmatpush1.bf16.msra.mxu0 %v1189
      %1321 = vmatprep.subr.bf16.mxu0 0
      %1322 = vmatpush1.bf16.msra.mxu0 %v1188
      %1323 = vmatprep.subr.bf16.mxu0 0
      %1324 = vmatpush1.bf16.msra.mxu0 %v1187
      %1325 = vmatprep.subr.bf16.mxu0 0
      %1326 = vmatpush1.bf16.msra.mxu0 %v1186
      %1327 = vmatprep.subr.bf16.mxu0 0
      %1328 = vmatpush1.bf16.msra.mxu0 %v1185
      %1329 = vmatprep.subr.bf16.mxu0 0
      %1330 = vmatpush2.bf16.msra.mxu0 %v1200
      %1331 = vmatprep.subr.bf16.mxu0 0
      %1332 = vmatpush2.bf16.msra.mxu0 %v1199
      %1333 = vmatprep.subr.bf16.mxu0 0
      %1334 = vmatpush2.bf16.msra.mxu0 %v1198
      %1335 = vmatprep.subr.bf16.mxu0 0
      %1336 = vmatpush2.bf16.msra.mxu0 %v1197
      %1337 = vmatprep.subr.bf16.mxu0 0
      %1338 = vmatpush2.bf16.msra.mxu0 %v1196
      %1339 = vmatprep.subr.bf16.mxu0 0
      %1340 = vmatpush2.bf16.msra.mxu0 %v1195
      %1341 = vmatprep.subr.bf16.mxu0 0
      %1342 = vmatpush2.bf16.msra.mxu0 %v1194
      %1343 = vmatprep.subr.bf16.mxu0 0
      %1344 = vmatpush2.bf16.msra.mxu0 %v1193
      %1345 = vmatprep.mubr.bf16.mxu0 %v916
      %1346 = vmatmul.mubr.bf16.gmra.mxu0 %v915
      %v1347 = vpop.f32.mrf.mxu0
      %v1348 = vadd.f32 %v927, %v1347
      %v1349 = vpop.f32.mrf.mxu0
      %v1350 = vpop.f32.mrf.mxu0
      %v1351 = vpop.f32.mrf.mxu0
      %1352 = vdwg.mxu0
      %1353 = vmatprep.subr.bf16.mxu0 0
      %1354 = vmatpush1.bf16.msra.mxu0 %v1208
      %1355 = vmatprep.subr.bf16.mxu0 0
      %1356 = vmatpush1.bf16.msra.mxu0 %v1207
      %1357 = vmatprep.subr.bf16.mxu0 0
      %1358 = vmatpush1.bf16.msra.mxu0 %v1206
      %1359 = vmatprep.subr.bf16.mxu0 0
      %1360 = vmatpush1.bf16.msra.mxu0 %v1205
      %1361 = vmatprep.subr.bf16.mxu0 0
      %1362 = vmatpush1.bf16.msra.mxu0 %v1204
      %1363 = vmatprep.subr.bf16.mxu0 0
      %1364 = vmatpush1.bf16.msra.mxu0 %v1203
      %1365 = vmatprep.subr.bf16.mxu0 0
      %1366 = vmatpush1.bf16.msra.mxu0 %v1202
      %1367 = vmatprep.subr.bf16.mxu0 0
      %1368 = vmatpush1.bf16.msra.mxu0 %v1201
      %1369 = vmatprep.subr.bf16.mxu0 0
      %1370 = vmatpush2.bf16.msra.mxu0 %v1216
      %1371 = vmatprep.subr.bf16.mxu0 0
      %1372 = vmatpush2.bf16.msra.mxu0 %v1215
      %1373 = vmatprep.subr.bf16.mxu0 0
      %1374 = vmatpush2.bf16.msra.mxu0 %v1214
      %1375 = vmatprep.subr.bf16.mxu0 0
      %1376 = vmatpush2.bf16.msra.mxu0 %v1213
      %1377 = vmatprep.subr.bf16.mxu0 0
      %1378 = vmatpush2.bf16.msra.mxu0 %v1212
      %1379 = vmatprep.subr.bf16.mxu0 0
      %1380 = vmatpush2.bf16.msra.mxu0 %v1211
      %1381 = vmatprep.subr.bf16.mxu0 0
      %1382 = vmatpush2.bf16.msra.mxu0 %v1210
      %1383 = vmatprep.subr.bf16.mxu0 0
      %1384 = vmatpush2.bf16.msra.mxu0 %v1209
      %1385 = vmatprep.mubr.bf16.mxu0 %v918
      %1386 = vmatmul.mubr.bf16.gmra.mxu0 %v917
      %v1387 = vpop.f32.mrf.mxu0
      %v1388 = vadd.f32 %v1348, %v1387
      %v1389 = vpop.f32.mrf.mxu0
      %v1390 = vpop.f32.mrf.mxu0
      %v1391 = vpop.f32.mrf.mxu0
      %1392 = vdwg.mxu0
      %1393 = vmatprep.subr.bf16.mxu0 0
      %1394 = vmatpush1.bf16.msra.mxu0 %v1224
      %1395 = vmatprep.subr.bf16.mxu0 0
      %1396 = vmatpush1.bf16.msra.mxu0 %v1223
      %1397 = vmatprep.subr.bf16.mxu0 0
      %1398 = vmatpush1.bf16.msra.mxu0 %v1222
      %1399 = vmatprep.subr.bf16.mxu0 0
      %1400 = vmatpush1.bf16.msra.mxu0 %v1221
      %1401 = vmatprep.subr.bf16.mxu0 0
      %1402 = vmatpush1.bf16.msra.mxu0 %v1220
      %1403 = vmatprep.subr.bf16.mxu0 0
      %1404 = vmatpush1.bf16.msra.mxu0 %v1219
      %1405 = vmatprep.subr.bf16.mxu0 0
      %1406 = vmatpush1.bf16.msra.mxu0 %v1218
      %1407 = vmatprep.subr.bf16.mxu0 0
      %1408 = vmatpush1.bf16.msra.mxu0 %v1217
      %1409 = vmatprep.subr.bf16.mxu0 0
      %1410 = vmatpush2.bf16.msra.mxu0 %v1232
      %1411 = vmatprep.subr.bf16.mxu0 0
      %1412 = vmatpush2.bf16.msra.mxu0 %v1231
      %1413 = vmatprep.subr.bf16.mxu0 0
      %1414 = vmatpush2.bf16.msra.mxu0 %v1230
      %1415 = vmatprep.subr.bf16.mxu0 0
      %1416 = vmatpush2.bf16.msra.mxu0 %v1229
      %1417 = vmatprep.subr.bf16.mxu0 0
      %1418 = vmatpush2.bf16.msra.mxu0 %v1228
      %1419 = vmatprep.subr.bf16.mxu0 0
      %1420 = vmatpush2.bf16.msra.mxu0 %v1227
      %1421 = vmatprep.subr.bf16.mxu0 0
      %1422 = vmatpush2.bf16.msra.mxu0 %v1226
      %1423 = vmatprep.subr.bf16.mxu0 0
      %1424 = vmatpush2.bf16.msra.mxu0 %v1225
      %1425 = vmatprep.mubr.bf16.mxu0 %v920
      %1426 = vmatmul.mubr.bf16.gmra.mxu0 %v919
      %v1427 = vpop.f32.mrf.mxu0
      %v1428 = vadd.f32 %v1388, %v1427
      %v1429 = vpop.f32.mrf.mxu0
      %v1430 = vpop.f32.mrf.mxu0
      %v1431 = vpop.f32.mrf.mxu0
      %1432 = vdwg.mxu0
      %1433 = vmatprep.subr.bf16.mxu0 0
      %1434 = vmatpush1.bf16.msra.mxu0 %v1240
      %1435 = vmatprep.subr.bf16.mxu0 0
      %1436 = vmatpush1.bf16.msra.mxu0 %v1239
      %1437 = vmatprep.subr.bf16.mxu0 0
      %1438 = vmatpush1.bf16.msra.mxu0 %v1238
      %1439 = vmatprep.subr.bf16.mxu0 0
      %1440 = vmatpush1.bf16.msra.mxu0 %v1237
      %1441 = vmatprep.subr.bf16.mxu0 0
      %1442 = vmatpush1.bf16.msra.mxu0 %v1236
      %1443 = vmatprep.subr.bf16.mxu0 0
      %1444 = vmatpush1.bf16.msra.mxu0 %v1235
      %1445 = vmatprep.subr.bf16.mxu0 0
      %1446 = vmatpush1.bf16.msra.mxu0 %v1234
      %1447 = vmatprep.subr.bf16.mxu0 0
      %1448 = vmatpush1.bf16.msra.mxu0 %v1233
      %1449 = vmatprep.subr.bf16.mxu0 0
      %1450 = vmatpush2.bf16.msra.mxu0 %v1248
      %1451 = vmatprep.subr.bf16.mxu0 0
      %1452 = vmatpush2.bf16.msra.mxu0 %v1247
      %1453 = vmatprep.subr.bf16.mxu0 0
      %1454 = vmatpush2.bf16.msra.mxu0 %v1246
      %1455 = vmatprep.subr.bf16.mxu0 0
      %1456 = vmatpush2.bf16.msra.mxu0 %v1245
      %1457 = vmatprep.subr.bf16.mxu0 0
      %1458 = vmatpush2.bf16.msra.mxu0 %v1244
      %1459 = vmatprep.subr.bf16.mxu0 0
      %1460 = vmatpush2.bf16.msra.mxu0 %v1243
      %1461 = vmatprep.subr.bf16.mxu0 0
      %1462 = vmatpush2.bf16.msra.mxu0 %v1242
      %1463 = vmatprep.subr.bf16.mxu0 0
      %1464 = vmatpush2.bf16.msra.mxu0 %v1241
      %1465 = vmatprep.mubr.bf16.mxu0 %v922
      %1466 = vmatmul.mubr.bf16.gmra.mxu0 %v921
      %v1467 = vpop.f32.mrf.mxu0
      %v1468 = vadd.f32 %v1428, %v1467
      %v1469 = vpop.f32.mrf.mxu0
      %v1470 = vpop.f32.mrf.mxu0
      %v1471 = vpop.f32.mrf.mxu0
      %1472 = vdwg.mxu0
      %v1473 = vld [vmem:[%s4] sm:$0x1f]
      %v1474 = vadd.f32 %v1468, %v1473
      %v1475 = vld [vmem:[%s9] sm:$0x1]
      %v1476 = vld [vmem:[%s10] sm:$0x1]
      %vm1477 = vcmask 520192
      %v1478 = vsel %vm1477, %v1474, 0.0
      %1479 = vadd.xlane.f32.xlu0 %v1478
      %v1480 = vpop.xlane.xlu0 %1479
      %v1481 = vrcp.pop 64.0
      %v1482 = vmul.f32 %v1480, %v1481
      %v1483 = vsub.f32 %v1474, %v1482
      %v1484 = vmul.f32 %v1483, %v1483
      %v1485 = vsel %vm1477, %v1484, 0.0
      %1486 = vadd.xlane.f32.xlu0 %v1485
      %v1487 = vpop.xlane.xlu0 %1486
      %v1488 = vmul.f32 %v1487, %v1481
      %v1489 = vadd.f32 %v1488, 1e-06
      %v1490 = vrsqrt.pop %v1489
      %v1491 = vmul.f32 %v1483, %v1490
      %v1493 = vlaneseq
      %v1494 = vshrl.u32 %v1493, 7
      %v1495 = vsub.s32 0, %v1494
      %v1496 = vrot.slane %v1475, %v1495
      %v1498 = vmul.f32 %v1491, %v1496
      %v1500 = vlaneseq
      %v1501 = vshrl.u32 %v1500, 7
      %v1502 = vsub.s32 0, %v1501
      %v1503 = vrot.slane %v1476, %v1502
      %v1505 = vadd.f32 %v1498, %v1503
      %v1506 = vld [vmem:[%s5] sm:$0xff]
      %v1507 = vld [vmem:[%s5 + $0x8] sm:$0xff]
      %v1508 = vld [vmem:[%s5 + $0x10] sm:$0xff]
      %v1509 = vld [vmem:[%s5 + $0x18] sm:$0xff]
      %v1510 = vld [vmem:[%s5 + $0x20] sm:$0xff]
      %v1511 = vld [vmem:[%s5 + $0x28] sm:$0xff]
      %v1512 = vld [vmem:[%s5 + $0x30] sm:$0xff]
      %v1513 = vld [vmem:[%s5 + $0x38] sm:$0xff]
      %v1514 = vld [vmem:[%s6] sm:$0x3]
      %v1515 = vpack.c.bf16 %v1505, %v1505
      %v1517 = vlaneseq
      %v1518 = vshrl.u32 %v1517, 7
      %v1519 = vsub.s32 0, %v1518
      %v1520 = vrot.slane %v1514, %v1519
      %v1521 = vlaneseq
      %v1522 = vshrl.u32 %v1521, 7
      %v1523 = vsub.s32 1, %v1522
      %v1524 = vrot.slane %v1514, %v1523
      %v1535 = vunpack.c.l.b16 %v1506
      %v1536 = vunpack.c.h.b16 %v1506
      %v1537 = vunpack.c.l.b16 %v1507
      %v1538 = vunpack.c.h.b16 %v1507
      %v1539 = vunpack.c.l.b16 %v1508
      %v1540 = vunpack.c.h.b16 %v1508
      %v1541 = vunpack.c.l.b16 %v1509
      %v1542 = vunpack.c.h.b16 %v1509
      %v1543 = vunpack.c.l.b16 %v1510
      %v1544 = vunpack.c.h.b16 %v1510
      %v1545 = vunpack.c.l.b16 %v1511
      %v1546 = vunpack.c.h.b16 %v1511
      %v1547 = vunpack.c.l.b16 %v1512
      %v1548 = vunpack.c.h.b16 %v1512
      %v1549 = vunpack.c.l.b16 %v1513
      %v1550 = vunpack.c.h.b16 %v1513
      %v1551 = vpack.c.b16 %v1537, %v1535
      %v1552 = vpack.c.b16 %v1538, %v1536
      %v1553 = vpack.c.b16 %v1541, %v1539
      %v1554 = vpack.c.b16 %v1542, %v1540
      %v1555 = vpack.c.b16 %v1545, %v1543
      %v1556 = vpack.c.b16 %v1546, %v1544
      %v1557 = vpack.c.b16 %v1549, %v1547
      %v1558 = vpack.c.b16 %v1550, %v1548
      %vm1567 = vcmask 523264
      %v1569 = vsel %vm1567, %v1515, 0
      %1571 = vmatprep.subr.bf16.mxu0 0
      %1572 = vmatpush1.bf16.msra.mxu0 0
      %1573 = vmatprep.subr.bf16.mxu0 0
      %1574 = vmatpush1.bf16.msra.mxu0 0
      %1575 = vmatprep.subr.bf16.mxu0 0
      %1576 = vmatpush1.bf16.msra.mxu0 0
      %1577 = vmatprep.subr.bf16.mxu0 0
      %1578 = vmatpush1.bf16.msra.mxu0 0
      %1579 = vmatprep.subr.bf16.mxu0 %v1558
      %1580 = vmatpush1.bf16.msra.mxu0 %v1557
      %1581 = vmatprep.subr.bf16.mxu0 %v1556
      %1582 = vmatpush1.bf16.msra.mxu0 %v1555
      %1583 = vmatprep.subr.bf16.mxu0 %v1554
      %1584 = vmatpush1.bf16.msra.mxu0 %v1553
      %1585 = vmatprep.subr.bf16.mxu0 %v1552
      %1586 = vmatpush1.bf16.msra.mxu0 %v1551
      %1587 = vmatprep.subr.bf16.mxu0 0
      %1588 = vmatpush2.bf16.msra.mxu0 0
      %1589 = vmatprep.subr.bf16.mxu0 0
      %1590 = vmatpush2.bf16.msra.mxu0 0
      %1591 = vmatprep.subr.bf16.mxu0 0
      %1592 = vmatpush2.bf16.msra.mxu0 0
      %1593 = vmatprep.subr.bf16.mxu0 0
      %1594 = vmatpush2.bf16.msra.mxu0 0
      %1595 = vmatprep.subr.bf16.mxu0 0
      %1596 = vmatpush2.bf16.msra.mxu0 0
      %1597 = vmatprep.subr.bf16.mxu0 0
      %1598 = vmatpush2.bf16.msra.mxu0 0
      %1599 = vmatprep.subr.bf16.mxu0 0
      %1600 = vmatpush2.bf16.msra.mxu0 0
      %1601 = vmatprep.subr.bf16.mxu0 0
      %1602 = vmatpush2.bf16.msra.mxu0 0
      %1603 = vmatprep.mubr.bf16.mxu0 0
      %1604 = vmatmul.mubr.bf16.gmra.mxu0 %v1569
      %v1605 = vpop.f32.mrf.mxu0
      %v1606 = vadd.f32 %v1520, %v1605
      %v1607 = vpop.f32.mrf.mxu0
      %v1608 = vadd.f32 %v1524, %v1607
      %v1609 = vpop.f32.mrf.mxu0
      %v1610 = vpop.f32.mrf.mxu0
      %1611 = vdwg.mxu0
      %v1612 = vld [vmem:[%s7] sm:$0xf]
      %v1613 = vld [vmem:[%s7 + $0x4] sm:$0xf]
      %v1614 = vld [vmem:[%s7 + $0x8] sm:$0xf]
      %v1615 = vld [vmem:[%s7 + $0xc] sm:$0xf]
      %v1616 = vld [vmem:[%s7 + $0x10] sm:$0xf]
      %v1617 = vld [vmem:[%s7 + $0x14] sm:$0xf]
      %v1618 = vld [vmem:[%s7 + $0x18] sm:$0xf]
      %v1619 = vld [vmem:[%s7 + $0x1c] sm:$0xf]
      %v1620 = vld [vmem:[%s8] sm:$0x1]
      %v1621 = vpack.c.bf16 %v1606, %v1606
      %v1622 = vpack.c.bf16 %v1608, %v1608
      %1624 = vrot.lane.b32.xlu0 %v1621, 64
      %v1625 = vpop.permute.xlu0 %1624
      %vm1626 = vcmask 261120
      %v1628 = vsel %vm1626, %v1621, 0
      %v1631 = vsel %vm1626, %v1625, 0
      %1633 = vmatprep.subr.bf16.mxu0 0
      %1634 = vmatpush1.bf16.xpose.msra.mxu0 0
      %1635 = vmatprep.subr.bf16.mxu0 0
      %1636 = vmatpush1.bf16.xpose.msra.mxu0 0
      %1637 = vmatprep.subr.bf16.mxu0 0
      %1638 = vmatpush1.bf16.xpose.msra.mxu0 0
      %1639 = vmatprep.subr.bf16.mxu0 0
      %1640 = vmatpush1.bf16.xpose.msra.mxu0 0
      %1641 = vmatprep.subr.bf16.mxu0 0
      %1642 = vmatpush1.bf16.xpose.msra.mxu0 0
      %1643 = vmatprep.subr.bf16.mxu0 0
      %1644 = vmatpush1.bf16.xpose.msra.mxu0 0
      %1645 = vmatprep.subr.bf16.mxu0 0
      %1646 = vmatpush1.bf16.xpose.msra.mxu0 0
      %1647 = vmatprep.subr.bf16.mxu0 0
      %1648 = vmatpush1.bf16.xpose.msra.mxu0 %v1631
      %1649 = vmatprep.subr.bf16.mxu0 0
      %1650 = vmatpush2.bf16.xpose.msra.mxu0 0
      %1651 = vmatprep.subr.bf16.mxu0 0
      %1652 = vmatpush2.bf16.xpose.msra.mxu0 0
      %1653 = vmatprep.subr.bf16.mxu0 0
      %1654 = vmatpush2.bf16.xpose.msra.mxu0 0
      %1655 = vmatprep.subr.bf16.mxu0 0
      %1656 = vmatpush2.bf16.xpose.msra.mxu0 0
      %1657 = vmatprep.subr.bf16.mxu0 0
      %1658 = vmatpush2.bf16.xpose.msra.mxu0 0
      %1659 = vmatprep.subr.bf16.mxu0 0
      %1660 = vmatpush2.bf16.xpose.msra.mxu0 0
      %1661 = vmatprep.subr.bf16.mxu0 0
      %1662 = vmatpush2.bf16.xpose.msra.mxu0 0
      %1663 = vmatprep.subr.bf16.mxu0 0
      %1664 = vmatpush2.bf16.xpose.msra.mxu0 0
      %1665 = vmatprep.mubr.bf16.mxu0 0
      %1666 = vmatmul.mubr.bf16.gmra.mxu0 %v1628
      %v1667 = vpop.f32.mrf.mxu0
      %v1668 = vadd.f32 0.0, %v1667
      %v1669 = vpop.f32.mrf.mxu0
      %v1670 = vpop.f32.mrf.mxu0
      %v1671 = vpop.f32.mrf.mxu0
      %1672 = vdwg.mxu0
      %v1673 = vmul.f32 %v1668, 0.17677669
      %vm1674 = vcmask 36864
      %v1675 = vsel %vm1674, %v1673, -inf
      %1676 = vmax.xlane.f32.xlu0 %v1675
      %v1677 = vpop.xlane.xlu0 %1676
      %v1678 = vsub.f32 %v1673, %v1677
      %v1679 = vmul.f32 %v1678, 1.442695
      %v1680 = vpow.pop %v1679
      %v1681 = vsel %vm1674, %v1680, 0.0
      %1682 = vadd.xlane.f32.xlu0 %v1681
      %v1683 = vpop.xlane.xlu0 %1682
      %v1684 = vrcp.pop %v1683
      %v1685 = vmul.f32 %v1680, %v1684
      %v1686 = vpack.c.bf16 %v1685, %v1685
      %vm1687 = vcmask 39936
      %v1689 = vsel %vm1687, %v1686, 0
      %vm1691 = vcmask 1041408
      %vm1692 = vcmask 1042432
      %v1693 = vsel %vm1691, 4294967295, 65535
      %v1694 = vsel %vm1692, %v1693, 0
      %v1696 = vand.u32 %v1622, %v1694
      %1698 = vmatprep.subr.bf16.mxu0 0
      %1699 = vmatpush1.bf16.msra.mxu0 0
      %1700 = vmatprep.subr.bf16.mxu0 0
      %1701 = vmatpush1.bf16.msra.mxu0 0
      %1702 = vmatprep.subr.bf16.mxu0 0
      %1703 = vmatpush1.bf16.msra.mxu0 0
      %1704 = vmatprep.subr.bf16.mxu0 0
      %1705 = vmatpush1.bf16.msra.mxu0 0
      %1706 = vmatprep.subr.bf16.mxu0 0
      %1707 = vmatpush1.bf16.msra.mxu0 0
      %1708 = vmatprep.subr.bf16.mxu0 0
      %1709 = vmatpush1.bf16.msra.mxu0 0
      %1710 = vmatprep.subr.bf16.mxu0 0
      %1711 = vmatpush1.bf16.msra.mxu0 0
      %1712 = vmatprep.subr.bf16.mxu0 0
      %1713 = vmatpush1.bf16.msra.mxu0 %v1696
      %1714 = vmatprep.subr.bf16.mxu0 0
      %1715 = vmatpush2.bf16.msra.mxu0 0
      %1716 = vmatprep.subr.bf16.mxu0 0
      %1717 = vmatpush2.bf16.msra.mxu0 0
      %1718 = vmatprep.subr.bf16.mxu0 0
      %1719 = vmatpush2.bf16.msra.mxu0 0
      %1720 = vmatprep.subr.bf16.mxu0 0
      %1721 = vmatpush2.bf16.msra.mxu0 0
      %1722 = vmatprep.subr.bf16.mxu0 0
      %1723 = vmatpush2.bf16.msra.mxu0 0
      %1724 = vmatprep.subr.bf16.mxu0 0
      %1725 = vmatpush2.bf16.msra.mxu0 0
      %1726 = vmatprep.subr.bf16.mxu0 0
      %1727 = vmatpush2.bf16.msra.mxu0 0
      %1728 = vmatprep.subr.bf16.mxu0 0
      %1729 = vmatpush2.bf16.msra.mxu0 0
      %1730 = vmatprep.mubr.bf16.mxu0 0
      %1731 = vmatmul.mubr.bf16.gmra.mxu0 %v1689
      %v1732 = vpop.f32.mrf.mxu0
      %v1733 = vadd.f32 0.0, %v1732
      %v1734 = vpop.f32.mrf.mxu0
      %v1735 = vpop.f32.mrf.mxu0
      %v1736 = vpop.f32.mrf.mxu0
      %1737 = vdwg.mxu0
      %v1738 = vpack.c.bf16 %v1733, %v1733
      %v1743 = vunpack.c.l.b16 %v1612
      %v1744 = vunpack.c.l.b16 %v1613
      %v1745 = vunpack.c.l.b16 %v1614
      %v1746 = vunpack.c.l.b16 %v1615
      %v1747 = vpack.c.b16 %v1744, %v1743
      %v1748 = vpack.c.b16 %v1746, %v1745
      %v1752 = vsel %vm1626, %v1738, 0
      %1754 = vmatprep.subr.bf16.mxu0 0
      %1755 = vmatpush1.bf16.msra.mxu0 0
      %1756 = vmatprep.subr.bf16.mxu0 0
      %1757 = vmatpush1.bf16.msra.mxu0 0
      %1758 = vmatprep.subr.bf16.mxu0 0
      %1759 = vmatpush1.bf16.msra.mxu0 0
      %1760 = vmatprep.subr.bf16.mxu0 0
      %1761 = vmatpush1.bf16.msra.mxu0 0
      %1762 = vmatprep.subr.bf16.mxu0 0
      %1763 = vmatpush1.bf16.msra.mxu0 0
      %1764 = vmatprep.subr.bf16.mxu0 0
      %1765 = vmatpush1.bf16.msra.mxu0 0
      %1766 = vmatprep.subr.bf16.mxu0 0
      %1767 = vmatpush1.bf16.msra.mxu0 %v1748
      %1768 = vmatprep.subr.bf16.mxu0 0
      %1769 = vmatpush1.bf16.msra.mxu0 %v1747
      %1770 = vmatprep.subr.bf16.mxu0 0
      %1771 = vmatpush2.bf16.msra.mxu0 0
      %1772 = vmatprep.subr.bf16.mxu0 0
      %1773 = vmatpush2.bf16.msra.mxu0 0
      %1774 = vmatprep.subr.bf16.mxu0 0
      %1775 = vmatpush2.bf16.msra.mxu0 0
      %1776 = vmatprep.subr.bf16.mxu0 0
      %1777 = vmatpush2.bf16.msra.mxu0 0
      %1778 = vmatprep.subr.bf16.mxu0 0
      %1779 = vmatpush2.bf16.msra.mxu0 0
      %1780 = vmatprep.subr.bf16.mxu0 0
      %1781 = vmatpush2.bf16.msra.mxu0 0
      %1782 = vmatprep.subr.bf16.mxu0 0
      %1783 = vmatpush2.bf16.msra.mxu0 0
      %1784 = vmatprep.subr.bf16.mxu0 0
      %1785 = vmatpush2.bf16.msra.mxu0 0
      %1786 = vmatprep.mubr.bf16.mxu0 0
      %1787 = vmatmul.mubr.bf16.gmra.mxu0 %v1752
      %v1788 = vpop.f32.mrf.mxu0
      %v1789 = vadd.f32 0.0, %v1788
      %v1790 = vpop.f32.mrf.mxu0
      %v1791 = vpop.f32.mrf.mxu0
      %v1792 = vpop.f32.mrf.mxu0
      %1793 = vdwg.mxu0
      %v1795 = vlaneseq
      %v1796 = vshrl.u32 %v1795, 7
      %v1797 = vsub.s32 0, %v1796
      %v1798 = vrot.slane %v1620, %v1797
      %v1800 = vadd.f32 %v1798, %v1789
      %1801 = vrot.lane.b32.xlu0 %v1621, 96
      %v1802 = vpop.permute.xlu0 %1801
      %1803 = vrot.lane.b32.xlu0 %v1621, 32
      %v1804 = vpop.permute.xlu0 %1803
      %v1806 = vsel %vm1626, %v1802, 0
      %v1809 = vsel %vm1626, %v1804, 0
      %1811 = vmatprep.subr.bf16.mxu0 0
      %1812 = vmatpush1.bf16.xpose.msra.mxu0 0
      %1813 = vmatprep.subr.bf16.mxu0 0
      %1814 = vmatpush1.bf16.xpose.msra.mxu0 0
      %1815 = vmatprep.subr.bf16.mxu0 0
      %1816 = vmatpush1.bf16.xpose.msra.mxu0 0
      %1817 = vmatprep.subr.bf16.mxu0 0
      %1818 = vmatpush1.bf16.xpose.msra.mxu0 0
      %1819 = vmatprep.subr.bf16.mxu0 0
      %1820 = vmatpush1.bf16.xpose.msra.mxu0 0
      %1821 = vmatprep.subr.bf16.mxu0 0
      %1822 = vmatpush1.bf16.xpose.msra.mxu0 0
      %1823 = vmatprep.subr.bf16.mxu0 0
      %1824 = vmatpush1.bf16.xpose.msra.mxu0 0
      %1825 = vmatprep.subr.bf16.mxu0 0
      %1826 = vmatpush1.bf16.xpose.msra.mxu0 %v1809
      %1827 = vmatprep.subr.bf16.mxu0 0
      %1828 = vmatpush2.bf16.xpose.msra.mxu0 0
      %1829 = vmatprep.subr.bf16.mxu0 0
      %1830 = vmatpush2.bf16.xpose.msra.mxu0 0
      %1831 = vmatprep.subr.bf16.mxu0 0
      %1832 = vmatpush2.bf16.xpose.msra.mxu0 0
      %1833 = vmatprep.subr.bf16.mxu0 0
      %1834 = vmatpush2.bf16.xpose.msra.mxu0 0
      %1835 = vmatprep.subr.bf16.mxu0 0
      %1836 = vmatpush2.bf16.xpose.msra.mxu0 0
      %1837 = vmatprep.subr.bf16.mxu0 0
      %1838 = vmatpush2.bf16.xpose.msra.mxu0 0
      %1839 = vmatprep.subr.bf16.mxu0 0
      %1840 = vmatpush2.bf16.xpose.msra.mxu0 0
      %1841 = vmatprep.subr.bf16.mxu0 0
      %1842 = vmatpush2.bf16.xpose.msra.mxu0 0
      %1843 = vmatprep.mubr.bf16.mxu0 0
      %1844 = vmatmul.mubr.bf16.gmra.mxu0 %v1806
      %v1845 = vpop.f32.mrf.mxu0
      %v1846 = vadd.f32 0.0, %v1845
      %v1847 = vpop.f32.mrf.mxu0
      %v1848 = vpop.f32.mrf.mxu0
      %v1849 = vpop.f32.mrf.mxu0
      %1850 = vdwg.mxu0
      %v1851 = vmul.f32 %v1846, 0.17677669
      %v1852 = vsel %vm1674, %v1851, -inf
      %1853 = vmax.xlane.f32.xlu0 %v1852
      %v1854 = vpop.xlane.xlu0 %1853
      %v1855 = vsub.f32 %v1851, %v1854
      %v1856 = vmul.f32 %v1855, 1.442695
      %v1857 = vpow.pop %v1856
      %v1858 = vsel %vm1674, %v1857, 0.0
      %1859 = vadd.xlane.f32.xlu0 %v1858
      %v1860 = vpop.xlane.xlu0 %1859
      %v1861 = vrcp.pop %v1860
      %v1862 = vmul.f32 %v1857, %v1861
      %v1863 = vpack.c.bf16 %v1862, %v1862
      %1865 = vrot.lane.b32.xlu0 %v1622, 96
      %v1866 = vpop.permute.xlu0 %1865
      %v1868 = vsel %vm1687, %v1863, 0
      %v1871 = vand.u32 %v1866, %v1694
      %1873 = vmatprep.subr.bf16.mxu0 0
      %1874 = vmatpush1.bf16.msra.mxu0 0
      %1875 = vmatprep.subr.bf16.mxu0 0
      %1876 = vmatpush1.bf16.msra.mxu0 0
      %1877 = vmatprep.subr.bf16.mxu0 0
      %1878 = vmatpush1.bf16.msra.mxu0 0
      %1879 = vmatprep.subr.bf16.mxu0 0
      %1880 = vmatpush1.bf16.msra.mxu0 0
      %1881 = vmatprep.subr.bf16.mxu0 0
      %1882 = vmatpush1.bf16.msra.mxu0 0
      %1883 = vmatprep.subr.bf16.mxu0 0
      %1884 = vmatpush1.bf16.msra.mxu0 0
      %1885 = vmatprep.subr.bf16.mxu0 0
      %1886 = vmatpush1.bf16.msra.mxu0 0
      %1887 = vmatprep.subr.bf16.mxu0 0
      %1888 = vmatpush1.bf16.msra.mxu0 %v1871
      %1889 = vmatprep.subr.bf16.mxu0 0
      %1890 = vmatpush2.bf16.msra.mxu0 0
      %1891 = vmatprep.subr.bf16.mxu0 0
      %1892 = vmatpush2.bf16.msra.mxu0 0
      %1893 = vmatprep.subr.bf16.mxu0 0
      %1894 = vmatpush2.bf16.msra.mxu0 0
      %1895 = vmatprep.subr.bf16.mxu0 0
      %1896 = vmatpush2.bf16.msra.mxu0 0
      %1897 = vmatprep.subr.bf16.mxu0 0
      %1898 = vmatpush2.bf16.msra.mxu0 0
      %1899 = vmatprep.subr.bf16.mxu0 0
      %1900 = vmatpush2.bf16.msra.mxu0 0
      %1901 = vmatprep.subr.bf16.mxu0 0
      %1902 = vmatpush2.bf16.msra.mxu0 0
      %1903 = vmatprep.subr.bf16.mxu0 0
      %1904 = vmatpush2.bf16.msra.mxu0 0
      %1905 = vmatprep.mubr.bf16.mxu0 0
      %1906 = vmatmul.mubr.bf16.gmra.mxu0 %v1868
      %v1907 = vpop.f32.mrf.mxu0
      %v1908 = vadd.f32 0.0, %v1907
      %v1909 = vpop.f32.mrf.mxu0
      %v1910 = vpop.f32.mrf.mxu0
      %v1911 = vpop.f32.mrf.mxu0
      %1912 = vdwg.mxu0
      %v1913 = vpack.c.bf16 %v1908, %v1908
      %v1918 = vunpack.c.l.b16 %v1616
      %v1919 = vunpack.c.l.b16 %v1617
      %v1920 = vunpack.c.l.b16 %v1618
      %v1921 = vunpack.c.l.b16 %v1619
      %v1922 = vpack.c.b16 %v1919, %v1918
      %v1923 = vpack.c.b16 %v1921, %v1920
      %v1927 = vsel %vm1626, %v1913, 0
      %1929 = vmatprep.subr.bf16.mxu0 0
      %1930 = vmatpush1.bf16.msra.mxu0 0
      %1931 = vmatprep.subr.bf16.mxu0 0
      %1932 = vmatpush1.bf16.msra.mxu0 0
      %1933 = vmatprep.subr.bf16.mxu0 0
      %1934 = vmatpush1.bf16.msra.mxu0 0
      %1935 = vmatprep.subr.bf16.mxu0 0
      %1936 = vmatpush1.bf16.msra.mxu0 0
      %1937 = vmatprep.subr.bf16.mxu0 0
      %1938 = vmatpush1.bf16.msra.mxu0 0
      %1939 = vmatprep.subr.bf16.mxu0 0
      %1940 = vmatpush1.bf16.msra.mxu0 0
      %1941 = vmatprep.subr.bf16.mxu0 0
      %1942 = vmatpush1.bf16.msra.mxu0 %v1923
      %1943 = vmatprep.subr.bf16.mxu0 0
      %1944 = vmatpush1.bf16.msra.mxu0 %v1922
      %1945 = vmatprep.subr.bf16.mxu0 0
      %1946 = vmatpush2.bf16.msra.mxu0 0
      %1947 = vmatprep.subr.bf16.mxu0 0
      %1948 = vmatpush2.bf16.msra.mxu0 0
      %1949 = vmatprep.subr.bf16.mxu0 0
      %1950 = vmatpush2.bf16.msra.mxu0 0
      %1951 = vmatprep.subr.bf16.mxu0 0
      %1952 = vmatpush2.bf16.msra.mxu0 0
      %1953 = vmatprep.subr.bf16.mxu0 0
      %1954 = vmatpush2.bf16.msra.mxu0 0
      %1955 = vmatprep.subr.bf16.mxu0 0
      %1956 = vmatpush2.bf16.msra.mxu0 0
      %1957 = vmatprep.subr.bf16.mxu0 0
      %1958 = vmatpush2.bf16.msra.mxu0 0
      %1959 = vmatprep.subr.bf16.mxu0 0
      %1960 = vmatpush2.bf16.msra.mxu0 0
      %1961 = vmatprep.mubr.bf16.mxu0 0
      %1962 = vmatmul.mubr.bf16.gmra.mxu0 %v1927
      %v1963 = vpop.f32.mrf.mxu0
      %v1964 = vadd.f32 0.0, %v1963
      %v1965 = vpop.f32.mrf.mxu0
      %v1966 = vpop.f32.mrf.mxu0
      %v1967 = vpop.f32.mrf.mxu0
      %1968 = vdwg.mxu0
      %v1969 = vadd.f32 %v1800, %v1964
      %v1970 = vadd.f32 %v1474, %v1969
      %v1971 = vld [vmem:[%s11] sm:$0x1]
      %v1972 = vld [vmem:[%s12] sm:$0x1]
      %v1973 = vsel %vm1477, %v1970, 0.0
      %1974 = vadd.xlane.f32.xlu0 %v1973
      %v1975 = vpop.xlane.xlu0 %1974
      %v1976 = vmul.f32 %v1975, %v1481
      %v1977 = vsub.f32 %v1970, %v1976
      %v1978 = vmul.f32 %v1977, %v1977
      %v1979 = vsel %vm1477, %v1978, 0.0
      %1980 = vadd.xlane.f32.xlu0 %v1979
      %v1981 = vpop.xlane.xlu0 %1980
      %v1982 = vmul.f32 %v1981, %v1481
      %v1983 = vadd.f32 %v1982, 1e-06
      %v1984 = vrsqrt.pop %v1983
      %v1985 = vmul.f32 %v1977, %v1984
      %v1987 = vlaneseq
      %v1988 = vshrl.u32 %v1987, 7
      %v1989 = vsub.s32 0, %v1988
      %v1990 = vrot.slane %v1971, %v1989
      %v1992 = vmul.f32 %v1985, %v1990
      %v1994 = vlaneseq
      %v1995 = vshrl.u32 %v1994, 7
      %v1996 = vsub.s32 0, %v1995
      %v1997 = vrot.slane %v1972, %v1996
      %v1999 = vadd.f32 %v1992, %v1997
      %v2000 = vld [vmem:[%s13] sm:$0xff]
      %v2001 = vld [vmem:[%s13 + $0x8] sm:$0xff]
      %v2002 = vld [vmem:[%s13 + $0x10] sm:$0xff]
      %v2003 = vld [vmem:[%s13 + $0x18] sm:$0xff]
      %v2004 = vld [vmem:[%s13 + $0x20] sm:$0xff]
      %v2005 = vld [vmem:[%s13 + $0x28] sm:$0xff]
      %v2006 = vld [vmem:[%s13 + $0x30] sm:$0xff]
      %v2007 = vld [vmem:[%s13 + $0x38] sm:$0xff]
      %v2008 = vld [vmem:[%s14] sm:$0x3]
      %v2009 = vpack.c.bf16 %v1999, %v1999
      %v2011 = vlaneseq
      %v2012 = vshrl.u32 %v2011, 7
      %v2013 = vsub.s32 0, %v2012
      %v2014 = vrot.slane %v2008, %v2013
      %v2015 = vlaneseq
      %v2016 = vshrl.u32 %v2015, 7
      %v2017 = vsub.s32 1, %v2016
      %v2018 = vrot.slane %v2008, %v2017
      %v2029 = vunpack.c.l.b16 %v2000
      %v2030 = vunpack.c.h.b16 %v2000
      %v2031 = vunpack.c.l.b16 %v2001
      %v2032 = vunpack.c.h.b16 %v2001
      %v2033 = vunpack.c.l.b16 %v2002
      %v2034 = vunpack.c.h.b16 %v2002
      %v2035 = vunpack.c.l.b16 %v2003
      %v2036 = vunpack.c.h.b16 %v2003
      %v2037 = vunpack.c.l.b16 %v2004
      %v2038 = vunpack.c.h.b16 %v2004
      %v2039 = vunpack.c.l.b16 %v2005
      %v2040 = vunpack.c.h.b16 %v2005
      %v2041 = vunpack.c.l.b16 %v2006
      %v2042 = vunpack.c.h.b16 %v2006
      %v2043 = vunpack.c.l.b16 %v2007
      %v2044 = vunpack.c.h.b16 %v2007
      %v2045 = vpack.c.b16 %v2031, %v2029
      %v2046 = vpack.c.b16 %v2032, %v2030
      %v2047 = vpack.c.b16 %v2035, %v2033
      %v2048 = vpack.c.b16 %v2036, %v2034
      %v2049 = vpack.c.b16 %v2039, %v2037
      %v2050 = vpack.c.b16 %v2040, %v2038
      %v2051 = vpack.c.b16 %v2043, %v2041
      %v2052 = vpack.c.b16 %v2044, %v2042
      %v2062 = vsel %vm1567, %v2009, 0
      %2064 = vmatprep.subr.bf16.mxu0 0
      %2065 = vmatpush1.bf16.msra.mxu0 0
      %2066 = vmatprep.subr.bf16.mxu0 0
      %2067 = vmatpush1.bf16.msra.mxu0 0
      %2068 = vmatprep.subr.bf16.mxu0 0
      %2069 = vmatpush1.bf16.msra.mxu0 0
      %2070 = vmatprep.subr.bf16.mxu0 0
      %2071 = vmatpush1.bf16.msra.mxu0 0
      %2072 = vmatprep.subr.bf16.mxu0 %v2052
      %2073 = vmatpush1.bf16.msra.mxu0 %v2051
      %2074 = vmatprep.subr.bf16.mxu0 %v2050
      %2075 = vmatpush1.bf16.msra.mxu0 %v2049
      %2076 = vmatprep.subr.bf16.mxu0 %v2048
      %2077 = vmatpush1.bf16.msra.mxu0 %v2047
      %2078 = vmatprep.subr.bf16.mxu0 %v2046
      %2079 = vmatpush1.bf16.msra.mxu0 %v2045
      %2080 = vmatprep.subr.bf16.mxu0 0
      %2081 = vmatpush2.bf16.msra.mxu0 0
      %2082 = vmatprep.subr.bf16.mxu0 0
      %2083 = vmatpush2.bf16.msra.mxu0 0
      %2084 = vmatprep.subr.bf16.mxu0 0
      %2085 = vmatpush2.bf16.msra.mxu0 0
      %2086 = vmatprep.subr.bf16.mxu0 0
      %2087 = vmatpush2.bf16.msra.mxu0 0
      %2088 = vmatprep.subr.bf16.mxu0 0
      %2089 = vmatpush2.bf16.msra.mxu0 0
      %2090 = vmatprep.subr.bf16.mxu0 0
      %2091 = vmatpush2.bf16.msra.mxu0 0
      %2092 = vmatprep.subr.bf16.mxu0 0
      %2093 = vmatpush2.bf16.msra.mxu0 0
      %2094 = vmatprep.subr.bf16.mxu0 0
      %2095 = vmatpush2.bf16.msra.mxu0 0
      %2096 = vmatprep.mubr.bf16.mxu0 0
      %2097 = vmatmul.mubr.bf16.gmra.mxu0 %v2062
      %v2098 = vpop.f32.mrf.mxu0
      %v2099 = vadd.f32 %v2014, %v2098
      %v2100 = vpop.f32.mrf.mxu0
      %v2101 = vadd.f32 %v2018, %v2100
      %v2102 = vpop.f32.mrf.mxu0
      %v2103 = vpop.f32.mrf.mxu0
      %2104 = vdwg.mxu0
      %v2105 = vmul.f32 %v2099, 0.5
      %v2106 = vmul.f32 %v2101, 0.5
      %v2107 = vmul.f32 %v2099, 0.70710677
      %v2108 = vmul.f32 %v2101, 0.70710677
      %v2109 = verf.f32.pop %v2107
      %v2110 = verf.f32.pop %v2108
      %v2111 = vadd.f32 %v2109, 1.0
      %v2112 = vadd.f32 %v2110, 1.0
      %v2113 = vmul.f32 %v2105, %v2111
      %v2114 = vmul.f32 %v2106, %v2112
      %v2115 = vld [vmem:[%s15] sm:$0xf]
      %v2116 = vld [vmem:[%s15 + $0x4] sm:$0xf]
      %v2117 = vld [vmem:[%s15 + $0x8] sm:$0xf]
      %v2118 = vld [vmem:[%s15 + $0xc] sm:$0xf]
      %v2119 = vld [vmem:[%s15 + $0x10] sm:$0xf]
      %v2120 = vld [vmem:[%s15 + $0x14] sm:$0xf]
      %v2121 = vld [vmem:[%s15 + $0x18] sm:$0xf]
      %v2122 = vld [vmem:[%s15 + $0x1c] sm:$0xf]
      %v2123 = vld [vmem:[%s15 + $0x20] sm:$0xf]
      %v2124 = vld [vmem:[%s15 + $0x24] sm:$0xf]
      %v2125 = vld [vmem:[%s15 + $0x28] sm:$0xf]
      %v2126 = vld [vmem:[%s15 + $0x2c] sm:$0xf]
      %v2127 = vld [vmem:[%s15 + $0x30] sm:$0xf]
      %v2128 = vld [vmem:[%s15 + $0x34] sm:$0xf]
      %v2129 = vld [vmem:[%s15 + $0x38] sm:$0xf]
      %v2130 = vld [vmem:[%s15 + $0x3c] sm:$0xf]
      %v2131 = vld [vmem:[%s15 + $0x40] sm:$0xf]
      %v2132 = vld [vmem:[%s15 + $0x44] sm:$0xf]
      %v2133 = vld [vmem:[%s15 + $0x48] sm:$0xf]
      %v2134 = vld [vmem:[%s15 + $0x4c] sm:$0xf]
      %v2135 = vld [vmem:[%s15 + $0x50] sm:$0xf]
      %v2136 = vld [vmem:[%s15 + $0x54] sm:$0xf]
      %v2137 = vld [vmem:[%s15 + $0x58] sm:$0xf]
      %v2138 = vld [vmem:[%s15 + $0x5c] sm:$0xf]
      %v2139 = vld [vmem:[%s15 + $0x60] sm:$0xf]
      %v2140 = vld [vmem:[%s15 + $0x64] sm:$0xf]
      %v2141 = vld [vmem:[%s15 + $0x68] sm:$0xf]
      %v2142 = vld [vmem:[%s15 + $0x6c] sm:$0xf]
      %v2143 = vld [vmem:[%s15 + $0x70] sm:$0xf]
      %v2144 = vld [vmem:[%s15 + $0x74] sm:$0xf]
      %v2145 = vld [vmem:[%s15 + $0x78] sm:$0xf]
      %v2146 = vld [vmem:[%s15 + $0x7c] sm:$0xf]
      %v2147 = vld [vmem:[%s16] sm:$0x1]
      %v2148 = vpack.c.bf16 %v2113, %v2113
      %v2149 = vpack.c.bf16 %v2114, %v2114
      %v2151 = vlaneseq
      %v2152 = vshrl.u32 %v2151, 7
      %v2153 = vsub.s32 0, %v2152
      %v2154 = vrot.slane %v2147, %v2153
      %v2188 = vunpack.c.l.b16 %v2115
      %v2189 = vunpack.c.l.b16 %v2116
      %v2190 = vunpack.c.l.b16 %v2117
      %v2191 = vunpack.c.l.b16 %v2118
      %v2192 = vunpack.c.l.b16 %v2119
      %v2193 = vunpack.c.l.b16 %v2120
      %v2194 = vunpack.c.l.b16 %v2121
      %v2195 = vunpack.c.l.b16 %v2122
      %v2196 = vunpack.c.l.b16 %v2123
      %v2197 = vunpack.c.l.b16 %v2124
      %v2198 = vunpack.c.l.b16 %v2125
      %v2199 = vunpack.c.l.b16 %v2126
      %v2200 = vunpack.c.l.b16 %v2127
      %v2201 = vunpack.c.l.b16 %v2128
      %v2202 = vunpack.c.l.b16 %v2129
      %v2203 = vunpack.c.l.b16 %v2130
      %v2204 = vunpack.c.l.b16 %v2131
      %v2205 = vunpack.c.l.b16 %v2132
      %v2206 = vunpack.c.l.b16 %v2133
      %v2207 = vunpack.c.l.b16 %v2134
      %v2208 = vunpack.c.l.b16 %v2135
      %v2209 = vunpack.c.l.b16 %v2136
      %v2210 = vunpack.c.l.b16 %v2137
      %v2211 = vunpack.c.l.b16 %v2138
      %v2212 = vunpack.c.l.b16 %v2139
      %v2213 = vunpack.c.l.b16 %v2140
      %v2214 = vunpack.c.l.b16 %v2141
      %v2215 = vunpack.c.l.b16 %v2142
      %v2216 = vunpack.c.l.b16 %v2143
      %v2217 = vunpack.c.l.b16 %v2144
      %v2218 = vunpack.c.l.b16 %v2145
      %v2219 = vunpack.c.l.b16 %v2146
      %v2220 = vpack.c.b16 %v2189, %v2188
      %v2221 = vpack.c.b16 %v2191, %v2190
      %v2222 = vpack.c.b16 %v2193, %v2192
      %v2223 = vpack.c.b16 %v2195, %v2194
      %v2224 = vpack.c.b16 %v2197, %v2196
      %v2225 = vpack.c.b16 %v2199, %v2198
      %v2226 = vpack.c.b16 %v2201, %v2200
      %v2227 = vpack.c.b16 %v2203, %v2202
      %v2228 = vpack.c.b16 %v2205, %v2204
      %v2229 = vpack.c.b16 %v2207, %v2206
      %v2230 = vpack.c.b16 %v2209, %v2208
      %v2231 = vpack.c.b16 %v2211, %v2210
      %v2232 = vpack.c.b16 %v2213, %v2212
      %v2233 = vpack.c.b16 %v2215, %v2214
      %v2234 = vpack.c.b16 %v2217, %v2216
      %v2235 = vpack.c.b16 %v2219, %v2218
      %2252 = vmatprep.subr.bf16.mxu0 0
      %2253 = vmatpush1.bf16.msra.mxu0 %v2227
      %2254 = vmatprep.subr.bf16.mxu0 0
      %2255 = vmatpush1.bf16.msra.mxu0 %v2226
      %2256 = vmatprep.subr.bf16.mxu0 0
      %2257 = vmatpush1.bf16.msra.mxu0 %v2225
      %2258 = vmatprep.subr.bf16.mxu0 0
      %2259 = vmatpush1.bf16.msra.mxu0 %v2224
      %2260 = vmatprep.subr.bf16.mxu0 0
      %2261 = vmatpush1.bf16.msra.mxu0 %v2223
      %2262 = vmatprep.subr.bf16.mxu0 0
      %2263 = vmatpush1.bf16.msra.mxu0 %v2222
      %2264 = vmatprep.subr.bf16.mxu0 0
      %2265 = vmatpush1.bf16.msra.mxu0 %v2221
      %2266 = vmatprep.subr.bf16.mxu0 0
      %2267 = vmatpush1.bf16.msra.mxu0 %v2220
      %2268 = vmatprep.subr.bf16.mxu0 0
      %2269 = vmatpush2.bf16.msra.mxu0 %v2235
      %2270 = vmatprep.subr.bf16.mxu0 0
      %2271 = vmatpush2.bf16.msra.mxu0 %v2234
      %2272 = vmatprep.subr.bf16.mxu0 0
      %2273 = vmatpush2.bf16.msra.mxu0 %v2233
      %2274 = vmatprep.subr.bf16.mxu0 0
      %2275 = vmatpush2.bf16.msra.mxu0 %v2232
      %2276 = vmatprep.subr.bf16.mxu0 0
      %2277 = vmatpush2.bf16.msra.mxu0 %v2231
      %2278 = vmatprep.subr.bf16.mxu0 0
      %2279 = vmatpush2.bf16.msra.mxu0 %v2230
      %2280 = vmatprep.subr.bf16.mxu0 0
      %2281 = vmatpush2.bf16.msra.mxu0 %v2229
      %2282 = vmatprep.subr.bf16.mxu0 0
      %2283 = vmatpush2.bf16.msra.mxu0 %v2228
      %2284 = vmatprep.mubr.bf16.mxu0 %v2149
      %2285 = vmatmul.mubr.bf16.gmra.mxu0 %v2148
      %v2286 = vpop.f32.mrf.mxu0
      %v2287 = vadd.f32 %v2154, %v2286
      %v2288 = vpop.f32.mrf.mxu0
      %v2289 = vpop.f32.mrf.mxu0
      %v2290 = vpop.f32.mrf.mxu0
      %2291 = vdwg.mxu0
      %v2292 = vadd.f32 %v1970, %v2287
      %s2293 = scalar_lea.vmem %s9, 1
      %v2294 = vld [vmem:[%s2293] sm:$0x1]
      %s2295 = scalar_lea.vmem %s10, 1
      %v2296 = vld [vmem:[%s2295] sm:$0x1]
      %v2297 = vsel %vm1477, %v2292, 0.0
      %2298 = vadd.xlane.f32.xlu0 %v2297
      %v2299 = vpop.xlane.xlu0 %2298
      %v2300 = vmul.f32 %v2299, %v1481
      %v2301 = vsub.f32 %v2292, %v2300
      %v2302 = vmul.f32 %v2301, %v2301
      %v2303 = vsel %vm1477, %v2302, 0.0
      %2304 = vadd.xlane.f32.xlu0 %v2303
      %v2305 = vpop.xlane.xlu0 %2304
      %v2306 = vmul.f32 %v2305, %v1481
      %v2307 = vadd.f32 %v2306, 1e-06
      %v2308 = vrsqrt.pop %v2307
      %v2309 = vmul.f32 %v2301, %v2308
      %v2311 = vlaneseq
      %v2312 = vshrl.u32 %v2311, 7
      %v2313 = vsub.s32 0, %v2312
      %v2314 = vrot.slane %v2294, %v2313
      %v2316 = vmul.f32 %v2309, %v2314
      %v2318 = vlaneseq
      %v2319 = vshrl.u32 %v2318, 7
      %v2320 = vsub.s32 0, %v2319
      %v2321 = vrot.slane %v2296, %v2320
      %v2323 = vadd.f32 %v2316, %v2321
      %s2324 = scalar_lea.vmem %s5, 64
      %v2325 = vld [vmem:[%s2324] sm:$0xff]
      %v2326 = vld [vmem:[%s2324 + $0x8] sm:$0xff]
      %v2327 = vld [vmem:[%s2324 + $0x10] sm:$0xff]
      %v2328 = vld [vmem:[%s2324 + $0x18] sm:$0xff]
      %v2329 = vld [vmem:[%s2324 + $0x20] sm:$0xff]
      %v2330 = vld [vmem:[%s2324 + $0x28] sm:$0xff]
      %v2331 = vld [vmem:[%s2324 + $0x30] sm:$0xff]
      %v2332 = vld [vmem:[%s2324 + $0x38] sm:$0xff]
      %s2333 = scalar_lea.vmem %s6, 2
      %v2334 = vld [vmem:[%s2333] sm:$0x3]
      %v2335 = vpack.c.bf16 %v2323, %v2323
      %v2337 = vlaneseq
      %v2338 = vshrl.u32 %v2337, 7
      %v2339 = vsub.s32 0, %v2338
      %v2340 = vrot.slane %v2334, %v2339
      %v2341 = vlaneseq
      %v2342 = vshrl.u32 %v2341, 7
      %v2343 = vsub.s32 1, %v2342
      %v2344 = vrot.slane %v2334, %v2343
      %v2355 = vunpack.c.l.b16 %v2325
      %v2356 = vunpack.c.h.b16 %v2325
      %v2357 = vunpack.c.l.b16 %v2326
      %v2358 = vunpack.c.h.b16 %v2326
      %v2359 = vunpack.c.l.b16 %v2327
      %v2360 = vunpack.c.h.b16 %v2327
      %v2361 = vunpack.c.l.b16 %v2328
      %v2362 = vunpack.c.h.b16 %v2328
      %v2363 = vunpack.c.l.b16 %v2329
      %v2364 = vunpack.c.h.b16 %v2329
      %v2365 = vunpack.c.l.b16 %v2330
      %v2366 = vunpack.c.h.b16 %v2330
      %v2367 = vunpack.c.l.b16 %v2331
      %v2368 = vunpack.c.h.b16 %v2331
      %v2369 = vunpack.c.l.b16 %v2332
      %v2370 = vunpack.c.h.b16 %v2332
      %v2371 = vpack.c.b16 %v2357, %v2355
      %v2372 = vpack.c.b16 %v2358, %v2356
      %v2373 = vpack.c.b16 %v2361, %v2359
      %v2374 = vpack.c.b16 %v2362, %v2360
      %v2375 = vpack.c.b16 %v2365, %v2363
      %v2376 = vpack.c.b16 %v2366, %v2364
      %v2377 = vpack.c.b16 %v2369, %v2367
      %v2378 = vpack.c.b16 %v2370, %v2368
      %v2388 = vsel %vm1567, %v2335, 0
      %2390 = vmatprep.subr.bf16.mxu0 0
      %2391 = vmatpush1.bf16.msra.mxu0 0
      %2392 = vmatprep.subr.bf16.mxu0 0
      %2393 = vmatpush1.bf16.msra.mxu0 0
      %2394 = vmatprep.subr.bf16.mxu0 0
      %2395 = vmatpush1.bf16.msra.mxu0 0
      %2396 = vmatprep.subr.bf16.mxu0 0
      %2397 = vmatpush1.bf16.msra.mxu0 0
      %2398 = vmatprep.subr.bf16.mxu0 %v2378
      %2399 = vmatpush1.bf16.msra.mxu0 %v2377
      %2400 = vmatprep.subr.bf16.mxu0 %v2376
      %2401 = vmatpush1.bf16.msra.mxu0 %v2375
      %2402 = vmatprep.subr.bf16.mxu0 %v2374
      %2403 = vmatpush1.bf16.msra.mxu0 %v2373
      %2404 = vmatprep.subr.bf16.mxu0 %v2372
      %2405 = vmatpush1.bf16.msra.mxu0 %v2371
      %2406 = vmatprep.subr.bf16.mxu0 0
      %2407 = vmatpush2.bf16.msra.mxu0 0
      %2408 = vmatprep.subr.bf16.mxu0 0
      %2409 = vmatpush2.bf16.msra.mxu0 0
      %2410 = vmatprep.subr.bf16.mxu0 0
      %2411 = vmatpush2.bf16.msra.mxu0 0
      %2412 = vmatprep.subr.bf16.mxu0 0
      %2413 = vmatpush2.bf16.msra.mxu0 0
      %2414 = vmatprep.subr.bf16.mxu0 0
      %2415 = vmatpush2.bf16.msra.mxu0 0
      %2416 = vmatprep.subr.bf16.mxu0 0
      %2417 = vmatpush2.bf16.msra.mxu0 0
      %2418 = vmatprep.subr.bf16.mxu0 0
      %2419 = vmatpush2.bf16.msra.mxu0 0
      %2420 = vmatprep.subr.bf16.mxu0 0
      %2421 = vmatpush2.bf16.msra.mxu0 0
      %2422 = vmatprep.mubr.bf16.mxu0 0
      %2423 = vmatmul.mubr.bf16.gmra.mxu0 %v2388
      %v2424 = vpop.f32.mrf.mxu0
      %v2425 = vadd.f32 %v2340, %v2424
      %v2426 = vpop.f32.mrf.mxu0
      %v2427 = vadd.f32 %v2344, %v2426
      %v2428 = vpop.f32.mrf.mxu0
      %v2429 = vpop.f32.mrf.mxu0
      %2430 = vdwg.mxu0
      %s2431 = scalar_lea.vmem %s7, 32
      %v2432 = vld [vmem:[%s2431] sm:$0xf]
      %v2433 = vld [vmem:[%s2431 + $0x4] sm:$0xf]
      %v2434 = vld [vmem:[%s2431 + $0x8] sm:$0xf]
      %v2435 = vld [vmem:[%s2431 + $0xc] sm:$0xf]
      %v2436 = vld [vmem:[%s2431 + $0x10] sm:$0xf]
      %v2437 = vld [vmem:[%s2431 + $0x14] sm:$0xf]
      %v2438 = vld [vmem:[%s2431 + $0x18] sm:$0xf]
      %v2439 = vld [vmem:[%s2431 + $0x1c] sm:$0xf]
      %s2440 = scalar_lea.vmem %s8, 1
      %v2441 = vld [vmem:[%s2440] sm:$0x1]
      %v2442 = vpack.c.bf16 %v2425, %v2425
      %v2443 = vpack.c.bf16 %v2427, %v2427
      %2445 = vrot.lane.b32.xlu0 %v2442, 64
      %v2446 = vpop.permute.xlu0 %2445
      %v2448 = vsel %vm1626, %v2442, 0
      %v2451 = vsel %vm1626, %v2446, 0
      %2453 = vmatprep.subr.bf16.mxu0 0
      %2454 = vmatpush1.bf16.xpose.msra.mxu0 0
      %2455 = vmatprep.subr.bf16.mxu0 0
      %2456 = vmatpush1.bf16.xpose.msra.mxu0 0
      %2457 = vmatprep.subr.bf16.mxu0 0
      %2458 = vmatpush1.bf16.xpose.msra.mxu0 0
      %2459 = vmatprep.subr.bf16.mxu0 0
      %2460 = vmatpush1.bf16.xpose.msra.mxu0 0
      %2461 = vmatprep.subr.bf16.mxu0 0
      %2462 = vmatpush1.bf16.xpose.msra.mxu0 0
      %2463 = vmatprep.subr.bf16.mxu0 0
      %2464 = vmatpush1.bf16.xpose.msra.mxu0 0
      %2465 = vmatprep.subr.bf16.mxu0 0
      %2466 = vmatpush1.bf16.xpose.msra.mxu0 0
      %2467 = vmatprep.subr.bf16.mxu0 0
      %2468 = vmatpush1.bf16.xpose.msra.mxu0 %v2451
      %2469 = vmatprep.subr.bf16.mxu0 0
      %2470 = vmatpush2.bf16.xpose.msra.mxu0 0
      %2471 = vmatprep.subr.bf16.mxu0 0
      %2472 = vmatpush2.bf16.xpose.msra.mxu0 0
      %2473 = vmatprep.subr.bf16.mxu0 0
      %2474 = vmatpush2.bf16.xpose.msra.mxu0 0
      %2475 = vmatprep.subr.bf16.mxu0 0
      %2476 = vmatpush2.bf16.xpose.msra.mxu0 0
      %2477 = vmatprep.subr.bf16.mxu0 0
      %2478 = vmatpush2.bf16.xpose.msra.mxu0 0
      %2479 = vmatprep.subr.bf16.mxu0 0
      %2480 = vmatpush2.bf16.xpose.msra.mxu0 0
      %2481 = vmatprep.subr.bf16.mxu0 0
      %2482 = vmatpush2.bf16.xpose.msra.mxu0 0
      %2483 = vmatprep.subr.bf16.mxu0 0
      %2484 = vmatpush2.bf16.xpose.msra.mxu0 0
      %2485 = vmatprep.mubr.bf16.mxu0 0
      %2486 = vmatmul.mubr.bf16.gmra.mxu0 %v2448
      %v2487 = vpop.f32.mrf.mxu0
      %v2488 = vadd.f32 0.0, %v2487
      %v2489 = vpop.f32.mrf.mxu0
      %v2490 = vpop.f32.mrf.mxu0
      %v2491 = vpop.f32.mrf.mxu0
      %2492 = vdwg.mxu0
      %v2493 = vmul.f32 %v2488, 0.17677669
      %v2494 = vsel %vm1674, %v2493, -inf
      %2495 = vmax.xlane.f32.xlu0 %v2494
      %v2496 = vpop.xlane.xlu0 %2495
      %v2497 = vsub.f32 %v2493, %v2496
      %v2498 = vmul.f32 %v2497, 1.442695
      %v2499 = vpow.pop %v2498
      %v2500 = vsel %vm1674, %v2499, 0.0
      %2501 = vadd.xlane.f32.xlu0 %v2500
      %v2502 = vpop.xlane.xlu0 %2501
      %v2503 = vrcp.pop %v2502
      %v2504 = vmul.f32 %v2499, %v2503
      %v2505 = vpack.c.bf16 %v2504, %v2504
      %v2507 = vsel %vm1687, %v2505, 0
      %v2510 = vand.u32 %v2443, %v1694
      %2512 = vmatprep.subr.bf16.mxu0 0
      %2513 = vmatpush1.bf16.msra.mxu0 0
      %2514 = vmatprep.subr.bf16.mxu0 0
      %2515 = vmatpush1.bf16.msra.mxu0 0
      %2516 = vmatprep.subr.bf16.mxu0 0
      %2517 = vmatpush1.bf16.msra.mxu0 0
      %2518 = vmatprep.subr.bf16.mxu0 0
      %2519 = vmatpush1.bf16.msra.mxu0 0
      %2520 = vmatprep.subr.bf16.mxu0 0
      %2521 = vmatpush1.bf16.msra.mxu0 0
      %2522 = vmatprep.subr.bf16.mxu0 0
      %2523 = vmatpush1.bf16.msra.mxu0 0
      %2524 = vmatprep.subr.bf16.mxu0 0
      %2525 = vmatpush1.bf16.msra.mxu0 0
      %2526 = vmatprep.subr.bf16.mxu0 0
      %2527 = vmatpush1.bf16.msra.mxu0 %v2510
      %2528 = vmatprep.subr.bf16.mxu0 0
      %2529 = vmatpush2.bf16.msra.mxu0 0
      %2530 = vmatprep.subr.bf16.mxu0 0
      %2531 = vmatpush2.bf16.msra.mxu0 0
      %2532 = vmatprep.subr.bf16.mxu0 0
      %2533 = vmatpush2.bf16.msra.mxu0 0
      %2534 = vmatprep.subr.bf16.mxu0 0
      %2535 = vmatpush2.bf16.msra.mxu0 0
      %2536 = vmatprep.subr.bf16.mxu0 0
      %2537 = vmatpush2.bf16.msra.mxu0 0
      %2538 = vmatprep.subr.bf16.mxu0 0
      %2539 = vmatpush2.bf16.msra.mxu0 0
      %2540 = vmatprep.subr.bf16.mxu0 0
      %2541 = vmatpush2.bf16.msra.mxu0 0
      %2542 = vmatprep.subr.bf16.mxu0 0
      %2543 = vmatpush2.bf16.msra.mxu0 0
      %2544 = vmatprep.mubr.bf16.mxu0 0
      %2545 = vmatmul.mubr.bf16.gmra.mxu0 %v2507
      %v2546 = vpop.f32.mrf.mxu0
      %v2547 = vadd.f32 0.0, %v2546
      %v2548 = vpop.f32.mrf.mxu0
      %v2549 = vpop.f32.mrf.mxu0
      %v2550 = vpop.f32.mrf.mxu0
      %2551 = vdwg.mxu0
      %v2552 = vpack.c.bf16 %v2547, %v2547
      %v2557 = vunpack.c.l.b16 %v2432
      %v2558 = vunpack.c.l.b16 %v2433
      %v2559 = vunpack.c.l.b16 %v2434
      %v2560 = vunpack.c.l.b16 %v2435
      %v2561 = vpack.c.b16 %v2558, %v2557
      %v2562 = vpack.c.b16 %v2560, %v2559
      %v2566 = vsel %vm1626, %v2552, 0
      %2568 = vmatprep.subr.bf16.mxu0 0
      %2569 = vmatpush1.bf16.msra.mxu0 0
      %2570 = vmatprep.subr.bf16.mxu0 0
      %2571 = vmatpush1.bf16.msra.mxu0 0
      %2572 = vmatprep.subr.bf16.mxu0 0
      %2573 = vmatpush1.bf16.msra.mxu0 0
      %2574 = vmatprep.subr.bf16.mxu0 0
      %2575 = vmatpush1.bf16.msra.mxu0 0
      %2576 = vmatprep.subr.bf16.mxu0 0
      %2577 = vmatpush1.bf16.msra.mxu0 0
      %2578 = vmatprep.subr.bf16.mxu0 0
      %2579 = vmatpush1.bf16.msra.mxu0 0
      %2580 = vmatprep.subr.bf16.mxu0 0
      %2581 = vmatpush1.bf16.msra.mxu0 %v2562
      %2582 = vmatprep.subr.bf16.mxu0 0
      %2583 = vmatpush1.bf16.msra.mxu0 %v2561
      %2584 = vmatprep.subr.bf16.mxu0 0
      %2585 = vmatpush2.bf16.msra.mxu0 0
      %2586 = vmatprep.subr.bf16.mxu0 0
      %2587 = vmatpush2.bf16.msra.mxu0 0
      %2588 = vmatprep.subr.bf16.mxu0 0
      %2589 = vmatpush2.bf16.msra.mxu0 0
      %2590 = vmatprep.subr.bf16.mxu0 0
      %2591 = vmatpush2.bf16.msra.mxu0 0
      %2592 = vmatprep.subr.bf16.mxu0 0
      %2593 = vmatpush2.bf16.msra.mxu0 0
      %2594 = vmatprep.subr.bf16.mxu0 0
      %2595 = vmatpush2.bf16.msra.mxu0 0
      %2596 = vmatprep.subr.bf16.mxu0 0
      %2597 = vmatpush2.bf16.msra.mxu0 0
      %2598 = vmatprep.subr.bf16.mxu0 0
      %2599 = vmatpush2.bf16.msra.mxu0 0
      %2600 = vmatprep.mubr.bf16.mxu0 0
      %2601 = vmatmul.mubr.bf16.gmra.mxu0 %v2566
      %v2602 = vpop.f32.mrf.mxu0
      %v2603 = vadd.f32 0.0, %v2602
      %v2604 = vpop.f32.mrf.mxu0
      %v2605 = vpop.f32.mrf.mxu0
      %v2606 = vpop.f32.mrf.mxu0
      %2607 = vdwg.mxu0
      %v2609 = vlaneseq
      %v2610 = vshrl.u32 %v2609, 7
      %v2611 = vsub.s32 0, %v2610
      %v2612 = vrot.slane %v2441, %v2611
      %v2614 = vadd.f32 %v2612, %v2603
      %2615 = vrot.lane.b32.xlu0 %v2442, 96
      %v2616 = vpop.permute.xlu0 %2615
      %2617 = vrot.lane.b32.xlu0 %v2442, 32
      %v2618 = vpop.permute.xlu0 %2617
      %v2620 = vsel %vm1626, %v2616, 0
      %v2623 = vsel %vm1626, %v2618, 0
      %2625 = vmatprep.subr.bf16.mxu0 0
      %2626 = vmatpush1.bf16.xpose.msra.mxu0 0
      %2627 = vmatprep.subr.bf16.mxu0 0
      %2628 = vmatpush1.bf16.xpose.msra.mxu0 0
      %2629 = vmatprep.subr.bf16.mxu0 0
      %2630 = vmatpush1.bf16.xpose.msra.mxu0 0
      %2631 = vmatprep.subr.bf16.mxu0 0
      %2632 = vmatpush1.bf16.xpose.msra.mxu0 0
      %2633 = vmatprep.subr.bf16.mxu0 0
      %2634 = vmatpush1.bf16.xpose.msra.mxu0 0
      %2635 = vmatprep.subr.bf16.mxu0 0
      %2636 = vmatpush1.bf16.xpose.msra.mxu0 0
      %2637 = vmatprep.subr.bf16.mxu0 0
      %2638 = vmatpush1.bf16.xpose.msra.mxu0 0
      %2639 = vmatprep.subr.bf16.mxu0 0
      %2640 = vmatpush1.bf16.xpose.msra.mxu0 %v2623
      %2641 = vmatprep.subr.bf16.mxu0 0
      %2642 = vmatpush2.bf16.xpose.msra.mxu0 0
      %2643 = vmatprep.subr.bf16.mxu0 0
      %2644 = vmatpush2.bf16.xpose.msra.mxu0 0
      %2645 = vmatprep.subr.bf16.mxu0 0
      %2646 = vmatpush2.bf16.xpose.msra.mxu0 0
      %2647 = vmatprep.subr.bf16.mxu0 0
      %2648 = vmatpush2.bf16.xpose.msra.mxu0 0
      %2649 = vmatprep.subr.bf16.mxu0 0
      %2650 = vmatpush2.bf16.xpose.msra.mxu0 0
      %2651 = vmatprep.subr.bf16.mxu0 0
      %2652 = vmatpush2.bf16.xpose.msra.mxu0 0
      %2653 = vmatprep.subr.bf16.mxu0 0
      %2654 = vmatpush2.bf16.xpose.msra.mxu0 0
      %2655 = vmatprep.subr.bf16.mxu0 0
      %2656 = vmatpush2.bf16.xpose.msra.mxu0 0
      %2657 = vmatprep.mubr.bf16.mxu0 0
      %2658 = vmatmul.mubr.bf16.gmra.mxu0 %v2620
      %v2659 = vpop.f32.mrf.mxu0
      %v2660 = vadd.f32 0.0, %v2659
      %v2661 = vpop.f32.mrf.mxu0
      %v2662 = vpop.f32.mrf.mxu0
      %v2663 = vpop.f32.mrf.mxu0
      %2664 = vdwg.mxu0
      %v2665 = vmul.f32 %v2660, 0.17677669
      %v2666 = vsel %vm1674, %v2665, -inf
      %2667 = vmax.xlane.f32.xlu0 %v2666
      %v2668 = vpop.xlane.xlu0 %2667
      %v2669 = vsub.f32 %v2665, %v2668
      %v2670 = vmul.f32 %v2669, 1.442695
      %v2671 = vpow.pop %v2670
      %v2672 = vsel %vm1674, %v2671, 0.0
      %2673 = vadd.xlane.f32.xlu0 %v2672
      %v2674 = vpop.xlane.xlu0 %2673
      %v2675 = vrcp.pop %v2674
      %v2676 = vmul.f32 %v2671, %v2675
      %v2677 = vpack.c.bf16 %v2676, %v2676
      %2679 = vrot.lane.b32.xlu0 %v2443, 96
      %v2680 = vpop.permute.xlu0 %2679
      %v2682 = vsel %vm1687, %v2677, 0
      %v2685 = vand.u32 %v2680, %v1694
      %2687 = vmatprep.subr.bf16.mxu0 0
      %2688 = vmatpush1.bf16.msra.mxu0 0
      %2689 = vmatprep.subr.bf16.mxu0 0
      %2690 = vmatpush1.bf16.msra.mxu0 0
      %2691 = vmatprep.subr.bf16.mxu0 0
      %2692 = vmatpush1.bf16.msra.mxu0 0
      %2693 = vmatprep.subr.bf16.mxu0 0
      %2694 = vmatpush1.bf16.msra.mxu0 0
      %2695 = vmatprep.subr.bf16.mxu0 0
      %2696 = vmatpush1.bf16.msra.mxu0 0
      %2697 = vmatprep.subr.bf16.mxu0 0
      %2698 = vmatpush1.bf16.msra.mxu0 0
      %2699 = vmatprep.subr.bf16.mxu0 0
      %2700 = vmatpush1.bf16.msra.mxu0 0
      %2701 = vmatprep.subr.bf16.mxu0 0
      %2702 = vmatpush1.bf16.msra.mxu0 %v2685
      %2703 = vmatprep.subr.bf16.mxu0 0
      %2704 = vmatpush2.bf16.msra.mxu0 0
      %2705 = vmatprep.subr.bf16.mxu0 0
      %2706 = vmatpush2.bf16.msra.mxu0 0
      %2707 = vmatprep.subr.bf16.mxu0 0
      %2708 = vmatpush2.bf16.msra.mxu0 0
      %2709 = vmatprep.subr.bf16.mxu0 0
      %2710 = vmatpush2.bf16.msra.mxu0 0
      %2711 = vmatprep.subr.bf16.mxu0 0
      %2712 = vmatpush2.bf16.msra.mxu0 0
      %2713 = vmatprep.subr.bf16.mxu0 0
      %2714 = vmatpush2.bf16.msra.mxu0 0
      %2715 = vmatprep.subr.bf16.mxu0 0
      %2716 = vmatpush2.bf16.msra.mxu0 0
      %2717 = vmatprep.subr.bf16.mxu0 0
      %2718 = vmatpush2.bf16.msra.mxu0 0
      %2719 = vmatprep.mubr.bf16.mxu0 0
      %2720 = vmatmul.mubr.bf16.gmra.mxu0 %v2682
      %v2721 = vpop.f32.mrf.mxu0
      %v2722 = vadd.f32 0.0, %v2721
      %v2723 = vpop.f32.mrf.mxu0
      %v2724 = vpop.f32.mrf.mxu0
      %v2725 = vpop.f32.mrf.mxu0
      %2726 = vdwg.mxu0
      %v2727 = vpack.c.bf16 %v2722, %v2722
      %v2732 = vunpack.c.l.b16 %v2436
      %v2733 = vunpack.c.l.b16 %v2437
      %v2734 = vunpack.c.l.b16 %v2438
      %v2735 = vunpack.c.l.b16 %v2439
      %v2736 = vpack.c.b16 %v2733, %v2732
      %v2737 = vpack.c.b16 %v2735, %v2734
      %v2741 = vsel %vm1626, %v2727, 0
      %2743 = vmatprep.subr.bf16.mxu0 0
      %2744 = vmatpush1.bf16.msra.mxu0 0
      %2745 = vmatprep.subr.bf16.mxu0 0
      %2746 = vmatpush1.bf16.msra.mxu0 0
      %2747 = vmatprep.subr.bf16.mxu0 0
      %2748 = vmatpush1.bf16.msra.mxu0 0
      %2749 = vmatprep.subr.bf16.mxu0 0
      %2750 = vmatpush1.bf16.msra.mxu0 0
      %2751 = vmatprep.subr.bf16.mxu0 0
      %2752 = vmatpush1.bf16.msra.mxu0 0
      %2753 = vmatprep.subr.bf16.mxu0 0
      %2754 = vmatpush1.bf16.msra.mxu0 0
      %2755 = vmatprep.subr.bf16.mxu0 0
      %2756 = vmatpush1.bf16.msra.mxu0 %v2737
      %2757 = vmatprep.subr.bf16.mxu0 0
      %2758 = vmatpush1.bf16.msra.mxu0 %v2736
      %2759 = vmatprep.subr.bf16.mxu0 0
      %2760 = vmatpush2.bf16.msra.mxu0 0
      %2761 = vmatprep.subr.bf16.mxu0 0
      %2762 = vmatpush2.bf16.msra.mxu0 0
      %2763 = vmatprep.subr.bf16.mxu0 0
      %2764 = vmatpush2.bf16.msra.mxu0 0
      %2765 = vmatprep.subr.bf16.mxu0 0
      %2766 = vmatpush2.bf16.msra.mxu0 0
      %2767 = vmatprep.subr.bf16.mxu0 0
      %2768 = vmatpush2.bf16.msra.mxu0 0
      %2769 = vmatprep.subr.bf16.mxu0 0
      %2770 = vmatpush2.bf16.msra.mxu0 0
      %2771 = vmatprep.subr.bf16.mxu0 0
      %2772 = vmatpush2.bf16.msra.mxu0 0
      %2773 = vmatprep.subr.bf16.mxu0 0
      %2774 = vmatpush2.bf16.msra.mxu0 0
      %2775 = vmatprep.mubr.bf16.mxu0 0
      %2776 = vmatmul.mubr.bf16.gmra.mxu0 %v2741
      %v2777 = vpop.f32.mrf.mxu0
      %v2778 = vadd.f32 0.0, %v2777
      %v2779 = vpop.f32.mrf.mxu0
      %v2780 = vpop.f32.mrf.mxu0
      %v2781 = vpop.f32.mrf.mxu0
      %2782 = vdwg.mxu0
      %v2783 = vadd.f32 %v2614, %v2778
      %v2784 = vadd.f32 %v2292, %v2783
      %s2785 = scalar_lea.vmem %s11, 1
      %v2786 = vld [vmem:[%s2785] sm:$0x1]
      %s2787 = scalar_lea.vmem %s12, 1
      %v2788 = vld [vmem:[%s2787] sm:$0x1]
      %v2789 = vsel %vm1477, %v2784, 0.0
      %2790 = vadd.xlane.f32.xlu0 %v2789
      %v2791 = vpop.xlane.xlu0 %2790
      %v2792 = vmul.f32 %v2791, %v1481
      %v2793 = vsub.f32 %v2784, %v2792
      %v2794 = vmul.f32 %v2793, %v2793
      %v2795 = vsel %vm1477, %v2794, 0.0
      %2796 = vadd.xlane.f32.xlu0 %v2795
      %v2797 = vpop.xlane.xlu0 %2796
      %v2798 = vmul.f32 %v2797, %v1481
      %v2799 = vadd.f32 %v2798, 1e-06
      %v2800 = vrsqrt.pop %v2799
      %v2801 = vmul.f32 %v2793, %v2800
      %v2803 = vlaneseq
      %v2804 = vshrl.u32 %v2803, 7
      %v2805 = vsub.s32 0, %v2804
      %v2806 = vrot.slane %v2786, %v2805
      %v2808 = vmul.f32 %v2801, %v2806
      %v2810 = vlaneseq
      %v2811 = vshrl.u32 %v2810, 7
      %v2812 = vsub.s32 0, %v2811
      %v2813 = vrot.slane %v2788, %v2812
      %v2815 = vadd.f32 %v2808, %v2813
      %s2816 = scalar_lea.vmem %s13, 64
      %v2817 = vld [vmem:[%s2816] sm:$0xff]
      %v2818 = vld [vmem:[%s2816 + $0x8] sm:$0xff]
      %v2819 = vld [vmem:[%s2816 + $0x10] sm:$0xff]
      %v2820 = vld [vmem:[%s2816 + $0x18] sm:$0xff]
      %v2821 = vld [vmem:[%s2816 + $0x20] sm:$0xff]
      %v2822 = vld [vmem:[%s2816 + $0x28] sm:$0xff]
      %v2823 = vld [vmem:[%s2816 + $0x30] sm:$0xff]
      %v2824 = vld [vmem:[%s2816 + $0x38] sm:$0xff]
      %s2825 = scalar_lea.vmem %s14, 2
      %v2826 = vld [vmem:[%s2825] sm:$0x3]
      %v2827 = vpack.c.bf16 %v2815, %v2815
      %v2829 = vlaneseq
      %v2830 = vshrl.u32 %v2829, 7
      %v2831 = vsub.s32 0, %v2830
      %v2832 = vrot.slane %v2826, %v2831
      %v2833 = vlaneseq
      %v2834 = vshrl.u32 %v2833, 7
      %v2835 = vsub.s32 1, %v2834
      %v2836 = vrot.slane %v2826, %v2835
      %v2847 = vunpack.c.l.b16 %v2817
      %v2848 = vunpack.c.h.b16 %v2817
      %v2849 = vunpack.c.l.b16 %v2818
      %v2850 = vunpack.c.h.b16 %v2818
      %v2851 = vunpack.c.l.b16 %v2819
      %v2852 = vunpack.c.h.b16 %v2819
      %v2853 = vunpack.c.l.b16 %v2820
      %v2854 = vunpack.c.h.b16 %v2820
      %v2855 = vunpack.c.l.b16 %v2821
      %v2856 = vunpack.c.h.b16 %v2821
      %v2857 = vunpack.c.l.b16 %v2822
      %v2858 = vunpack.c.h.b16 %v2822
      %v2859 = vunpack.c.l.b16 %v2823
      %v2860 = vunpack.c.h.b16 %v2823
      %v2861 = vunpack.c.l.b16 %v2824
      %v2862 = vunpack.c.h.b16 %v2824
      %v2863 = vpack.c.b16 %v2849, %v2847
      %v2864 = vpack.c.b16 %v2850, %v2848
      %v2865 = vpack.c.b16 %v2853, %v2851
      %v2866 = vpack.c.b16 %v2854, %v2852
      %v2867 = vpack.c.b16 %v2857, %v2855
      %v2868 = vpack.c.b16 %v2858, %v2856
      %v2869 = vpack.c.b16 %v2861, %v2859
      %v2870 = vpack.c.b16 %v2862, %v2860
      %v2880 = vsel %vm1567, %v2827, 0
      %2882 = vmatprep.subr.bf16.mxu0 0
      %2883 = vmatpush1.bf16.msra.mxu0 0
      %2884 = vmatprep.subr.bf16.mxu0 0
      %2885 = vmatpush1.bf16.msra.mxu0 0
      %2886 = vmatprep.subr.bf16.mxu0 0
      %2887 = vmatpush1.bf16.msra.mxu0 0
      %2888 = vmatprep.subr.bf16.mxu0 0
      %2889 = vmatpush1.bf16.msra.mxu0 0
      %2890 = vmatprep.subr.bf16.mxu0 %v2870
      %2891 = vmatpush1.bf16.msra.mxu0 %v2869
      %2892 = vmatprep.subr.bf16.mxu0 %v2868
      %2893 = vmatpush1.bf16.msra.mxu0 %v2867
      %2894 = vmatprep.subr.bf16.mxu0 %v2866
      %2895 = vmatpush1.bf16.msra.mxu0 %v2865
      %2896 = vmatprep.subr.bf16.mxu0 %v2864
      %2897 = vmatpush1.bf16.msra.mxu0 %v2863
      %2898 = vmatprep.subr.bf16.mxu0 0
      %2899 = vmatpush2.bf16.msra.mxu0 0
      %2900 = vmatprep.subr.bf16.mxu0 0
      %2901 = vmatpush2.bf16.msra.mxu0 0
      %2902 = vmatprep.subr.bf16.mxu0 0
      %2903 = vmatpush2.bf16.msra.mxu0 0
      %2904 = vmatprep.subr.bf16.mxu0 0
      %2905 = vmatpush2.bf16.msra.mxu0 0
      %2906 = vmatprep.subr.bf16.mxu0 0
      %2907 = vmatpush2.bf16.msra.mxu0 0
      %2908 = vmatprep.subr.bf16.mxu0 0
      %2909 = vmatpush2.bf16.msra.mxu0 0
      %2910 = vmatprep.subr.bf16.mxu0 0
      %2911 = vmatpush2.bf16.msra.mxu0 0
      %2912 = vmatprep.subr.bf16.mxu0 0
      %2913 = vmatpush2.bf16.msra.mxu0 0
      %2914 = vmatprep.mubr.bf16.mxu0 0
      %2915 = vmatmul.mubr.bf16.gmra.mxu0 %v2880
      %v2916 = vpop.f32.mrf.mxu0
      %v2917 = vadd.f32 %v2832, %v2916
      %v2918 = vpop.f32.mrf.mxu0
      %v2919 = vadd.f32 %v2836, %v2918
      %v2920 = vpop.f32.mrf.mxu0
      %v2921 = vpop.f32.mrf.mxu0
      %2922 = vdwg.mxu0
      %v2923 = vmul.f32 %v2917, 0.5
      %v2924 = vmul.f32 %v2919, 0.5
      %v2925 = vmul.f32 %v2917, 0.70710677
      %v2926 = vmul.f32 %v2919, 0.70710677
      %v2927 = verf.f32.pop %v2925
      %v2928 = verf.f32.pop %v2926
      %v2929 = vadd.f32 %v2927, 1.0
      %v2930 = vadd.f32 %v2928, 1.0
      %v2931 = vmul.f32 %v2923, %v2929
      %v2932 = vmul.f32 %v2924, %v2930
      %s2933 = scalar_lea.vmem %s15, 128
      %v2934 = vld [vmem:[%s2933] sm:$0xf]
      %v2935 = vld [vmem:[%s2933 + $0x4] sm:$0xf]
      %v2936 = vld [vmem:[%s2933 + $0x8] sm:$0xf]
      %v2937 = vld [vmem:[%s2933 + $0xc] sm:$0xf]
      %v2938 = vld [vmem:[%s2933 + $0x10] sm:$0xf]
      %v2939 = vld [vmem:[%s2933 + $0x14] sm:$0xf]
      %v2940 = vld [vmem:[%s2933 + $0x18] sm:$0xf]
      %v2941 = vld [vmem:[%s2933 + $0x1c] sm:$0xf]
      %v2942 = vld [vmem:[%s2933 + $0x20] sm:$0xf]
      %v2943 = vld [vmem:[%s2933 + $0x24] sm:$0xf]
      %v2944 = vld [vmem:[%s2933 + $0x28] sm:$0xf]
      %v2945 = vld [vmem:[%s2933 + $0x2c] sm:$0xf]
      %v2946 = vld [vmem:[%s2933 + $0x30] sm:$0xf]
      %v2947 = vld [vmem:[%s2933 + $0x34] sm:$0xf]
      %v2948 = vld [vmem:[%s2933 + $0x38] sm:$0xf]
      %v2949 = vld [vmem:[%s2933 + $0x3c] sm:$0xf]
      %v2950 = vld [vmem:[%s2933 + $0x40] sm:$0xf]
      %v2951 = vld [vmem:[%s2933 + $0x44] sm:$0xf]
      %v2952 = vld [vmem:[%s2933 + $0x48] sm:$0xf]
      %v2953 = vld [vmem:[%s2933 + $0x4c] sm:$0xf]
      %v2954 = vld [vmem:[%s2933 + $0x50] sm:$0xf]
      %v2955 = vld [vmem:[%s2933 + $0x54] sm:$0xf]
      %v2956 = vld [vmem:[%s2933 + $0x58] sm:$0xf]
      %v2957 = vld [vmem:[%s2933 + $0x5c] sm:$0xf]
      %v2958 = vld [vmem:[%s2933 + $0x60] sm:$0xf]
      %v2959 = vld [vmem:[%s2933 + $0x64] sm:$0xf]
      %v2960 = vld [vmem:[%s2933 + $0x68] sm:$0xf]
      %v2961 = vld [vmem:[%s2933 + $0x6c] sm:$0xf]
      %v2962 = vld [vmem:[%s2933 + $0x70] sm:$0xf]
      %v2963 = vld [vmem:[%s2933 + $0x74] sm:$0xf]
      %v2964 = vld [vmem:[%s2933 + $0x78] sm:$0xf]
      %v2965 = vld [vmem:[%s2933 + $0x7c] sm:$0xf]
      %s2966 = scalar_lea.vmem %s16, 1
      %v2967 = vld [vmem:[%s2966] sm:$0x1]
      %v2968 = vpack.c.bf16 %v2931, %v2931
      %v2969 = vpack.c.bf16 %v2932, %v2932
      %v2971 = vlaneseq
      %v2972 = vshrl.u32 %v2971, 7
      %v2973 = vsub.s32 0, %v2972
      %v2974 = vrot.slane %v2967, %v2973
      %v3008 = vunpack.c.l.b16 %v2934
      %v3009 = vunpack.c.l.b16 %v2935
      %v3010 = vunpack.c.l.b16 %v2936
      %v3011 = vunpack.c.l.b16 %v2937
      %v3012 = vunpack.c.l.b16 %v2938
      %v3013 = vunpack.c.l.b16 %v2939
      %v3014 = vunpack.c.l.b16 %v2940
      %v3015 = vunpack.c.l.b16 %v2941
      %v3016 = vunpack.c.l.b16 %v2942
      %v3017 = vunpack.c.l.b16 %v2943
      %v3018 = vunpack.c.l.b16 %v2944
      %v3019 = vunpack.c.l.b16 %v2945
      %v3020 = vunpack.c.l.b16 %v2946
      %v3021 = vunpack.c.l.b16 %v2947
      %v3022 = vunpack.c.l.b16 %v2948
      %v3023 = vunpack.c.l.b16 %v2949
      %v3024 = vunpack.c.l.b16 %v2950
      %v3025 = vunpack.c.l.b16 %v2951
      %v3026 = vunpack.c.l.b16 %v2952
      %v3027 = vunpack.c.l.b16 %v2953
      %v3028 = vunpack.c.l.b16 %v2954
      %v3029 = vunpack.c.l.b16 %v2955
      %v3030 = vunpack.c.l.b16 %v2956
      %v3031 = vunpack.c.l.b16 %v2957
      %v3032 = vunpack.c.l.b16 %v2958
      %v3033 = vunpack.c.l.b16 %v2959
      %v3034 = vunpack.c.l.b16 %v2960
      %v3035 = vunpack.c.l.b16 %v2961
      %v3036 = vunpack.c.l.b16 %v2962
      %v3037 = vunpack.c.l.b16 %v2963
      %v3038 = vunpack.c.l.b16 %v2964
      %v3039 = vunpack.c.l.b16 %v2965
      %v3040 = vpack.c.b16 %v3009, %v3008
      %v3041 = vpack.c.b16 %v3011, %v3010
      %v3042 = vpack.c.b16 %v3013, %v3012
      %v3043 = vpack.c.b16 %v3015, %v3014
      %v3044 = vpack.c.b16 %v3017, %v3016
      %v3045 = vpack.c.b16 %v3019, %v3018
      %v3046 = vpack.c.b16 %v3021, %v3020
      %v3047 = vpack.c.b16 %v3023, %v3022
      %v3048 = vpack.c.b16 %v3025, %v3024
      %v3049 = vpack.c.b16 %v3027, %v3026
      %v3050 = vpack.c.b16 %v3029, %v3028
      %v3051 = vpack.c.b16 %v3031, %v3030
      %v3052 = vpack.c.b16 %v3033, %v3032
      %v3053 = vpack.c.b16 %v3035, %v3034
      %v3054 = vpack.c.b16 %v3037, %v3036
      %v3055 = vpack.c.b16 %v3039, %v3038
      %3072 = vmatprep.subr.bf16.mxu0 0
      %3073 = vmatpush1.bf16.msra.mxu0 %v3047
      %3074 = vmatprep.subr.bf16.mxu0 0
      %3075 = vmatpush1.bf16.msra.mxu0 %v3046
      %3076 = vmatprep.subr.bf16.mxu0 0
      %3077 = vmatpush1.bf16.msra.mxu0 %v3045
      %3078 = vmatprep.subr.bf16.mxu0 0
      %3079 = vmatpush1.bf16.msra.mxu0 %v3044
      %3080 = vmatprep.subr.bf16.mxu0 0
      %3081 = vmatpush1.bf16.msra.mxu0 %v3043
      %3082 = vmatprep.subr.bf16.mxu0 0
      %3083 = vmatpush1.bf16.msra.mxu0 %v3042
      %3084 = vmatprep.subr.bf16.mxu0 0
      %3085 = vmatpush1.bf16.msra.mxu0 %v3041
      %3086 = vmatprep.subr.bf16.mxu0 0
      %3087 = vmatpush1.bf16.msra.mxu0 %v3040
      %3088 = vmatprep.subr.bf16.mxu0 0
      %3089 = vmatpush2.bf16.msra.mxu0 %v3055
      %3090 = vmatprep.subr.bf16.mxu0 0
      %3091 = vmatpush2.bf16.msra.mxu0 %v3054
      %3092 = vmatprep.subr.bf16.mxu0 0
      %3093 = vmatpush2.bf16.msra.mxu0 %v3053
      %3094 = vmatprep.subr.bf16.mxu0 0
      %3095 = vmatpush2.bf16.msra.mxu0 %v3052
      %3096 = vmatprep.subr.bf16.mxu0 0
      %3097 = vmatpush2.bf16.msra.mxu0 %v3051
      %3098 = vmatprep.subr.bf16.mxu0 0
      %3099 = vmatpush2.bf16.msra.mxu0 %v3050
      %3100 = vmatprep.subr.bf16.mxu0 0
      %3101 = vmatpush2.bf16.msra.mxu0 %v3049
      %3102 = vmatprep.subr.bf16.mxu0 0
      %3103 = vmatpush2.bf16.msra.mxu0 %v3048
      %3104 = vmatprep.mubr.bf16.mxu0 %v2969
      %3105 = vmatmul.mubr.bf16.gmra.mxu0 %v2968
      %v3106 = vpop.f32.mrf.mxu0
      %v3107 = vadd.f32 %v2974, %v3106
      %v3108 = vpop.f32.mrf.mxu0
      %v3109 = vpop.f32.mrf.mxu0
      %v3110 = vpop.f32.mrf.mxu0
      %3111 = vdwg.mxu0
      %v3112 = vadd.f32 %v2784, %v3107
      %v3113 = vld [vmem:[%s17] sm:$0x1]
      %v3114 = vld [vmem:[%s18] sm:$0x1]
      %v3115 = vsel %vm1477, %v3112, 0.0
      %3116 = vadd.xlane.f32.xlu0 %v3115
      %v3117 = vpop.xlane.xlu0 %3116
      %v3118 = vmul.f32 %v3117, %v1481
      %v3119 = vsub.f32 %v3112, %v3118
      %v3120 = vmul.f32 %v3119, %v3119
      %v3121 = vsel %vm1477, %v3120, 0.0
      %3122 = vadd.xlane.f32.xlu0 %v3121
      %v3123 = vpop.xlane.xlu0 %3122
      %v3124 = vmul.f32 %v3123, %v1481
      %v3125 = vadd.f32 %v3124, 1e-06
      %v3126 = vrsqrt.pop %v3125
      %v3127 = vmul.f32 %v3119, %v3126
      %v3129 = vlaneseq
      %v3130 = vshrl.u32 %v3129, 7
      %v3131 = vsub.s32 0, %v3130
      %v3132 = vrot.slane %v3113, %v3131
      %v3134 = vmul.f32 %v3127, %v3132
      %v3136 = vlaneseq
      %v3137 = vshrl.u32 %v3136, 7
      %v3138 = vsub.s32 0, %v3137
      %v3139 = vrot.slane %v3114, %v3138
      %v3141 = vadd.f32 %v3134, %v3139
      %v3142 = vld [vmem:[%s19] sm:$0xf]
      %v3143 = vld [vmem:[%s19 + $0x4] sm:$0xf]
      %v3144 = vld [vmem:[%s19 + $0x8] sm:$0xf]
      %v3145 = vld [vmem:[%s19 + $0xc] sm:$0xf]
      %v3146 = vld [vmem:[%s19 + $0x10] sm:$0xf]
      %v3147 = vld [vmem:[%s19 + $0x14] sm:$0xf]
      %v3148 = vld [vmem:[%s19 + $0x18] sm:$0xf]
      %v3149 = vld [vmem:[%s19 + $0x1c] sm:$0xf]
      %v3150 = vld [vmem:[%s20] sm:$0x1]
      %v3151 = vpack.c.bf16 %v3141, %v3141
      %v3160 = vunpack.c.l.b16 %v3142
      %v3161 = vunpack.c.l.b16 %v3143
      %v3162 = vunpack.c.l.b16 %v3144
      %v3163 = vunpack.c.l.b16 %v3145
      %v3164 = vunpack.c.l.b16 %v3146
      %v3165 = vunpack.c.l.b16 %v3147
      %v3166 = vunpack.c.l.b16 %v3148
      %v3167 = vunpack.c.l.b16 %v3149
      %v3168 = vpack.c.b16 %v3161, %v3160
      %v3169 = vpack.c.b16 %v3163, %v3162
      %v3170 = vpack.c.b16 %v3165, %v3164
      %v3171 = vpack.c.b16 %v3167, %v3166
      %v3177 = vsel %vm1567, %v3151, 0
      %3179 = vmatprep.subr.bf16.mxu0 0
      %3180 = vmatpush1.bf16.msra.mxu0 0
      %3181 = vmatprep.subr.bf16.mxu0 0
      %3182 = vmatpush1.bf16.msra.mxu0 0
      %3183 = vmatprep.subr.bf16.mxu0 0
      %3184 = vmatpush1.bf16.msra.mxu0 0
      %3185 = vmatprep.subr.bf16.mxu0 0
      %3186 = vmatpush1.bf16.msra.mxu0 0
      %3187 = vmatprep.subr.bf16.mxu0 0
      %3188 = vmatpush1.bf16.msra.mxu0 %v3171
      %3189 = vmatprep.subr.bf16.mxu0 0
      %3190 = vmatpush1.bf16.msra.mxu0 %v3170
      %3191 = vmatprep.subr.bf16.mxu0 0
      %3192 = vmatpush1.bf16.msra.mxu0 %v3169
      %3193 = vmatprep.subr.bf16.mxu0 0
      %3194 = vmatpush1.bf16.msra.mxu0 %v3168
      %3195 = vmatprep.subr.bf16.mxu0 0
      %3196 = vmatpush2.bf16.msra.mxu0 0
      %3197 = vmatprep.subr.bf16.mxu0 0
      %3198 = vmatpush2.bf16.msra.mxu0 0
      %3199 = vmatprep.subr.bf16.mxu0 0
      %3200 = vmatpush2.bf16.msra.mxu0 0
      %3201 = vmatprep.subr.bf16.mxu0 0
      %3202 = vmatpush2.bf16.msra.mxu0 0
      %3203 = vmatprep.subr.bf16.mxu0 0
      %3204 = vmatpush2.bf16.msra.mxu0 0
      %3205 = vmatprep.subr.bf16.mxu0 0
      %3206 = vmatpush2.bf16.msra.mxu0 0
      %3207 = vmatprep.subr.bf16.mxu0 0
      %3208 = vmatpush2.bf16.msra.mxu0 0
      %3209 = vmatprep.subr.bf16.mxu0 0
      %3210 = vmatpush2.bf16.msra.mxu0 0
      %3211 = vmatprep.mubr.bf16.mxu0 0
      %3212 = vmatmul.mubr.bf16.gmra.mxu0 %v3177
      %v3213 = vpop.f32.mrf.mxu0
      %v3214 = vadd.f32 %v3150, %v3213
      %v3215 = vpop.f32.mrf.mxu0
      %v3216 = vpop.f32.mrf.mxu0
      %v3217 = vpop.f32.mrf.mxu0
      %3218 = vdwg.mxu0
      %v3219 = vld [vmem:[%s773] sm:$0x1]
      %v3220 = vld [vmem:[%s21] sm:$0xf]
      %v3221 = vld [vmem:[%s21 + $0x4] sm:$0xf]
      %v3222 = vld [vmem:[%s21 + $0x8] sm:$0xf]
      %v3223 = vld [vmem:[%s21 + $0xc] sm:$0xf]
      %v3224 = vld [vmem:[%s21 + $0x10] sm:$0xf]
      %v3225 = vpack.c.bf16 %v3214, %v3214
      %v3226 = vpack.c.bf16 %v3219, %v3219
      %vm3227 = vcmask 64512
      %v3229 = vsel %vm3227, %v3226, 0
      %vm3231 = vcmask 1043456
      %v3233 = vsel %vm3231, %v3224, 0
      %3235 = vmatprep.subr.bf16.mxu0 0
      %3236 = vmatpush1.bf16.msra.mxu0 0
      %3237 = vmatprep.subr.bf16.mxu0 0
      %3238 = vmatpush1.bf16.msra.mxu0 0
      %3239 = vmatprep.subr.bf16.mxu0 0
      %3240 = vmatpush1.bf16.msra.mxu0 0
      %3241 = vmatprep.subr.bf16.mxu0 0
      %3242 = vmatpush1.bf16.msra.mxu0 0
      %3243 = vmatprep.subr.bf16.mxu0 0
      %3244 = vmatpush1.bf16.msra.mxu0 0
      %3245 = vmatprep.subr.bf16.mxu0 0
      %3246 = vmatpush1.bf16.msra.mxu0 0
      %3247 = vmatprep.subr.bf16.mxu0 0
      %3248 = vmatpush1.bf16.msra.mxu0 0
      %3249 = vmatprep.subr.bf16.mxu0 0
      %3250 = vmatpush1.bf16.msra.mxu0 %v3233
      %3251 = vmatprep.subr.bf16.mxu0 0
      %3252 = vmatpush2.bf16.msra.mxu0 0
      %3253 = vmatprep.subr.bf16.mxu0 0
      %3254 = vmatpush2.bf16.msra.mxu0 0
      %3255 = vmatprep.subr.bf16.mxu0 0
      %3256 = vmatpush2.bf16.msra.mxu0 0
      %3257 = vmatprep.subr.bf16.mxu0 0
      %3258 = vmatpush2.bf16.msra.mxu0 0
      %3259 = vmatprep.subr.bf16.mxu0 0
      %3260 = vmatpush2.bf16.msra.mxu0 0
      %3261 = vmatprep.subr.bf16.mxu0 0
      %3262 = vmatpush2.bf16.msra.mxu0 0
      %3263 = vmatprep.subr.bf16.mxu0 0
      %3264 = vmatpush2.bf16.msra.mxu0 0
      %3265 = vmatprep.subr.bf16.mxu0 0
      %3266 = vmatpush2.bf16.msra.mxu0 0
      %3267 = vmatprep.mubr.bf16.mxu0 0
      %3268 = vmatmul.mubr.bf16.gmra.mxu0 %v3229
      %v3269 = vpop.f32.mrf.mxu0
      %v3270 = vadd.f32 0.0, %v3269
      %v3271 = vpop.f32.mrf.mxu0
      %v3272 = vpop.f32.mrf.mxu0
      %v3273 = vpop.f32.mrf.mxu0
      %3274 = vdwg.mxu0
      %v3279 = vunpack.c.l.b16 %v3220
      %v3280 = vunpack.c.l.b16 %v3221
      %v3281 = vunpack.c.l.b16 %v3222
      %v3282 = vunpack.c.l.b16 %v3223
      %v3283 = vpack.c.b16 %v3280, %v3279
      %v3284 = vpack.c.b16 %v3282, %v3281
      %v3288 = vsel %vm1626, %v3225, 0
      %3290 = vmatprep.subr.bf16.mxu0 0
      %3291 = vmatpush1.bf16.msra.mxu0 0
      %3292 = vmatprep.subr.bf16.mxu0 0
      %3293 = vmatpush1.bf16.msra.mxu0 0
      %3294 = vmatprep.subr.bf16.mxu0 0
      %3295 = vmatpush1.bf16.msra.mxu0 0
      %3296 = vmatprep.subr.bf16.mxu0 0
      %3297 = vmatpush1.bf16.msra.mxu0 0
      %3298 = vmatprep.subr.bf16.mxu0 0
      %3299 = vmatpush1.bf16.msra.mxu0 0
      %3300 = vmatprep.subr.bf16.mxu0 0
      %3301 = vmatpush1.bf16.msra.mxu0 0
      %3302 = vmatprep.subr.bf16.mxu0 0
      %3303 = vmatpush1.bf16.msra.mxu0 %v3284
      %3304 = vmatprep.subr.bf16.mxu0 0
      %3305 = vmatpush1.bf16.msra.mxu0 %v3283
      %3306 = vmatprep.subr.bf16.mxu0 0
      %3307 = vmatpush2.bf16.msra.mxu0 0
      %3308 = vmatprep.subr.bf16.mxu0 0
      %3309 = vmatpush2.bf16.msra.mxu0 0
      %3310 = vmatprep.subr.bf16.mxu0 0
      %3311 = vmatpush2.bf16.msra.mxu0 0
      %3312 = vmatprep.subr.bf16.mxu0 0
      %3313 = vmatpush2.bf16.msra.mxu0 0
      %3314 = vmatprep.subr.bf16.mxu0 0
      %3315 = vmatpush2.bf16.msra.mxu0 0
      %3316 = vmatprep.subr.bf16.mxu0 0
      %3317 = vmatpush2.bf16.msra.mxu0 0
      %3318 = vmatprep.subr.bf16.mxu0 0
      %3319 = vmatpush2.bf16.msra.mxu0 0
      %3320 = vmatprep.subr.bf16.mxu0 0
      %3321 = vmatpush2.bf16.msra.mxu0 0
      %3322 = vmatprep.mubr.bf16.mxu0 0
      %3323 = vmatmul.mubr.bf16.gmra.mxu0 %v3288
      %v3324 = vpop.f32.mrf.mxu0
      %v3325 = vadd.f32 %v3270, %v3324
      %v3326 = vpop.f32.mrf.mxu0
      %v3327 = vpop.f32.mrf.mxu0
      %v3328 = vpop.f32.mrf.mxu0
      %3329 = vdwg.mxu0
      %v3330 = vld [vmem:[%s22] sm:$0x1]
      %v3331 = vadd.f32 %v3325, %v3330
      %v3332 = vmax.f32 %v3331, 0.0
      %v3333 = vld [vmem:[%s23] sm:$0xf]
      %v3334 = vld [vmem:[%s23 + $0x4] sm:$0xf]
      %v3335 = vld [vmem:[%s23 + $0x8] sm:$0xf]
      %v3336 = vld [vmem:[%s23 + $0xc] sm:$0xf]
      %v3337 = vld [vmem:[#allocation2] sm:$0x1]
      %v3338 = vpack.c.bf16 %v3332, %v3332
      %v3343 = vunpack.c.l.b16 %v3333
      %v3344 = vunpack.c.l.b16 %v3334
      %v3345 = vunpack.c.l.b16 %v3335
      %v3346 = vunpack.c.l.b16 %v3336
      %v3347 = vpack.c.b16 %v3344, %v3343
      %v3348 = vpack.c.b16 %v3346, %v3345
      %v3352 = vsel %vm1626, %v3338, 0
      %3354 = vmatprep.subr.bf16.mxu0 0
      %3355 = vmatpush1.bf16.msra.mxu0 0
      %3356 = vmatprep.subr.bf16.mxu0 0
      %3357 = vmatpush1.bf16.msra.mxu0 0
      %3358 = vmatprep.subr.bf16.mxu0 0
      %3359 = vmatpush1.bf16.msra.mxu0 0
      %3360 = vmatprep.subr.bf16.mxu0 0
      %3361 = vmatpush1.bf16.msra.mxu0 0
      %3362 = vmatprep.subr.bf16.mxu0 0
      %3363 = vmatpush1.bf16.msra.mxu0 0
      %3364 = vmatprep.subr.bf16.mxu0 0
      %3365 = vmatpush1.bf16.msra.mxu0 0
      %3366 = vmatprep.subr.bf16.mxu0 0
      %3367 = vmatpush1.bf16.msra.mxu0 %v3348
      %3368 = vmatprep.subr.bf16.mxu0 0
      %3369 = vmatpush1.bf16.msra.mxu0 %v3347
      %3370 = vmatprep.subr.bf16.mxu0 0
      %3371 = vmatpush2.bf16.msra.mxu0 0
      %3372 = vmatprep.subr.bf16.mxu0 0
      %3373 = vmatpush2.bf16.msra.mxu0 0
      %3374 = vmatprep.subr.bf16.mxu0 0
      %3375 = vmatpush2.bf16.msra.mxu0 0
      %3376 = vmatprep.subr.bf16.mxu0 0
      %3377 = vmatpush2.bf16.msra.mxu0 0
      %3378 = vmatprep.subr.bf16.mxu0 0
      %3379 = vmatpush2.bf16.msra.mxu0 0
      %3380 = vmatprep.subr.bf16.mxu0 0
      %3381 = vmatpush2.bf16.msra.mxu0 0
      %3382 = vmatprep.subr.bf16.mxu0 0
      %3383 = vmatpush2.bf16.msra.mxu0 0
      %3384 = vmatprep.subr.bf16.mxu0 0
      %3385 = vmatpush2.bf16.msra.mxu0 0
      %3386 = vmatprep.mubr.bf16.mxu0 0
      %3387 = vmatmul.mubr.bf16.gmra.mxu0 %v3352
      %v3388 = vpop.f32.mrf.mxu0
      %v3389 = vadd.f32 %v3337, %v3388
      %v3390 = vpop.f32.mrf.mxu0
      %v3391 = vpop.f32.mrf.mxu0
      %v3392 = vpop.f32.mrf.mxu0
      %3393 = vdwg.mxu0
      %vm3394 = vcmask 0
      %3395 = vst.msk [vmem:[%s776] sm:$0x1] %vm3394, %v3389
      %p3396 = scmp.lt.s32.totalorder %s38, 1
      %s3397 = scalar_select %p3396, %s38, 1
      %s3398 = scalar_lea.vmem %s25, %s3397
      // Predicated region
      $region121: #{model_forward.1} parent=119 // pred_check
        %p3399 = pneg %p591
      $region122: #{model_forward.1} parent=119 // pred_check_branch
        %3401 = sbr.rel (%p3399) target = $region124
      $region123: #{model_forward.1} parent=119 // pred_region
        _
      $region124: #{model_forward.1} parent=119 // pred_fallthru
        _
    $region120: #{model_forward.1} parent=5 // pred_fallthru
      _
    %p3402 = scmp.le.s32.totalorder 2, %s33
    // Predicated region
    $region125: #{model_forward.1} parent=5 // pred_check
      %p3403 = pneg %p3402
    $region126: #{model_forward.1} parent=5 // pred_check_branch
      %3405 = sbr.rel (%p3403) target = $region128
    $region127: #{model_forward.1} parent=5 // pred_region
      %s3406 = ssub.s32 %s33, 2
      // Predicated region
      $region129: #{model_forward.1} parent=127 // pred_check
        %p3407 = pneg %p597
      $region130: #{model_forward.1} parent=127 // pred_check_branch
        %3409 = sbr.rel (%p3407) target = $region132
      $region131: #{model_forward.1} parent=127 // pred_region
        %p3410 = scmp.lt.s32.totalorder %s39, 1
        %s3411 = scalar_select %p3410, %s39, 1
        %s3412 = scalar_lea.vmem %s25, %s3411
      $region132: #{model_forward.1} parent=127 // pred_fallthru
        _
    $region128: #{model_forward.1} parent=5 // pred_fallthru
      _
  $region6: #{model_forward.1} parent=0 // loop_footer
    %s37 = sadd.s32 1, %s33
  $region7: #{model_forward.1} parent=0 // loop_footer_branch
    %32 = sbr.rel target = $region3
  $region8: #{model_forward.1} parent=0 // loop_exit
    _

</llo_original>
